<compile_context>
chip_gen: v6e
topology: v6e:2x2x1
jax: 0.10.0
libtpu: 0.0.40
codegen_flags: <defaults>
</compile_context>

<pallas_src>
import functools
import math

import jax
import jax.numpy as jnp
from jax.experimental import pallas as pl
from jax.experimental.pallas import tpu as pltpu

H_LSTM = 128       # LSTM hidden size (fixed by the module)
CONV1_K = 7        # conv1 kernel size
CONV1_STRIDE = 2
CONV1_PAD = 3


# ------------------------------ fused kernel -------------------------------

def _fused_kernel(xp_ref, c1w_ref, c1b_ref, pyrw_ref, pyrb_ref,
                  cnw_ref, cnb_ref,
                  wih0_ref, whh0_ref, b0_ref, w1cat_ref, b1_ref,
                  f1w_ref, f1b_ref, f2w_ref, f2b_ref,
                  out_ref, xproj_ref, *, L1, b_tile, max_pad):
    bf16, f32 = jnp.bfloat16, jnp.float32
    H = H_LSTM
    M = L1 * b_tile

    # ---- conv1: Conv1d(1, 64, k=7, s=2, p=3) as one (M, 8) x (8, 64) matmul on
    # the pre-gathered, time-major patch tile.
    xp = xp_ref[...].reshape(M, -1).astype(bf16)                     # (M, 8)
    y1 = jnp.dot(xp, c1w_ref[...], preferred_element_type=f32) + c1b_ref[...]
    y1 = y1.reshape(L1, b_tile, 64)                                  # time-major

    # ---- pyramid: branches with equal time offset were pre-summed host-side
    # into one effective k = 2*max_pad+1 conv.  Build the concatenated shifted
    # operand with whole-tile (leading-axis) shifts -> one K=448 matmul.
    # TODO(synk): PyramidConv1D is not defined in the provided source; assumed
    # multi-scale Conv1d(64->128, k=3/5/7, 'same') branches summed then ReLU.
    zpad = jnp.zeros((max_pad, b_tile, 64), f32)
    cols = []
    for d in range(-max_pad, max_pad + 1):
        if d == 0:
            cols.append(y1)
        elif d > 0:
            cols.append(jnp.concatenate([y1[d:], zpad[:d]], axis=0))
        else:
            cols.append(jnp.concatenate([zpad[:-d], y1[:L1 + d]], axis=0))
    xcat = jnp.concatenate(cols, axis=-1).reshape(M, (2 * max_pad + 1) * 64)
    z = jnp.maximum(
        jnp.dot(xcat.astype(bf16), pyrw_ref[...],
                preferred_element_type=f32) + pyrb_ref[...], 0.0)    # (M, 128)

    # ---- connect_conv (1x1, 128 -> 64); result already in the LSTM layout.
    y2 = jnp.dot(z.astype(bf16), cnw_ref[...],
                 preferred_element_type=f32) + cnb_ref[...]          # (M, 64)

    # ---- LSTM layer-0 input projection hoisted over all timesteps.
    xproj = jnp.dot(y2.astype(bf16), wih0_ref[...],
                    preferred_element_type=f32) + b0_ref[...]        # (M, 4H)
    xproj_ref[...] = xproj.reshape(L1, b_tile, 4 * H)

    # Recurrent weights / biases loaded once, outside the time loop.
    whh0 = whh0_ref[...]
    w1cat = w1cat_ref[...]            # [wih1; whh1] pre-concatenated: (2H, 4H)
    b1v = b1_ref[...]

    def gates(g):
        return (jax.nn.sigmoid(g[:, 0:H]), jax.nn.sigmoid(g[:, H:2 * H]),
                jnp.tanh(g[:, 2 * H:3 * H]), jax.nn.sigmoid(g[:, 3 * H:4 * H]))

    def step(t, carry):
        h0, c0, h1, c1 = carry
        g0 = xproj_ref[t] + jnp.dot(h0.astype(bf16), whh0,
                                    preferred_element_type=f32)
        i0, f0, gc0, o0 = gates(g0)
        c0 = f0 * c0 + i0 * gc0
        h0 = o0 * jnp.tanh(c0)
        hcat = jnp.concatenate([h0, h1], axis=-1).astype(bf16)       # (b_tile, 2H)
        g1 = jnp.dot(hcat, w1cat, preferred_element_type=f32) + b1v
        i1, f1, gc1, o1 = gates(g1)
        c1 = f1 * c1 + i1 * gc1
        h1 = o1 * jnp.tanh(c1)
        return h0, c0, h1, c1

    zero = jnp.zeros((b_tile, H), f32)
    _, _, h1, _ = jax.lax.fori_loop(0, L1, step, (zero, zero, zero, zero),
                                    unroll=True)

    # ---- fc head on the last layer-1 hidden state; lane-dense (128-wide) out.
    hfc = jnp.maximum(
        jnp.dot(h1.astype(bf16), f1w_ref[...],
                preferred_element_type=f32) + f1b_ref[...], 0.0)
    out_ref[...] = (jnp.dot(hfc.astype(bf16), f2w_ref[...],
                            preferred_element_type=f32) + f2b_ref[...])


# --------------------------------- glue ------------------------------------

def _conv1_patches(x):
    """Tiny host-side stride-2 patch gather for the 1-channel conv1 input."""
    B, L = x.shape
    xp = jnp.pad(x, ((0, 0), (CONV1_PAD, CONV1_PAD)))
    L1 = (L + 2 * CONV1_PAD - CONV1_K) // CONV1_STRIDE + 1
    idx = jnp.arange(L1)[:, None] * CONV1_STRIDE + jnp.arange(CONV1_K)[None, :]
    patches = xp[:, idx]                                    # (B, L1, 7)
    patches = jnp.pad(patches, ((0, 0), (0, 0), (0, 1)))    # pad K 7 -> 8
    return jnp.transpose(patches, (1, 0, 2)), L1            # (L1, B, 8) time-major


def init_params(key, num_classes, num_layers=3):
    ks = tuple(2 * i + 3 for i in range(num_layers))        # 3, 5, 7, ...
    max_pad = (max(ks) - 1) // 2
    keys = iter(jax.random.split(key, 64))
    bf = jnp.bfloat16

    def u(shape, fan_in):
        bound = 1.0 / math.sqrt(fan_in)
        return jax.random.uniform(next(keys), shape, jnp.float32, -bound, bound)

    # conv1: Conv1d(1, 64, k=7, s=2, p=3); weight as (K, Cout), K padded 7 -> 8.
    conv1_w = jnp.pad(u((CONV1_K, 64), CONV1_K), ((0, 1), (0, 0)))
    conv1_b = u((1, 64), CONV1_K)

    # pyramid: Conv1d(64->128, k in ks), PyTorch-style per-branch init
    # (bound 1/sqrt(64*k)); branches with the same time offset summed into one
    # effective k = 2*max_pad+1 weight, offset-major, per-tap (Cin, Cout) layout
    # (i.e. transpose of PyTorch's (Cout, Cin, k) when porting checkpoints).
    k_eff = 2 * max_pad + 1
    pyr_w = jnp.zeros((k_eff, 64, 128), jnp.float32)
    pyr_b = jnp.zeros((1, 128), jnp.float32)
    for k in ks:
        p = (k - 1) // 2
        pyr_w = pyr_w.at[max_pad - p:max_pad - p + k].add(u((k, 64, 128), 64 * k))
        pyr_b = pyr_b + u((1, 128), 64 * k)
    pyr_w = pyr_w.reshape(k_eff * 64, 128)

    # LSTM(64 -> 128, 2 layers); weights pre-transposed, biases b_ih + b_hh,
    # gate order (i, f, g, o) matching PyTorch.
    H = H_LSTM
    wih0 = u((64, 4 * H), H)
    whh0 = u((H, 4 * H), H)
    b0 = u((1, 4 * H), H) + u((1, 4 * H), H)
    wih1 = u((H, 4 * H), H)
    whh1 = u((H, 4 * H), H)
    b1 = u((1, 4 * H), H) + u((1, 4 * H), H)

    # fc head: Linear(128, 256) -> ReLU -> Linear(256, num_classes); fc2 output
    # padded to a lane-dense multiple of 128.
    cpad = ((num_classes + 127) // 128) * 128
    fc2_w = jnp.zeros((256, cpad), jnp.float32).at[:, :num_classes].set(
        u((256, num_classes), 256))
    fc2_b = jnp.zeros((1, cpad), jnp.float32).at[:, :num_classes].set(
        u((1, num_classes), 256))

    params = {
        "conv1_w": conv1_w.astype(bf), "conv1_b": conv1_b,
        "pyr_w": pyr_w.astype(bf), "pyr_b": pyr_b,
        "conn_w": u((128, 64), 128).astype(bf), "conn_b": u((1, 64), 128),
        "wih0": wih0.astype(bf), "whh0": whh0.astype(bf), "b0": b0,
        "w1cat": jnp.concatenate([wih1, whh1], axis=0).astype(bf), "b1": b1,
        "fc1_w": u((128, 256), 128).astype(bf), "fc1_b": u((1, 256), 128),
        "fc2_w": fc2_w.astype(bf), "fc2_b": fc2_b,
    }
    return params, ks


_WEIGHT_ORDER = ("conv1_w", "conv1_b", "pyr_w", "pyr_b", "conn_w", "conn_b",
                 "wih0", "whh0", "b0", "w1cat", "b1",
                 "fc1_w", "fc1_b", "fc2_w", "fc2_b")


def pyramid_conv_forward(x, params, *, ks, num_classes, b_tile=8):
    """x: (B, input_dim) float32 -> logits (B, num_classes)."""
    assert b_tile % 8 == 0, "b_tile must be a multiple of 8 (sublane tiling)"
    B = x.shape[0]
    max_pad = (max(ks) - 1) // 2
    patches, L1 = _conv1_patches(x)                          # (L1, B, 8)

    b_pad = ((B + b_tile - 1) // b_tile) * b_tile
    if b_pad != B:
        patches = jnp.pad(patches, ((0, 0), (0, b_pad - B), (0, 0)))
    n_tiles = b_pad // b_tile

    weights = [params[n] for n in _WEIGHT_ORDER]
    cpad = params["fc2_w"].shape[1]
    kernel = functools.partial(_fused_kernel, L1=L1, b_tile=b_tile,
                               max_pad=max_pad)

    def _resident(a):
        # same block index every grid step -> fetched once, VMEM-resident.
        return pl.BlockSpec(a.shape, lambda i: (0,) * a.ndim)

    out = pl.pallas_call(
        kernel,
        out_shape=jax.ShapeDtypeStruct((b_pad, cpad), jnp.float32),
        grid=(n_tiles,),
        in_specs=[pl.BlockSpec((L1, b_tile, patches.shape[-1]),
                               lambda i: (0, i, 0))]
                 + [_resident(w) for w in weights],
        out_specs=pl.BlockSpec((b_tile, cpad), lambda i: (i, 0)),
        scratch_shapes=[pltpu.VMEM((L1, b_tile, 4 * H_LSTM), jnp.float32)],
        compiler_params=pltpu.CompilerParams(
            dimension_semantics=("parallel",),   # shards tiles over v7x's 2 TCs
            vmem_limit_bytes=32 * 1024 * 1024),
    )(patches, *weights)
    return out[:B, :num_classes]


# --------------------------- pure-JAX reference -----------------------------

def _reference_forward(x, params, *, ks, num_classes):
    """f32 reference using the same stored weights (upcast)."""
    f32 = jnp.float32
    g = lambda n: params[n].astype(f32)
    patches, L1 = _conv1_patches(x)                          # (L1, B, 8)
    max_pad = (max(ks) - 1) // 2
    H = H_LSTM

    y1 = jnp.einsum("lbk,kc->lbc", patches, g("conv1_w")) + g("conv1_b")
    w = g("pyr_w").reshape(2 * max_pad + 1, 64, 128)
    y1p = jnp.pad(y1, ((max_pad, max_pad), (0, 0), (0, 0)))
    acc = sum(jnp.einsum("lbc,cd->lbd", y1p[j:j + L1], w[j])
              for j in range(2 * max_pad + 1))
    z = jax.nn.relu(acc + g("pyr_b"))
    y2 = jnp.einsum("lbd,de->lbe", z, g("conn_w")) + g("conn_b")
    xproj = jnp.einsum("lbe,eg->lbg", y2, g("wih0")) + g("b0")
    whh0, w1cat, b1 = g("whh0"), g("w1cat"), g("b1")

    def gates(a):
        return (jax.nn.sigmoid(a[:, :H]), jax.nn.sigmoid(a[:, H:2 * H]),
                jnp.tanh(a[:, 2 * H:3 * H]), jax.nn.sigmoid(a[:, 3 * H:]))

    B = x.shape[0]
    h0 = c0 = h1 = c1 = jnp.zeros((B, H), f32)
    for t in range(L1):
        gg0 = xproj[t] + h0 @ whh0
        i0, f0, gc0, o0 = gates(gg0)
        c0 = f0 * c0 + i0 * gc0
        h0 = o0 * jnp.tanh(c0)
        gg1 = jnp.concatenate([h0, h1], axis=-1) @ w1cat + b1
        i1, f1, gc1, o1 = gates(gg1)
        c1 = f1 * c1 + i1 * gc1
        h1 = o1 * jnp.tanh(c1)
    hf = jax.nn.relu(h1 @ g("fc1_w") + g("fc1_b"))
    return (hf @ g("fc2_w") + g("fc2_b"))[:, :num_classes]


if __name__ == "__main__":
    # 16 batch rows -> 2 grid steps of b_tile=8 (>= 2 steps keeps both v7x TCs busy).
    B, input_dim, num_classes = 16, 16, 5
    key = jax.random.PRNGKey(0)
    pkey, xkey = jax.random.split(key)
    params, ks = init_params(pkey, num_classes, num_layers=3)
    x = jax.random.normal(xkey, (B, input_dim), jnp.float32)

    fwd = jax.jit(functools.partial(pyramid_conv_forward, ks=ks,
                                    num_classes=num_classes, b_tile=8))
    out = jax.block_until_ready(fwd(x, params))
    assert out.shape == (B, num_classes), out.shape
    assert bool(jnp.all(jnp.isfinite(out)))

    ref = _reference_forward(x, params, ks=ks, num_classes=num_classes)
    err = float(jnp.max(jnp.abs(out - ref)))
    assert err < 5e-2, f"kernel/reference mismatch: max abs err {err}"
    print("KERNEL_OK")
</pallas_src>

<mosaic_0001>
module attributes {stable_mosaic.version = 11 : i64} {
  func.func @_fused_kernel(%arg0: i32, %arg1: memref<8x8x8xf32, #tpu.memory_space<vmem>>, %arg2: memref<8x64xbf16, #tpu.memory_space<vmem>>, %arg3: memref<1x64xf32, #tpu.memory_space<vmem>>, %arg4: memref<448x128xbf16, #tpu.memory_space<vmem>>, %arg5: memref<1x128xf32, #tpu.memory_space<vmem>>, %arg6: memref<128x64xbf16, #tpu.memory_space<vmem>>, %arg7: memref<1x64xf32, #tpu.memory_space<vmem>>, %arg8: memref<64x512xbf16, #tpu.memory_space<vmem>>, %arg9: memref<128x512xbf16, #tpu.memory_space<vmem>>, %arg10: memref<1x512xf32, #tpu.memory_space<vmem>>, %arg11: memref<256x512xbf16, #tpu.memory_space<vmem>>, %arg12: memref<1x512xf32, #tpu.memory_space<vmem>>, %arg13: memref<128x256xbf16, #tpu.memory_space<vmem>>, %arg14: memref<1x256xf32, #tpu.memory_space<vmem>>, %arg15: memref<256x128xbf16, #tpu.memory_space<vmem>>, %arg16: memref<1x128xf32, #tpu.memory_space<vmem>>, %arg17: memref<8x128xf32, #tpu.memory_space<vmem>>, %arg18: memref<8x8x512xf32, #tpu.memory_space<vmem>>) attributes {dimension_semantics = [#tpu.dimension_semantics<parallel>], iteration_bounds = array<i64: 2>, scalar_prefetch = 0 : i64, scratch_operands = 1 : i64, tpu.core_type = #tpu.core_type<tc>, window_params = [{transform_indices = @transform_0, window_bounds = array<i64: 8, 8, 8>}, {pipeline_mode = #tpu.pipeline_mode<synchronous>, transform_indices = @transform_1, window_bounds = array<i64: 8, 64>}, {pipeline_mode = #tpu.pipeline_mode<synchronous>, transform_indices = @transform_2, window_bounds = array<i64: 1, 64>}, {pipeline_mode = #tpu.pipeline_mode<synchronous>, transform_indices = @transform_3, window_bounds = array<i64: 448, 128>}, {pipeline_mode = #tpu.pipeline_mode<synchronous>, transform_indices = @transform_4, window_bounds = array<i64: 1, 128>}, {pipeline_mode = #tpu.pipeline_mode<synchronous>, transform_indices = @transform_5, window_bounds = array<i64: 128, 64>}, {pipeline_mode = #tpu.pipeline_mode<synchronous>, transform_indices = @transform_6, window_bounds = array<i64: 1, 64>}, {pipeline_mode = #tpu.pipeline_mode<synchronous>, transform_indices = @transform_7, window_bounds = array<i64: 64, 512>}, {pipeline_mode = #tpu.pipeline_mode<synchronous>, transform_indices = @transform_8, window_bounds = array<i64: 128, 512>}, {pipeline_mode = #tpu.pipeline_mode<synchronous>, transform_indices = @transform_9, window_bounds = array<i64: 1, 512>}, {pipeline_mode = #tpu.pipeline_mode<synchronous>, transform_indices = @transform_10, window_bounds = array<i64: 256, 512>}, {pipeline_mode = #tpu.pipeline_mode<synchronous>, transform_indices = @transform_11, window_bounds = array<i64: 1, 512>}, {pipeline_mode = #tpu.pipeline_mode<synchronous>, transform_indices = @transform_12, window_bounds = array<i64: 128, 256>}, {pipeline_mode = #tpu.pipeline_mode<synchronous>, transform_indices = @transform_13, window_bounds = array<i64: 1, 256>}, {pipeline_mode = #tpu.pipeline_mode<synchronous>, transform_indices = @transform_14, window_bounds = array<i64: 256, 128>}, {pipeline_mode = #tpu.pipeline_mode<synchronous>, transform_indices = @transform_15, window_bounds = array<i64: 1, 128>}, {transform_indices = @transform_16, window_bounds = array<i64: 8, 128>}]} {
    %c0 = arith.constant 0 : index
    %c0_0 = arith.constant 0 : index
    %c0_1 = arith.constant 0 : index
    %0 = vector.load %arg1[%c0, %c0_0, %c0_1] : memref<8x8x8xf32, #tpu.memory_space<vmem>>, vector<8x8x8xf32>
    %1 = vector.shape_cast %0 : vector<8x8x8xf32> to vector<64x8xf32>
    %2 = arith.truncf %1 : vector<64x8xf32> to vector<64x8xbf16>
    %c0_2 = arith.constant 0 : index
    %c0_3 = arith.constant 0 : index
    %3 = vector.load %arg2[%c0_2, %c0_3] : memref<8x64xbf16, #tpu.memory_space<vmem>>, vector<8x64xbf16>
    %cst = arith.constant dense<0.000000e+00> : vector<64x64xf32>
    %4 = tpu.matmul %2, %3, %cst {dimension_numbers = #tpu.dot_dimension_numbers<[1], [0], [0], [1], [0, 0, 1, 1], [], []>} : vector<64x8xbf16>, vector<8x64xbf16>, vector<64x64xf32> -> vector<64x64xf32>
    %c0_4 = arith.constant 0 : index
    %c0_5 = arith.constant 0 : index
    %5 = vector.load %arg3[%c0_4, %c0_5] : memref<1x64xf32, #tpu.memory_space<vmem>>, vector<1x64xf32>
    %6 = vector.broadcast %5 : vector<1x64xf32> to vector<64x64xf32>
    %7 = arith.addf %4, %6 : vector<64x64xf32>
    %8 = vector.shape_cast %7 : vector<64x64xf32> to vector<8x8x64xf32>
    %cst_6 = arith.constant 0.000000e+00 : f32
    %9 = vector.broadcast %cst_6 : f32 to vector<3x8x64xf32>
    %10 = vector.extract_strided_slice %8 {offsets = [0, 0, 0], sizes = [5, 8, 64], strides = [1, 1, 1]} : vector<8x8x64xf32> to vector<5x8x64xf32>
    %11 = tpu.concatenate %9, %10 in 0 : vector<3x8x64xf32>, vector<5x8x64xf32> -> vector<8x8x64xf32>
    %12 = vector.extract_strided_slice %9 {offsets = [0, 0, 0], sizes = [2, 8, 64], strides = [1, 1, 1]} : vector<3x8x64xf32> to vector<2x8x64xf32>
    %13 = vector.extract_strided_slice %8 {offsets = [0, 0, 0], sizes = [6, 8, 64], strides = [1, 1, 1]} : vector<8x8x64xf32> to vector<6x8x64xf32>
    %14 = tpu.concatenate %12, %13 in 0 : vector<2x8x64xf32>, vector<6x8x64xf32> -> vector<8x8x64xf32>
    %15 = vector.extract_strided_slice %9 {offsets = [0, 0, 0], sizes = [1, 8, 64], strides = [1, 1, 1]} : vector<3x8x64xf32> to vector<1x8x64xf32>
    %16 = vector.extract_strided_slice %8 {offsets = [0, 0, 0], sizes = [7, 8, 64], strides = [1, 1, 1]} : vector<8x8x64xf32> to vector<7x8x64xf32>
    %17 = tpu.concatenate %15, %16 in 0 : vector<1x8x64xf32>, vector<7x8x64xf32> -> vector<8x8x64xf32>
    %18 = vector.extract_strided_slice %8 {offsets = [1, 0, 0], sizes = [7, 8, 64], strides = [1, 1, 1]} : vector<8x8x64xf32> to vector<7x8x64xf32>
    %19 = vector.extract_strided_slice %9 {offsets = [0, 0, 0], sizes = [1, 8, 64], strides = [1, 1, 1]} : vector<3x8x64xf32> to vector<1x8x64xf32>
    %20 = tpu.concatenate %18, %19 in 0 : vector<7x8x64xf32>, vector<1x8x64xf32> -> vector<8x8x64xf32>
    %21 = vector.extract_strided_slice %8 {offsets = [2, 0, 0], sizes = [6, 8, 64], strides = [1, 1, 1]} : vector<8x8x64xf32> to vector<6x8x64xf32>
    %22 = vector.extract_strided_slice %9 {offsets = [0, 0, 0], sizes = [2, 8, 64], strides = [1, 1, 1]} : vector<3x8x64xf32> to vector<2x8x64xf32>
    %23 = tpu.concatenate %21, %22 in 0 : vector<6x8x64xf32>, vector<2x8x64xf32> -> vector<8x8x64xf32>
    %24 = vector.extract_strided_slice %8 {offsets = [3, 0, 0], sizes = [5, 8, 64], strides = [1, 1, 1]} : vector<8x8x64xf32> to vector<5x8x64xf32>
    %25 = tpu.concatenate %24, %9 in 0 : vector<5x8x64xf32>, vector<3x8x64xf32> -> vector<8x8x64xf32>
    %26 = tpu.concatenate %11, %14, %17, %8, %20, %23, %25 in 2 : vector<8x8x64xf32>, vector<8x8x64xf32>, vector<8x8x64xf32>, vector<8x8x64xf32>, vector<8x8x64xf32>, vector<8x8x64xf32>, vector<8x8x64xf32> -> vector<8x8x448xf32>
    %27 = vector.shape_cast %26 : vector<8x8x448xf32> to vector<64x448xf32>
    %28 = arith.truncf %27 : vector<64x448xf32> to vector<64x448xbf16>
    %c0_7 = arith.constant 0 : index
    %c0_8 = arith.constant 0 : index
    %29 = vector.load %arg4[%c0_7, %c0_8] : memref<448x128xbf16, #tpu.memory_space<vmem>>, vector<448x128xbf16>
    %cst_9 = arith.constant dense<0.000000e+00> : vector<64x128xf32>
    %30 = tpu.matmul %28, %29, %cst_9 {dimension_numbers = #tpu.dot_dimension_numbers<[1], [0], [0], [1], [0, 0, 1, 1], [], []>} : vector<64x448xbf16>, vector<448x128xbf16>, vector<64x128xf32> -> vector<64x128xf32>
    %c0_10 = arith.constant 0 : index
    %c0_11 = arith.constant 0 : index
    %31 = vector.load %arg5[%c0_10, %c0_11] : memref<1x128xf32, #tpu.memory_space<vmem>>, vector<1x128xf32>
    %32 = vector.broadcast %31 : vector<1x128xf32> to vector<64x128xf32>
    %33 = arith.addf %30, %32 : vector<64x128xf32>
    %cst_12 = arith.constant 0.000000e+00 : f32
    %34 = vector.broadcast %cst_12 : f32 to vector<64x128xf32>
    %35 = arith.maximumf %33, %34 : vector<64x128xf32>
    %36 = arith.truncf %35 : vector<64x128xf32> to vector<64x128xbf16>
    %c0_13 = arith.constant 0 : index
    %c0_14 = arith.constant 0 : index
    %37 = vector.load %arg6[%c0_13, %c0_14] : memref<128x64xbf16, #tpu.memory_space<vmem>>, vector<128x64xbf16>
    %cst_15 = arith.constant dense<0.000000e+00> : vector<64x64xf32>
    %38 = tpu.matmul %36, %37, %cst_15 {dimension_numbers = #tpu.dot_dimension_numbers<[1], [0], [0], [1], [0, 0, 1, 1], [], []>} : vector<64x128xbf16>, vector<128x64xbf16>, vector<64x64xf32> -> vector<64x64xf32>
    %c0_16 = arith.constant 0 : index
    %c0_17 = arith.constant 0 : index
    %39 = vector.load %arg7[%c0_16, %c0_17] : memref<1x64xf32, #tpu.memory_space<vmem>>, vector<1x64xf32>
    %40 = vector.broadcast %39 : vector<1x64xf32> to vector<64x64xf32>
    %41 = arith.addf %38, %40 : vector<64x64xf32>
    %42 = arith.truncf %41 : vector<64x64xf32> to vector<64x64xbf16>
    %c0_18 = arith.constant 0 : index
    %c0_19 = arith.constant 0 : index
    %43 = vector.load %arg8[%c0_18, %c0_19] : memref<64x512xbf16, #tpu.memory_space<vmem>>, vector<64x512xbf16>
    %cst_20 = arith.constant dense<0.000000e+00> : vector<64x512xf32>
    %44 = tpu.matmul %42, %43, %cst_20 {dimension_numbers = #tpu.dot_dimension_numbers<[1], [0], [0], [1], [0, 0, 1, 1], [], []>} : vector<64x64xbf16>, vector<64x512xbf16>, vector<64x512xf32> -> vector<64x512xf32>
    %c0_21 = arith.constant 0 : index
    %c0_22 = arith.constant 0 : index
    %45 = vector.load %arg10[%c0_21, %c0_22] : memref<1x512xf32, #tpu.memory_space<vmem>>, vector<1x512xf32>
    %46 = vector.broadcast %45 : vector<1x512xf32> to vector<64x512xf32>
    %47 = arith.addf %44, %46 : vector<64x512xf32>
    %48 = vector.shape_cast %47 : vector<64x512xf32> to vector<8x8x512xf32>
    %c0_23 = arith.constant 0 : index
    %c0_24 = arith.constant 0 : index
    %c0_25 = arith.constant 0 : index
    %49 = vector.load %arg18[%c0_23, %c0_24, %c0_25] : memref<8x8x512xf32, #tpu.memory_space<vmem>>, vector<8x8x512xf32>
    tpu.vector_store %arg18[%c0_23, %c0_24, %c0_25], %48 {strides = array<i32>} : memref<8x8x512xf32, #tpu.memory_space<vmem>>, vector<8x8x512xf32>,
    %c0_26 = arith.constant 0 : index
    %c0_27 = arith.constant 0 : index
    %50 = vector.load %arg9[%c0_26, %c0_27] : memref<128x512xbf16, #tpu.memory_space<vmem>>, vector<128x512xbf16>
    %c0_28 = arith.constant 0 : index
    %c0_29 = arith.constant 0 : index
    %51 = vector.load %arg11[%c0_28, %c0_29] : memref<256x512xbf16, #tpu.memory_space<vmem>>, vector<256x512xbf16>
    %c0_30 = arith.constant 0 : index
    %c0_31 = arith.constant 0 : index
    %52 = vector.load %arg12[%c0_30, %c0_31] : memref<1x512xf32, #tpu.memory_space<vmem>>, vector<1x512xf32>
    %cst_32 = arith.constant 0.000000e+00 : f32
    %53 = vector.broadcast %cst_32 : f32 to vector<8x128xf32>
    %c0_i32 = arith.constant 0 : i32
    %54 = arith.index_cast %c0_i32 : i32 to index
    %c0_33 = arith.constant 0 : index
    %c0_34 = arith.constant 0 : index
    %55 = vector.load %arg18[%54, %c0_33, %c0_34] : memref<8x8x512xf32, #tpu.memory_space<vmem>>, vector<1x8x512xf32>
    %56 = vector.shape_cast %55 : vector<1x8x512xf32> to vector<8x512xf32>
    %57 = arith.truncf %53 : vector<8x128xf32> to vector<8x128xbf16>
    %cst_35 = arith.constant dense<0.000000e+00> : vector<8x512xf32>
    %58 = tpu.matmul %57, %50, %cst_35 {dimension_numbers = #tpu.dot_dimension_numbers<[1], [0], [0], [1], [0, 0, 1, 1], [], []>} : vector<8x128xbf16>, vector<128x512xbf16>, vector<8x512xf32> -> vector<8x512xf32>
    %59 = arith.addf %56, %58 : vector<8x512xf32>
    %60 = vector.extract_strided_slice %59 {offsets = [0, 0], sizes = [8, 128], strides = [1, 1]} : vector<8x512xf32> to vector<8x128xf32>
    %61 = arith.negf %60 : vector<8x128xf32>
    %62 = math.exp %61 : vector<8x128xf32>
    %cst_36 = arith.constant 1.000000e+00 : f32
    %63 = vector.broadcast %cst_36 : f32 to vector<8x128xf32>
    %64 = arith.addf %63, %62 : vector<8x128xf32>
    %65 = arith.divf %63, %64 : vector<8x128xf32>
    %66 = vector.extract_strided_slice %59 {offsets = [0, 128], sizes = [8, 128], strides = [1, 1]} : vector<8x512xf32> to vector<8x128xf32>
    %67 = arith.negf %66 : vector<8x128xf32>
    %68 = math.exp %67 : vector<8x128xf32>
    %cst_37 = arith.constant 1.000000e+00 : f32
    %69 = vector.broadcast %cst_37 : f32 to vector<8x128xf32>
    %70 = arith.addf %69, %68 : vector<8x128xf32>
    %71 = arith.divf %69, %70 : vector<8x128xf32>
    %72 = vector.extract_strided_slice %59 {offsets = [0, 256], sizes = [8, 128], strides = [1, 1]} : vector<8x512xf32> to vector<8x128xf32>
    %73 = math.tanh %72 : vector<8x128xf32>
    %74 = vector.extract_strided_slice %59 {offsets = [0, 384], sizes = [8, 128], strides = [1, 1]} : vector<8x512xf32> to vector<8x128xf32>
    %75 = arith.negf %74 : vector<8x128xf32>
    %76 = math.exp %75 : vector<8x128xf32>
    %cst_38 = arith.constant 1.000000e+00 : f32
    %77 = vector.broadcast %cst_38 : f32 to vector<8x128xf32>
    %78 = arith.addf %77, %76 : vector<8x128xf32>
    %79 = arith.divf %77, %78 : vector<8x128xf32>
    %80 = arith.mulf %71, %53 : vector<8x128xf32>
    %81 = arith.mulf %65, %73 : vector<8x128xf32>
    %82 = arith.addf %80, %81 : vector<8x128xf32>
    %83 = math.tanh %82 : vector<8x128xf32>
    %84 = arith.mulf %79, %83 : vector<8x128xf32>
    %85 = tpu.concatenate %84, %53 in 1 : vector<8x128xf32>, vector<8x128xf32> -> vector<8x256xf32>
    %86 = arith.truncf %85 : vector<8x256xf32> to vector<8x256xbf16>
    %cst_39 = arith.constant dense<0.000000e+00> : vector<8x512xf32>
    %87 = tpu.matmul %86, %51, %cst_39 {dimension_numbers = #tpu.dot_dimension_numbers<[1], [0], [0], [1], [0, 0, 1, 1], [], []>} : vector<8x256xbf16>, vector<256x512xbf16>, vector<8x512xf32> -> vector<8x512xf32>
    %88 = vector.broadcast %52 : vector<1x512xf32> to vector<8x512xf32>
    %89 = arith.addf %87, %88 : vector<8x512xf32>
    %90 = vector.extract_strided_slice %89 {offsets = [0, 0], sizes = [8, 128], strides = [1, 1]} : vector<8x512xf32> to vector<8x128xf32>
    %91 = arith.negf %90 : vector<8x128xf32>
    %92 = math.exp %91 : vector<8x128xf32>
    %cst_40 = arith.constant 1.000000e+00 : f32
    %93 = vector.broadcast %cst_40 : f32 to vector<8x128xf32>
    %94 = arith.addf %93, %92 : vector<8x128xf32>
    %95 = arith.divf %93, %94 : vector<8x128xf32>
    %96 = vector.extract_strided_slice %89 {offsets = [0, 128], sizes = [8, 128], strides = [1, 1]} : vector<8x512xf32> to vector<8x128xf32>
    %97 = arith.negf %96 : vector<8x128xf32>
    %98 = math.exp %97 : vector<8x128xf32>
    %cst_41 = arith.constant 1.000000e+00 : f32
    %99 = vector.broadcast %cst_41 : f32 to vector<8x128xf32>
    %100 = arith.addf %99, %98 : vector<8x128xf32>
    %101 = arith.divf %99, %100 : vector<8x128xf32>
    %102 = vector.extract_strided_slice %89 {offsets = [0, 256], sizes = [8, 128], strides = [1, 1]} : vector<8x512xf32> to vector<8x128xf32>
    %103 = math.tanh %102 : vector<8x128xf32>
    %104 = vector.extract_strided_slice %89 {offsets = [0, 384], sizes = [8, 128], strides = [1, 1]} : vector<8x512xf32> to vector<8x128xf32>
    %105 = arith.negf %104 : vector<8x128xf32>
    %106 = math.exp %105 : vector<8x128xf32>
    %cst_42 = arith.constant 1.000000e+00 : f32
    %107 = vector.broadcast %cst_42 : f32 to vector<8x128xf32>
    %108 = arith.addf %107, %106 : vector<8x128xf32>
    %109 = arith.divf %107, %108 : vector<8x128xf32>
    %110 = arith.mulf %101, %53 : vector<8x128xf32>
    %111 = arith.mulf %95, %103 : vector<8x128xf32>
    %112 = arith.addf %110, %111 : vector<8x128xf32>
    %113 = math.tanh %112 : vector<8x128xf32>
    %114 = arith.mulf %109, %113 : vector<8x128xf32>
    %c1_i32 = arith.constant 1 : i32
    %115 = arith.index_cast %c1_i32 : i32 to index
    %c0_43 = arith.constant 0 : index
    %c0_44 = arith.constant 0 : index
    %116 = vector.load %arg18[%115, %c0_43, %c0_44] : memref<8x8x512xf32, #tpu.memory_space<vmem>>, vector<1x8x512xf32>
    %117 = vector.shape_cast %116 : vector<1x8x512xf32> to vector<8x512xf32>
    %118 = arith.truncf %84 : vector<8x128xf32> to vector<8x128xbf16>
    %cst_45 = arith.constant dense<0.000000e+00> : vector<8x512xf32>
    %119 = tpu.matmul %118, %50, %cst_45 {dimension_numbers = #tpu.dot_dimension_numbers<[1], [0], [0], [1], [0, 0, 1, 1], [], []>} : vector<8x128xbf16>, vector<128x512xbf16>, vector<8x512xf32> -> vector<8x512xf32>
    %120 = arith.addf %117, %119 : vector<8x512xf32>
    %121 = vector.extract_strided_slice %120 {offsets = [0, 0], sizes = [8, 128], strides = [1, 1]} : vector<8x512xf32> to vector<8x128xf32>
    %122 = arith.negf %121 : vector<8x128xf32>
    %123 = math.exp %122 : vector<8x128xf32>
    %cst_46 = arith.constant 1.000000e+00 : f32
    %124 = vector.broadcast %cst_46 : f32 to vector<8x128xf32>
    %125 = arith.addf %124, %123 : vector<8x128xf32>
    %126 = arith.divf %124, %125 : vector<8x128xf32>
    %127 = vector.extract_strided_slice %120 {offsets = [0, 128], sizes = [8, 128], strides = [1, 1]} : vector<8x512xf32> to vector<8x128xf32>
    %128 = arith.negf %127 : vector<8x128xf32>
    %129 = math.exp %128 : vector<8x128xf32>
    %cst_47 = arith.constant 1.000000e+00 : f32
    %130 = vector.broadcast %cst_47 : f32 to vector<8x128xf32>
    %131 = arith.addf %130, %129 : vector<8x128xf32>
    %132 = arith.divf %130, %131 : vector<8x128xf32>
    %133 = vector.extract_strided_slice %120 {offsets = [0, 256], sizes = [8, 128], strides = [1, 1]} : vector<8x512xf32> to vector<8x128xf32>
    %134 = math.tanh %133 : vector<8x128xf32>
    %135 = vector.extract_strided_slice %120 {offsets = [0, 384], sizes = [8, 128], strides = [1, 1]} : vector<8x512xf32> to vector<8x128xf32>
    %136 = arith.negf %135 : vector<8x128xf32>
    %137 = math.exp %136 : vector<8x128xf32>
    %cst_48 = arith.constant 1.000000e+00 : f32
    %138 = vector.broadcast %cst_48 : f32 to vector<8x128xf32>
    %139 = arith.addf %138, %137 : vector<8x128xf32>
    %140 = arith.divf %138, %139 : vector<8x128xf32>
    %141 = arith.mulf %132, %82 : vector<8x128xf32>
    %142 = arith.mulf %126, %134 : vector<8x128xf32>
    %143 = arith.addf %141, %142 : vector<8x128xf32>
    %144 = math.tanh %143 : vector<8x128xf32>
    %145 = arith.mulf %140, %144 : vector<8x128xf32>
    %146 = tpu.concatenate %145, %114 in 1 : vector<8x128xf32>, vector<8x128xf32> -> vector<8x256xf32>
    %147 = arith.truncf %146 : vector<8x256xf32> to vector<8x256xbf16>
    %cst_49 = arith.constant dense<0.000000e+00> : vector<8x512xf32>
    %148 = tpu.matmul %147, %51, %cst_49 {dimension_numbers = #tpu.dot_dimension_numbers<[1], [0], [0], [1], [0, 0, 1, 1], [], []>} : vector<8x256xbf16>, vector<256x512xbf16>, vector<8x512xf32> -> vector<8x512xf32>
    %149 = vector.broadcast %52 : vector<1x512xf32> to vector<8x512xf32>
    %150 = arith.addf %148, %149 : vector<8x512xf32>
    %151 = vector.extract_strided_slice %150 {offsets = [0, 0], sizes = [8, 128], strides = [1, 1]} : vector<8x512xf32> to vector<8x128xf32>
    %152 = arith.negf %151 : vector<8x128xf32>
    %153 = math.exp %152 : vector<8x128xf32>
    %cst_50 = arith.constant 1.000000e+00 : f32
    %154 = vector.broadcast %cst_50 : f32 to vector<8x128xf32>
    %155 = arith.addf %154, %153 : vector<8x128xf32>
    %156 = arith.divf %154, %155 : vector<8x128xf32>
    %157 = vector.extract_strided_slice %150 {offsets = [0, 128], sizes = [8, 128], strides = [1, 1]} : vector<8x512xf32> to vector<8x128xf32>
    %158 = arith.negf %157 : vector<8x128xf32>
    %159 = math.exp %158 : vector<8x128xf32>
    %cst_51 = arith.constant 1.000000e+00 : f32
    %160 = vector.broadcast %cst_51 : f32 to vector<8x128xf32>
    %161 = arith.addf %160, %159 : vector<8x128xf32>
    %162 = arith.divf %160, %161 : vector<8x128xf32>
    %163 = vector.extract_strided_slice %150 {offsets = [0, 256], sizes = [8, 128], strides = [1, 1]} : vector<8x512xf32> to vector<8x128xf32>
    %164 = math.tanh %163 : vector<8x128xf32>
    %165 = vector.extract_strided_slice %150 {offsets = [0, 384], sizes = [8, 128], strides = [1, 1]} : vector<8x512xf32> to vector<8x128xf32>
    %166 = arith.negf %165 : vector<8x128xf32>
    %167 = math.exp %166 : vector<8x128xf32>
    %cst_52 = arith.constant 1.000000e+00 : f32
    %168 = vector.broadcast %cst_52 : f32 to vector<8x128xf32>
    %169 = arith.addf %168, %167 : vector<8x128xf32>
    %170 = arith.divf %168, %169 : vector<8x128xf32>
    %171 = arith.mulf %162, %112 : vector<8x128xf32>
    %172 = arith.mulf %156, %164 : vector<8x128xf32>
    %173 = arith.addf %171, %172 : vector<8x128xf32>
    %174 = math.tanh %173 : vector<8x128xf32>
    %175 = arith.mulf %170, %174 : vector<8x128xf32>
    %c2_i32 = arith.constant 2 : i32
    %176 = arith.index_cast %c2_i32 : i32 to index
    %c0_53 = arith.constant 0 : index
    %c0_54 = arith.constant 0 : index
    %177 = vector.load %arg18[%176, %c0_53, %c0_54] : memref<8x8x512xf32, #tpu.memory_space<vmem>>, vector<1x8x512xf32>
    %178 = vector.shape_cast %177 : vector<1x8x512xf32> to vector<8x512xf32>
    %179 = arith.truncf %145 : vector<8x128xf32> to vector<8x128xbf16>
    %cst_55 = arith.constant dense<0.000000e+00> : vector<8x512xf32>
    %180 = tpu.matmul %179, %50, %cst_55 {dimension_numbers = #tpu.dot_dimension_numbers<[1], [0], [0], [1], [0, 0, 1, 1], [], []>} : vector<8x128xbf16>, vector<128x512xbf16>, vector<8x512xf32> -> vector<8x512xf32>
    %181 = arith.addf %178, %180 : vector<8x512xf32>
    %182 = vector.extract_strided_slice %181 {offsets = [0, 0], sizes = [8, 128], strides = [1, 1]} : vector<8x512xf32> to vector<8x128xf32>
    %183 = arith.negf %182 : vector<8x128xf32>
    %184 = math.exp %183 : vector<8x128xf32>
    %cst_56 = arith.constant 1.000000e+00 : f32
    %185 = vector.broadcast %cst_56 : f32 to vector<8x128xf32>
    %186 = arith.addf %185, %184 : vector<8x128xf32>
    %187 = arith.divf %185, %186 : vector<8x128xf32>
    %188 = vector.extract_strided_slice %181 {offsets = [0, 128], sizes = [8, 128], strides = [1, 1]} : vector<8x512xf32> to vector<8x128xf32>
    %189 = arith.negf %188 : vector<8x128xf32>
    %190 = math.exp %189 : vector<8x128xf32>
    %cst_57 = arith.constant 1.000000e+00 : f32
    %191 = vector.broadcast %cst_57 : f32 to vector<8x128xf32>
    %192 = arith.addf %191, %190 : vector<8x128xf32>
    %193 = arith.divf %191, %192 : vector<8x128xf32>
    %194 = vector.extract_strided_slice %181 {offsets = [0, 256], sizes = [8, 128], strides = [1, 1]} : vector<8x512xf32> to vector<8x128xf32>
    %195 = math.tanh %194 : vector<8x128xf32>
    %196 = vector.extract_strided_slice %181 {offsets = [0, 384], sizes = [8, 128], strides = [1, 1]} : vector<8x512xf32> to vector<8x128xf32>
    %197 = arith.negf %196 : vector<8x128xf32>
    %198 = math.exp %197 : vector<8x128xf32>
    %cst_58 = arith.constant 1.000000e+00 : f32
    %199 = vector.broadcast %cst_58 : f32 to vector<8x128xf32>
    %200 = arith.addf %199, %198 : vector<8x128xf32>
    %201 = arith.divf %199, %200 : vector<8x128xf32>
    %202 = arith.mulf %193, %143 : vector<8x128xf32>
    %203 = arith.mulf %187, %195 : vector<8x128xf32>
    %204 = arith.addf %202, %203 : vector<8x128xf32>
    %205 = math.tanh %204 : vector<8x128xf32>
    %206 = arith.mulf %201, %205 : vector<8x128xf32>
    %207 = tpu.concatenate %206, %175 in 1 : vector<8x128xf32>, vector<8x128xf32> -> vector<8x256xf32>
    %208 = arith.truncf %207 : vector<8x256xf32> to vector<8x256xbf16>
    %cst_59 = arith.constant dense<0.000000e+00> : vector<8x512xf32>
    %209 = tpu.matmul %208, %51, %cst_59 {dimension_numbers = #tpu.dot_dimension_numbers<[1], [0], [0], [1], [0, 0, 1, 1], [], []>} : vector<8x256xbf16>, vector<256x512xbf16>, vector<8x512xf32> -> vector<8x512xf32>
    %210 = vector.broadcast %52 : vector<1x512xf32> to vector<8x512xf32>
    %211 = arith.addf %209, %210 : vector<8x512xf32>
    %212 = vector.extract_strided_slice %211 {offsets = [0, 0], sizes = [8, 128], strides = [1, 1]} : vector<8x512xf32> to vector<8x128xf32>
    %213 = arith.negf %212 : vector<8x128xf32>
    %214 = math.exp %213 : vector<8x128xf32>
    %cst_60 = arith.constant 1.000000e+00 : f32
    %215 = vector.broadcast %cst_60 : f32 to vector<8x128xf32>
    %216 = arith.addf %215, %214 : vector<8x128xf32>
    %217 = arith.divf %215, %216 : vector<8x128xf32>
    %218 = vector.extract_strided_slice %211 {offsets = [0, 128], sizes = [8, 128], strides = [1, 1]} : vector<8x512xf32> to vector<8x128xf32>
    %219 = arith.negf %218 : vector<8x128xf32>
    %220 = math.exp %219 : vector<8x128xf32>
    %cst_61 = arith.constant 1.000000e+00 : f32
    %221 = vector.broadcast %cst_61 : f32 to vector<8x128xf32>
    %222 = arith.addf %221, %220 : vector<8x128xf32>
    %223 = arith.divf %221, %222 : vector<8x128xf32>
    %224 = vector.extract_strided_slice %211 {offsets = [0, 256], sizes = [8, 128], strides = [1, 1]} : vector<8x512xf32> to vector<8x128xf32>
    %225 = math.tanh %224 : vector<8x128xf32>
    %226 = vector.extract_strided_slice %211 {offsets = [0, 384], sizes = [8, 128], strides = [1, 1]} : vector<8x512xf32> to vector<8x128xf32>
    %227 = arith.negf %226 : vector<8x128xf32>
    %228 = math.exp %227 : vector<8x128xf32>
    %cst_62 = arith.constant 1.000000e+00 : f32
    %229 = vector.broadcast %cst_62 : f32 to vector<8x128xf32>
    %230 = arith.addf %229, %228 : vector<8x128xf32>
    %231 = arith.divf %229, %230 : vector<8x128xf32>
    %232 = arith.mulf %223, %173 : vector<8x128xf32>
    %233 = arith.mulf %217, %225 : vector<8x128xf32>
    %234 = arith.addf %232, %233 : vector<8x128xf32>
    %235 = math.tanh %234 : vector<8x128xf32>
    %236 = arith.mulf %231, %235 : vector<8x128xf32>
    %c3_i32 = arith.constant 3 : i32
    %237 = arith.index_cast %c3_i32 : i32 to index
    %c0_63 = arith.constant 0 : index
    %c0_64 = arith.constant 0 : index
    %238 = vector.load %arg18[%237, %c0_63, %c0_64] : memref<8x8x512xf32, #tpu.memory_space<vmem>>, vector<1x8x512xf32>
    %239 = vector.shape_cast %238 : vector<1x8x512xf32> to vector<8x512xf32>
    %240 = arith.truncf %206 : vector<8x128xf32> to vector<8x128xbf16>
    %cst_65 = arith.constant dense<0.000000e+00> : vector<8x512xf32>
    %241 = tpu.matmul %240, %50, %cst_65 {dimension_numbers = #tpu.dot_dimension_numbers<[1], [0], [0], [1], [0, 0, 1, 1], [], []>} : vector<8x128xbf16>, vector<128x512xbf16>, vector<8x512xf32> -> vector<8x512xf32>
    %242 = arith.addf %239, %241 : vector<8x512xf32>
    %243 = vector.extract_strided_slice %242 {offsets = [0, 0], sizes = [8, 128], strides = [1, 1]} : vector<8x512xf32> to vector<8x128xf32>
    %244 = arith.negf %243 : vector<8x128xf32>
    %245 = math.exp %244 : vector<8x128xf32>
    %cst_66 = arith.constant 1.000000e+00 : f32
    %246 = vector.broadcast %cst_66 : f32 to vector<8x128xf32>
    %247 = arith.addf %246, %245 : vector<8x128xf32>
    %248 = arith.divf %246, %247 : vector<8x128xf32>
    %249 = vector.extract_strided_slice %242 {offsets = [0, 128], sizes = [8, 128], strides = [1, 1]} : vector<8x512xf32> to vector<8x128xf32>
    %250 = arith.negf %249 : vector<8x128xf32>
    %251 = math.exp %250 : vector<8x128xf32>
    %cst_67 = arith.constant 1.000000e+00 : f32
    %252 = vector.broadcast %cst_67 : f32 to vector<8x128xf32>
    %253 = arith.addf %252, %251 : vector<8x128xf32>
    %254 = arith.divf %252, %253 : vector<8x128xf32>
    %255 = vector.extract_strided_slice %242 {offsets = [0, 256], sizes = [8, 128], strides = [1, 1]} : vector<8x512xf32> to vector<8x128xf32>
    %256 = math.tanh %255 : vector<8x128xf32>
    %257 = vector.extract_strided_slice %242 {offsets = [0, 384], sizes = [8, 128], strides = [1, 1]} : vector<8x512xf32> to vector<8x128xf32>
    %258 = arith.negf %257 : vector<8x128xf32>
    %259 = math.exp %258 : vector<8x128xf32>
    %cst_68 = arith.constant 1.000000e+00 : f32
    %260 = vector.broadcast %cst_68 : f32 to vector<8x128xf32>
    %261 = arith.addf %260, %259 : vector<8x128xf32>
    %262 = arith.divf %260, %261 : vector<8x128xf32>
    %263 = arith.mulf %254, %204 : vector<8x128xf32>
    %264 = arith.mulf %248, %256 : vector<8x128xf32>
    %265 = arith.addf %263, %264 : vector<8x128xf32>
    %266 = math.tanh %265 : vector<8x128xf32>
    %267 = arith.mulf %262, %266 : vector<8x128xf32>
    %268 = tpu.concatenate %267, %236 in 1 : vector<8x128xf32>, vector<8x128xf32> -> vector<8x256xf32>
    %269 = arith.truncf %268 : vector<8x256xf32> to vector<8x256xbf16>
    %cst_69 = arith.constant dense<0.000000e+00> : vector<8x512xf32>
    %270 = tpu.matmul %269, %51, %cst_69 {dimension_numbers = #tpu.dot_dimension_numbers<[1], [0], [0], [1], [0, 0, 1, 1], [], []>} : vector<8x256xbf16>, vector<256x512xbf16>, vector<8x512xf32> -> vector<8x512xf32>
    %271 = vector.broadcast %52 : vector<1x512xf32> to vector<8x512xf32>
    %272 = arith.addf %270, %271 : vector<8x512xf32>
    %273 = vector.extract_strided_slice %272 {offsets = [0, 0], sizes = [8, 128], strides = [1, 1]} : vector<8x512xf32> to vector<8x128xf32>
    %274 = arith.negf %273 : vector<8x128xf32>
    %275 = math.exp %274 : vector<8x128xf32>
    %cst_70 = arith.constant 1.000000e+00 : f32
    %276 = vector.broadcast %cst_70 : f32 to vector<8x128xf32>
    %277 = arith.addf %276, %275 : vector<8x128xf32>
    %278 = arith.divf %276, %277 : vector<8x128xf32>
    %279 = vector.extract_strided_slice %272 {offsets = [0, 128], sizes = [8, 128], strides = [1, 1]} : vector<8x512xf32> to vector<8x128xf32>
    %280 = arith.negf %279 : vector<8x128xf32>
    %281 = math.exp %280 : vector<8x128xf32>
    %cst_71 = arith.constant 1.000000e+00 : f32
    %282 = vector.broadcast %cst_71 : f32 to vector<8x128xf32>
    %283 = arith.addf %282, %281 : vector<8x128xf32>
    %284 = arith.divf %282, %283 : vector<8x128xf32>
    %285 = vector.extract_strided_slice %272 {offsets = [0, 256], sizes = [8, 128], strides = [1, 1]} : vector<8x512xf32> to vector<8x128xf32>
    %286 = math.tanh %285 : vector<8x128xf32>
    %287 = vector.extract_strided_slice %272 {offsets = [0, 384], sizes = [8, 128], strides = [1, 1]} : vector<8x512xf32> to vector<8x128xf32>
    %288 = arith.negf %287 : vector<8x128xf32>
    %289 = math.exp %288 : vector<8x128xf32>
    %cst_72 = arith.constant 1.000000e+00 : f32
    %290 = vector.broadcast %cst_72 : f32 to vector<8x128xf32>
    %291 = arith.addf %290, %289 : vector<8x128xf32>
    %292 = arith.divf %290, %291 : vector<8x128xf32>
    %293 = arith.mulf %284, %234 : vector<8x128xf32>
    %294 = arith.mulf %278, %286 : vector<8x128xf32>
    %295 = arith.addf %293, %294 : vector<8x128xf32>
    %296 = math.tanh %295 : vector<8x128xf32>
    %297 = arith.mulf %292, %296 : vector<8x128xf32>
    %c4_i32 = arith.constant 4 : i32
    %298 = arith.index_cast %c4_i32 : i32 to index
    %c0_73 = arith.constant 0 : index
    %c0_74 = arith.constant 0 : index
    %299 = vector.load %arg18[%298, %c0_73, %c0_74] : memref<8x8x512xf32, #tpu.memory_space<vmem>>, vector<1x8x512xf32>
    %300 = vector.shape_cast %299 : vector<1x8x512xf32> to vector<8x512xf32>
    %301 = arith.truncf %267 : vector<8x128xf32> to vector<8x128xbf16>
    %cst_75 = arith.constant dense<0.000000e+00> : vector<8x512xf32>
    %302 = tpu.matmul %301, %50, %cst_75 {dimension_numbers = #tpu.dot_dimension_numbers<[1], [0], [0], [1], [0, 0, 1, 1], [], []>} : vector<8x128xbf16>, vector<128x512xbf16>, vector<8x512xf32> -> vector<8x512xf32>
    %303 = arith.addf %300, %302 : vector<8x512xf32>
    %304 = vector.extract_strided_slice %303 {offsets = [0, 0], sizes = [8, 128], strides = [1, 1]} : vector<8x512xf32> to vector<8x128xf32>
    %305 = arith.negf %304 : vector<8x128xf32>
    %306 = math.exp %305 : vector<8x128xf32>
    %cst_76 = arith.constant 1.000000e+00 : f32
    %307 = vector.broadcast %cst_76 : f32 to vector<8x128xf32>
    %308 = arith.addf %307, %306 : vector<8x128xf32>
    %309 = arith.divf %307, %308 : vector<8x128xf32>
    %310 = vector.extract_strided_slice %303 {offsets = [0, 128], sizes = [8, 128], strides = [1, 1]} : vector<8x512xf32> to vector<8x128xf32>
    %311 = arith.negf %310 : vector<8x128xf32>
    %312 = math.exp %311 : vector<8x128xf32>
    %cst_77 = arith.constant 1.000000e+00 : f32
    %313 = vector.broadcast %cst_77 : f32 to vector<8x128xf32>
    %314 = arith.addf %313, %312 : vector<8x128xf32>
    %315 = arith.divf %313, %314 : vector<8x128xf32>
    %316 = vector.extract_strided_slice %303 {offsets = [0, 256], sizes = [8, 128], strides = [1, 1]} : vector<8x512xf32> to vector<8x128xf32>
    %317 = math.tanh %316 : vector<8x128xf32>
    %318 = vector.extract_strided_slice %303 {offsets = [0, 384], sizes = [8, 128], strides = [1, 1]} : vector<8x512xf32> to vector<8x128xf32>
    %319 = arith.negf %318 : vector<8x128xf32>
    %320 = math.exp %319 : vector<8x128xf32>
    %cst_78 = arith.constant 1.000000e+00 : f32
    %321 = vector.broadcast %cst_78 : f32 to vector<8x128xf32>
    %322 = arith.addf %321, %320 : vector<8x128xf32>
    %323 = arith.divf %321, %322 : vector<8x128xf32>
    %324 = arith.mulf %315, %265 : vector<8x128xf32>
    %325 = arith.mulf %309, %317 : vector<8x128xf32>
    %326 = arith.addf %324, %325 : vector<8x128xf32>
    %327 = math.tanh %326 : vector<8x128xf32>
    %328 = arith.mulf %323, %327 : vector<8x128xf32>
    %329 = tpu.concatenate %328, %297 in 1 : vector<8x128xf32>, vector<8x128xf32> -> vector<8x256xf32>
    %330 = arith.truncf %329 : vector<8x256xf32> to vector<8x256xbf16>
    %cst_79 = arith.constant dense<0.000000e+00> : vector<8x512xf32>
    %331 = tpu.matmul %330, %51, %cst_79 {dimension_numbers = #tpu.dot_dimension_numbers<[1], [0], [0], [1], [0, 0, 1, 1], [], []>} : vector<8x256xbf16>, vector<256x512xbf16>, vector<8x512xf32> -> vector<8x512xf32>
    %332 = vector.broadcast %52 : vector<1x512xf32> to vector<8x512xf32>
    %333 = arith.addf %331, %332 : vector<8x512xf32>
    %334 = vector.extract_strided_slice %333 {offsets = [0, 0], sizes = [8, 128], strides = [1, 1]} : vector<8x512xf32> to vector<8x128xf32>
    %335 = arith.negf %334 : vector<8x128xf32>
    %336 = math.exp %335 : vector<8x128xf32>
    %cst_80 = arith.constant 1.000000e+00 : f32
    %337 = vector.broadcast %cst_80 : f32 to vector<8x128xf32>
    %338 = arith.addf %337, %336 : vector<8x128xf32>
    %339 = arith.divf %337, %338 : vector<8x128xf32>
    %340 = vector.extract_strided_slice %333 {offsets = [0, 128], sizes = [8, 128], strides = [1, 1]} : vector<8x512xf32> to vector<8x128xf32>
    %341 = arith.negf %340 : vector<8x128xf32>
    %342 = math.exp %341 : vector<8x128xf32>
    %cst_81 = arith.constant 1.000000e+00 : f32
    %343 = vector.broadcast %cst_81 : f32 to vector<8x128xf32>
    %344 = arith.addf %343, %342 : vector<8x128xf32>
    %345 = arith.divf %343, %344 : vector<8x128xf32>
    %346 = vector.extract_strided_slice %333 {offsets = [0, 256], sizes = [8, 128], strides = [1, 1]} : vector<8x512xf32> to vector<8x128xf32>
    %347 = math.tanh %346 : vector<8x128xf32>
    %348 = vector.extract_strided_slice %333 {offsets = [0, 384], sizes = [8, 128], strides = [1, 1]} : vector<8x512xf32> to vector<8x128xf32>
    %349 = arith.negf %348 : vector<8x128xf32>
    %350 = math.exp %349 : vector<8x128xf32>
    %cst_82 = arith.constant 1.000000e+00 : f32
    %351 = vector.broadcast %cst_82 : f32 to vector<8x128xf32>
    %352 = arith.addf %351, %350 : vector<8x128xf32>
    %353 = arith.divf %351, %352 : vector<8x128xf32>
    %354 = arith.mulf %345, %295 : vector<8x128xf32>
    %355 = arith.mulf %339, %347 : vector<8x128xf32>
    %356 = arith.addf %354, %355 : vector<8x128xf32>
    %357 = math.tanh %356 : vector<8x128xf32>
    %358 = arith.mulf %353, %357 : vector<8x128xf32>
    %c5_i32 = arith.constant 5 : i32
    %359 = arith.index_cast %c5_i32 : i32 to index
    %c0_83 = arith.constant 0 : index
    %c0_84 = arith.constant 0 : index
    %360 = vector.load %arg18[%359, %c0_83, %c0_84] : memref<8x8x512xf32, #tpu.memory_space<vmem>>, vector<1x8x512xf32>
    %361 = vector.shape_cast %360 : vector<1x8x512xf32> to vector<8x512xf32>
    %362 = arith.truncf %328 : vector<8x128xf32> to vector<8x128xbf16>
    %cst_85 = arith.constant dense<0.000000e+00> : vector<8x512xf32>
    %363 = tpu.matmul %362, %50, %cst_85 {dimension_numbers = #tpu.dot_dimension_numbers<[1], [0], [0], [1], [0, 0, 1, 1], [], []>} : vector<8x128xbf16>, vector<128x512xbf16>, vector<8x512xf32> -> vector<8x512xf32>
    %364 = arith.addf %361, %363 : vector<8x512xf32>
    %365 = vector.extract_strided_slice %364 {offsets = [0, 0], sizes = [8, 128], strides = [1, 1]} : vector<8x512xf32> to vector<8x128xf32>
    %366 = arith.negf %365 : vector<8x128xf32>
    %367 = math.exp %366 : vector<8x128xf32>
    %cst_86 = arith.constant 1.000000e+00 : f32
    %368 = vector.broadcast %cst_86 : f32 to vector<8x128xf32>
    %369 = arith.addf %368, %367 : vector<8x128xf32>
    %370 = arith.divf %368, %369 : vector<8x128xf32>
    %371 = vector.extract_strided_slice %364 {offsets = [0, 128], sizes = [8, 128], strides = [1, 1]} : vector<8x512xf32> to vector<8x128xf32>
    %372 = arith.negf %371 : vector<8x128xf32>
    %373 = math.exp %372 : vector<8x128xf32>
    %cst_87 = arith.constant 1.000000e+00 : f32
    %374 = vector.broadcast %cst_87 : f32 to vector<8x128xf32>
    %375 = arith.addf %374, %373 : vector<8x128xf32>
    %376 = arith.divf %374, %375 : vector<8x128xf32>
    %377 = vector.extract_strided_slice %364 {offsets = [0, 256], sizes = [8, 128], strides = [1, 1]} : vector<8x512xf32> to vector<8x128xf32>
    %378 = math.tanh %377 : vector<8x128xf32>
    %379 = vector.extract_strided_slice %364 {offsets = [0, 384], sizes = [8, 128], strides = [1, 1]} : vector<8x512xf32> to vector<8x128xf32>
    %380 = arith.negf %379 : vector<8x128xf32>
    %381 = math.exp %380 : vector<8x128xf32>
    %cst_88 = arith.constant 1.000000e+00 : f32
    %382 = vector.broadcast %cst_88 : f32 to vector<8x128xf32>
    %383 = arith.addf %382, %381 : vector<8x128xf32>
    %384 = arith.divf %382, %383 : vector<8x128xf32>
    %385 = arith.mulf %376, %326 : vector<8x128xf32>
    %386 = arith.mulf %370, %378 : vector<8x128xf32>
    %387 = arith.addf %385, %386 : vector<8x128xf32>
    %388 = math.tanh %387 : vector<8x128xf32>
    %389 = arith.mulf %384, %388 : vector<8x128xf32>
    %390 = tpu.concatenate %389, %358 in 1 : vector<8x128xf32>, vector<8x128xf32> -> vector<8x256xf32>
    %391 = arith.truncf %390 : vector<8x256xf32> to vector<8x256xbf16>
    %cst_89 = arith.constant dense<0.000000e+00> : vector<8x512xf32>
    %392 = tpu.matmul %391, %51, %cst_89 {dimension_numbers = #tpu.dot_dimension_numbers<[1], [0], [0], [1], [0, 0, 1, 1], [], []>} : vector<8x256xbf16>, vector<256x512xbf16>, vector<8x512xf32> -> vector<8x512xf32>
    %393 = vector.broadcast %52 : vector<1x512xf32> to vector<8x512xf32>
    %394 = arith.addf %392, %393 : vector<8x512xf32>
    %395 = vector.extract_strided_slice %394 {offsets = [0, 0], sizes = [8, 128], strides = [1, 1]} : vector<8x512xf32> to vector<8x128xf32>
    %396 = arith.negf %395 : vector<8x128xf32>
    %397 = math.exp %396 : vector<8x128xf32>
    %cst_90 = arith.constant 1.000000e+00 : f32
    %398 = vector.broadcast %cst_90 : f32 to vector<8x128xf32>
    %399 = arith.addf %398, %397 : vector<8x128xf32>
    %400 = arith.divf %398, %399 : vector<8x128xf32>
    %401 = vector.extract_strided_slice %394 {offsets = [0, 128], sizes = [8, 128], strides = [1, 1]} : vector<8x512xf32> to vector<8x128xf32>
    %402 = arith.negf %401 : vector<8x128xf32>
    %403 = math.exp %402 : vector<8x128xf32>
    %cst_91 = arith.constant 1.000000e+00 : f32
    %404 = vector.broadcast %cst_91 : f32 to vector<8x128xf32>
    %405 = arith.addf %404, %403 : vector<8x128xf32>
    %406 = arith.divf %404, %405 : vector<8x128xf32>
    %407 = vector.extract_strided_slice %394 {offsets = [0, 256], sizes = [8, 128], strides = [1, 1]} : vector<8x512xf32> to vector<8x128xf32>
    %408 = math.tanh %407 : vector<8x128xf32>
    %409 = vector.extract_strided_slice %394 {offsets = [0, 384], sizes = [8, 128], strides = [1, 1]} : vector<8x512xf32> to vector<8x128xf32>
    %410 = arith.negf %409 : vector<8x128xf32>
    %411 = math.exp %410 : vector<8x128xf32>
    %cst_92 = arith.constant 1.000000e+00 : f32
    %412 = vector.broadcast %cst_92 : f32 to vector<8x128xf32>
    %413 = arith.addf %412, %411 : vector<8x128xf32>
    %414 = arith.divf %412, %413 : vector<8x128xf32>
    %415 = arith.mulf %406, %356 : vector<8x128xf32>
    %416 = arith.mulf %400, %408 : vector<8x128xf32>
    %417 = arith.addf %415, %416 : vector<8x128xf32>
    %418 = math.tanh %417 : vector<8x128xf32>
    %419 = arith.mulf %414, %418 : vector<8x128xf32>
    %c6_i32 = arith.constant 6 : i32
    %420 = arith.index_cast %c6_i32 : i32 to index
    %c0_93 = arith.constant 0 : index
    %c0_94 = arith.constant 0 : index
    %421 = vector.load %arg18[%420, %c0_93, %c0_94] : memref<8x8x512xf32, #tpu.memory_space<vmem>>, vector<1x8x512xf32>
    %422 = vector.shape_cast %421 : vector<1x8x512xf32> to vector<8x512xf32>
    %423 = arith.truncf %389 : vector<8x128xf32> to vector<8x128xbf16>
    %cst_95 = arith.constant dense<0.000000e+00> : vector<8x512xf32>
    %424 = tpu.matmul %423, %50, %cst_95 {dimension_numbers = #tpu.dot_dimension_numbers<[1], [0], [0], [1], [0, 0, 1, 1], [], []>} : vector<8x128xbf16>, vector<128x512xbf16>, vector<8x512xf32> -> vector<8x512xf32>
    %425 = arith.addf %422, %424 : vector<8x512xf32>
    %426 = vector.extract_strided_slice %425 {offsets = [0, 0], sizes = [8, 128], strides = [1, 1]} : vector<8x512xf32> to vector<8x128xf32>
    %427 = arith.negf %426 : vector<8x128xf32>
    %428 = math.exp %427 : vector<8x128xf32>
    %cst_96 = arith.constant 1.000000e+00 : f32
    %429 = vector.broadcast %cst_96 : f32 to vector<8x128xf32>
    %430 = arith.addf %429, %428 : vector<8x128xf32>
    %431 = arith.divf %429, %430 : vector<8x128xf32>
    %432 = vector.extract_strided_slice %425 {offsets = [0, 128], sizes = [8, 128], strides = [1, 1]} : vector<8x512xf32> to vector<8x128xf32>
    %433 = arith.negf %432 : vector<8x128xf32>
    %434 = math.exp %433 : vector<8x128xf32>
    %cst_97 = arith.constant 1.000000e+00 : f32
    %435 = vector.broadcast %cst_97 : f32 to vector<8x128xf32>
    %436 = arith.addf %435, %434 : vector<8x128xf32>
    %437 = arith.divf %435, %436 : vector<8x128xf32>
    %438 = vector.extract_strided_slice %425 {offsets = [0, 256], sizes = [8, 128], strides = [1, 1]} : vector<8x512xf32> to vector<8x128xf32>
    %439 = math.tanh %438 : vector<8x128xf32>
    %440 = vector.extract_strided_slice %425 {offsets = [0, 384], sizes = [8, 128], strides = [1, 1]} : vector<8x512xf32> to vector<8x128xf32>
    %441 = arith.negf %440 : vector<8x128xf32>
    %442 = math.exp %441 : vector<8x128xf32>
    %cst_98 = arith.constant 1.000000e+00 : f32
    %443 = vector.broadcast %cst_98 : f32 to vector<8x128xf32>
    %444 = arith.addf %443, %442 : vector<8x128xf32>
    %445 = arith.divf %443, %444 : vector<8x128xf32>
    %446 = arith.mulf %437, %387 : vector<8x128xf32>
    %447 = arith.mulf %431, %439 : vector<8x128xf32>
    %448 = arith.addf %446, %447 : vector<8x128xf32>
    %449 = math.tanh %448 : vector<8x128xf32>
    %450 = arith.mulf %445, %449 : vector<8x128xf32>
    %451 = tpu.concatenate %450, %419 in 1 : vector<8x128xf32>, vector<8x128xf32> -> vector<8x256xf32>
    %452 = arith.truncf %451 : vector<8x256xf32> to vector<8x256xbf16>
    %cst_99 = arith.constant dense<0.000000e+00> : vector<8x512xf32>
    %453 = tpu.matmul %452, %51, %cst_99 {dimension_numbers = #tpu.dot_dimension_numbers<[1], [0], [0], [1], [0, 0, 1, 1], [], []>} : vector<8x256xbf16>, vector<256x512xbf16>, vector<8x512xf32> -> vector<8x512xf32>
    %454 = vector.broadcast %52 : vector<1x512xf32> to vector<8x512xf32>
    %455 = arith.addf %453, %454 : vector<8x512xf32>
    %456 = vector.extract_strided_slice %455 {offsets = [0, 0], sizes = [8, 128], strides = [1, 1]} : vector<8x512xf32> to vector<8x128xf32>
    %457 = arith.negf %456 : vector<8x128xf32>
    %458 = math.exp %457 : vector<8x128xf32>
    %cst_100 = arith.constant 1.000000e+00 : f32
    %459 = vector.broadcast %cst_100 : f32 to vector<8x128xf32>
    %460 = arith.addf %459, %458 : vector<8x128xf32>
    %461 = arith.divf %459, %460 : vector<8x128xf32>
    %462 = vector.extract_strided_slice %455 {offsets = [0, 128], sizes = [8, 128], strides = [1, 1]} : vector<8x512xf32> to vector<8x128xf32>
    %463 = arith.negf %462 : vector<8x128xf32>
    %464 = math.exp %463 : vector<8x128xf32>
    %cst_101 = arith.constant 1.000000e+00 : f32
    %465 = vector.broadcast %cst_101 : f32 to vector<8x128xf32>
    %466 = arith.addf %465, %464 : vector<8x128xf32>
    %467 = arith.divf %465, %466 : vector<8x128xf32>
    %468 = vector.extract_strided_slice %455 {offsets = [0, 256], sizes = [8, 128], strides = [1, 1]} : vector<8x512xf32> to vector<8x128xf32>
    %469 = math.tanh %468 : vector<8x128xf32>
    %470 = vector.extract_strided_slice %455 {offsets = [0, 384], sizes = [8, 128], strides = [1, 1]} : vector<8x512xf32> to vector<8x128xf32>
    %471 = arith.negf %470 : vector<8x128xf32>
    %472 = math.exp %471 : vector<8x128xf32>
    %cst_102 = arith.constant 1.000000e+00 : f32
    %473 = vector.broadcast %cst_102 : f32 to vector<8x128xf32>
    %474 = arith.addf %473, %472 : vector<8x128xf32>
    %475 = arith.divf %473, %474 : vector<8x128xf32>
    %476 = arith.mulf %467, %417 : vector<8x128xf32>
    %477 = arith.mulf %461, %469 : vector<8x128xf32>
    %478 = arith.addf %476, %477 : vector<8x128xf32>
    %479 = math.tanh %478 : vector<8x128xf32>
    %480 = arith.mulf %475, %479 : vector<8x128xf32>
    %c7_i32 = arith.constant 7 : i32
    %481 = arith.index_cast %c7_i32 : i32 to index
    %c0_103 = arith.constant 0 : index
    %c0_104 = arith.constant 0 : index
    %482 = vector.load %arg18[%481, %c0_103, %c0_104] : memref<8x8x512xf32, #tpu.memory_space<vmem>>, vector<1x8x512xf32>
    %483 = vector.shape_cast %482 : vector<1x8x512xf32> to vector<8x512xf32>
    %484 = arith.truncf %450 : vector<8x128xf32> to vector<8x128xbf16>
    %cst_105 = arith.constant dense<0.000000e+00> : vector<8x512xf32>
    %485 = tpu.matmul %484, %50, %cst_105 {dimension_numbers = #tpu.dot_dimension_numbers<[1], [0], [0], [1], [0, 0, 1, 1], [], []>} : vector<8x128xbf16>, vector<128x512xbf16>, vector<8x512xf32> -> vector<8x512xf32>
    %486 = arith.addf %483, %485 : vector<8x512xf32>
    %487 = vector.extract_strided_slice %486 {offsets = [0, 0], sizes = [8, 128], strides = [1, 1]} : vector<8x512xf32> to vector<8x128xf32>
    %488 = arith.negf %487 : vector<8x128xf32>
    %489 = math.exp %488 : vector<8x128xf32>
    %cst_106 = arith.constant 1.000000e+00 : f32
    %490 = vector.broadcast %cst_106 : f32 to vector<8x128xf32>
    %491 = arith.addf %490, %489 : vector<8x128xf32>
    %492 = arith.divf %490, %491 : vector<8x128xf32>
    %493 = vector.extract_strided_slice %486 {offsets = [0, 128], sizes = [8, 128], strides = [1, 1]} : vector<8x512xf32> to vector<8x128xf32>
    %494 = arith.negf %493 : vector<8x128xf32>
    %495 = math.exp %494 : vector<8x128xf32>
    %cst_107 = arith.constant 1.000000e+00 : f32
    %496 = vector.broadcast %cst_107 : f32 to vector<8x128xf32>
    %497 = arith.addf %496, %495 : vector<8x128xf32>
    %498 = arith.divf %496, %497 : vector<8x128xf32>
    %499 = vector.extract_strided_slice %486 {offsets = [0, 256], sizes = [8, 128], strides = [1, 1]} : vector<8x512xf32> to vector<8x128xf32>
    %500 = math.tanh %499 : vector<8x128xf32>
    %501 = vector.extract_strided_slice %486 {offsets = [0, 384], sizes = [8, 128], strides = [1, 1]} : vector<8x512xf32> to vector<8x128xf32>
    %502 = arith.negf %501 : vector<8x128xf32>
    %503 = math.exp %502 : vector<8x128xf32>
    %cst_108 = arith.constant 1.000000e+00 : f32
    %504 = vector.broadcast %cst_108 : f32 to vector<8x128xf32>
    %505 = arith.addf %504, %503 : vector<8x128xf32>
    %506 = arith.divf %504, %505 : vector<8x128xf32>
    %507 = arith.mulf %498, %448 : vector<8x128xf32>
    %508 = arith.mulf %492, %500 : vector<8x128xf32>
    %509 = arith.addf %507, %508 : vector<8x128xf32>
    %510 = math.tanh %509 : vector<8x128xf32>
    %511 = arith.mulf %506, %510 : vector<8x128xf32>
    %512 = tpu.concatenate %511, %480 in 1 : vector<8x128xf32>, vector<8x128xf32> -> vector<8x256xf32>
    %513 = arith.truncf %512 : vector<8x256xf32> to vector<8x256xbf16>
    %cst_109 = arith.constant dense<0.000000e+00> : vector<8x512xf32>
    %514 = tpu.matmul %513, %51, %cst_109 {dimension_numbers = #tpu.dot_dimension_numbers<[1], [0], [0], [1], [0, 0, 1, 1], [], []>} : vector<8x256xbf16>, vector<256x512xbf16>, vector<8x512xf32> -> vector<8x512xf32>
    %515 = vector.broadcast %52 : vector<1x512xf32> to vector<8x512xf32>
    %516 = arith.addf %514, %515 : vector<8x512xf32>
    %517 = vector.extract_strided_slice %516 {offsets = [0, 0], sizes = [8, 128], strides = [1, 1]} : vector<8x512xf32> to vector<8x128xf32>
    %518 = arith.negf %517 : vector<8x128xf32>
    %519 = math.exp %518 : vector<8x128xf32>
    %cst_110 = arith.constant 1.000000e+00 : f32
    %520 = vector.broadcast %cst_110 : f32 to vector<8x128xf32>
    %521 = arith.addf %520, %519 : vector<8x128xf32>
    %522 = arith.divf %520, %521 : vector<8x128xf32>
    %523 = vector.extract_strided_slice %516 {offsets = [0, 128], sizes = [8, 128], strides = [1, 1]} : vector<8x512xf32> to vector<8x128xf32>
    %524 = arith.negf %523 : vector<8x128xf32>
    %525 = math.exp %524 : vector<8x128xf32>
    %cst_111 = arith.constant 1.000000e+00 : f32
    %526 = vector.broadcast %cst_111 : f32 to vector<8x128xf32>
    %527 = arith.addf %526, %525 : vector<8x128xf32>
    %528 = arith.divf %526, %527 : vector<8x128xf32>
    %529 = vector.extract_strided_slice %516 {offsets = [0, 256], sizes = [8, 128], strides = [1, 1]} : vector<8x512xf32> to vector<8x128xf32>
    %530 = math.tanh %529 : vector<8x128xf32>
    %531 = vector.extract_strided_slice %516 {offsets = [0, 384], sizes = [8, 128], strides = [1, 1]} : vector<8x512xf32> to vector<8x128xf32>
    %532 = arith.negf %531 : vector<8x128xf32>
    %533 = math.exp %532 : vector<8x128xf32>
    %cst_112 = arith.constant 1.000000e+00 : f32
    %534 = vector.broadcast %cst_112 : f32 to vector<8x128xf32>
    %535 = arith.addf %534, %533 : vector<8x128xf32>
    %536 = arith.divf %534, %535 : vector<8x128xf32>
    %537 = arith.mulf %528, %478 : vector<8x128xf32>
    %538 = arith.mulf %522, %530 : vector<8x128xf32>
    %539 = arith.addf %537, %538 : vector<8x128xf32>
    %540 = math.tanh %539 : vector<8x128xf32>
    %541 = arith.mulf %536, %540 : vector<8x128xf32>
    %c8_i32 = arith.constant 8 : i32
    %542 = arith.truncf %541 : vector<8x128xf32> to vector<8x128xbf16>
    %c0_113 = arith.constant 0 : index
    %c0_114 = arith.constant 0 : index
    %543 = vector.load %arg13[%c0_113, %c0_114] : memref<128x256xbf16, #tpu.memory_space<vmem>>, vector<128x256xbf16>
    %cst_115 = arith.constant dense<0.000000e+00> : vector<8x256xf32>
    %544 = tpu.matmul %542, %543, %cst_115 {dimension_numbers = #tpu.dot_dimension_numbers<[1], [0], [0], [1], [0, 0, 1, 1], [], []>} : vector<8x128xbf16>, vector<128x256xbf16>, vector<8x256xf32> -> vector<8x256xf32>
    %c0_116 = arith.constant 0 : index
    %c0_117 = arith.constant 0 : index
    %545 = vector.load %arg14[%c0_116, %c0_117] : memref<1x256xf32, #tpu.memory_space<vmem>>, vector<1x256xf32>
    %546 = vector.broadcast %545 : vector<1x256xf32> to vector<8x256xf32>
    %547 = arith.addf %544, %546 : vector<8x256xf32>
    %cst_118 = arith.constant 0.000000e+00 : f32
    %548 = vector.broadcast %cst_118 : f32 to vector<8x256xf32>
    %549 = arith.maximumf %547, %548 : vector<8x256xf32>
    %550 = arith.truncf %549 : vector<8x256xf32> to vector<8x256xbf16>
    %c0_119 = arith.constant 0 : index
    %c0_120 = arith.constant 0 : index
    %551 = vector.load %arg15[%c0_119, %c0_120] : memref<256x128xbf16, #tpu.memory_space<vmem>>, vector<256x128xbf16>
    %cst_121 = arith.constant dense<0.000000e+00> : vector<8x128xf32>
    %552 = tpu.matmul %550, %551, %cst_121 {dimension_numbers = #tpu.dot_dimension_numbers<[1], [0], [0], [1], [0, 0, 1, 1], [], []>} : vector<8x256xbf16>, vector<256x128xbf16>, vector<8x128xf32> -> vector<8x128xf32>
    %c0_122 = arith.constant 0 : index
    %c0_123 = arith.constant 0 : index
    %553 = vector.load %arg16[%c0_122, %c0_123] : memref<1x128xf32, #tpu.memory_space<vmem>>, vector<1x128xf32>
    %554 = vector.broadcast %553 : vector<1x128xf32> to vector<8x128xf32>
    %555 = arith.addf %552, %554 : vector<8x128xf32>
    %c0_124 = arith.constant 0 : index
    %c0_125 = arith.constant 0 : index
    %556 = vector.load %arg17[%c0_124, %c0_125] : memref<8x128xf32, #tpu.memory_space<vmem>>, vector<8x128xf32>
    tpu.vector_store %arg17[%c0_124, %c0_125], %555 {strides = array<i32>} : memref<8x128xf32, #tpu.memory_space<vmem>>, vector<8x128xf32>,
    return
  }
  func.func @transform_0(%arg0: i32) -> (i32, i32, i32) {
    %c0_i32 = arith.constant 0 : i32
    %c0_i32_0 = arith.constant 0 : i32
    %c0_i32_1 = arith.constant 0 : i32
    return %c0_i32, %arg0, %c0_i32_0 : i32, i32, i32
  }
  func.func @transform_1(%arg0: i32) -> (i32, i32) {
    %c0_i32 = arith.constant 0 : i32
    %c0_i32_0 = arith.constant 0 : i32
    %c0_i32_1 = arith.constant 0 : i32
    return %c0_i32, %c0_i32_0 : i32, i32
  }
  func.func @transform_2(%arg0: i32) -> (i32, i32) {
    %c0_i32 = arith.constant 0 : i32
    %c0_i32_0 = arith.constant 0 : i32
    %c0_i32_1 = arith.constant 0 : i32
    return %c0_i32, %c0_i32_0 : i32, i32
  }
  func.func @transform_3(%arg0: i32) -> (i32, i32) {
    %c0_i32 = arith.constant 0 : i32
    %c0_i32_0 = arith.constant 0 : i32
    %c0_i32_1 = arith.constant 0 : i32
    return %c0_i32, %c0_i32_0 : i32, i32
  }
  func.func @transform_4(%arg0: i32) -> (i32, i32) {
    %c0_i32 = arith.constant 0 : i32
    %c0_i32_0 = arith.constant 0 : i32
    %c0_i32_1 = arith.constant 0 : i32
    return %c0_i32, %c0_i32_0 : i32, i32
  }
  func.func @transform_5(%arg0: i32) -> (i32, i32) {
    %c0_i32 = arith.constant 0 : i32
    %c0_i32_0 = arith.constant 0 : i32
    %c0_i32_1 = arith.constant 0 : i32
    return %c0_i32, %c0_i32_0 : i32, i32
  }
  func.func @transform_6(%arg0: i32) -> (i32, i32) {
    %c0_i32 = arith.constant 0 : i32
    %c0_i32_0 = arith.constant 0 : i32
    %c0_i32_1 = arith.constant 0 : i32
    return %c0_i32, %c0_i32_0 : i32, i32
  }
  func.func @transform_7(%arg0: i32) -> (i32, i32) {
    %c0_i32 = arith.constant 0 : i32
    %c0_i32_0 = arith.constant 0 : i32
    %c0_i32_1 = arith.constant 0 : i32
    return %c0_i32, %c0_i32_0 : i32, i32
  }
  func.func @transform_8(%arg0: i32) -> (i32, i32) {
    %c0_i32 = arith.constant 0 : i32
    %c0_i32_0 = arith.constant 0 : i32
    %c0_i32_1 = arith.constant 0 : i32
    return %c0_i32, %c0_i32_0 : i32, i32
  }
  func.func @transform_9(%arg0: i32) -> (i32, i32) {
    %c0_i32 = arith.constant 0 : i32
    %c0_i32_0 = arith.constant 0 : i32
    %c0_i32_1 = arith.constant 0 : i32
    return %c0_i32, %c0_i32_0 : i32, i32
  }
  func.func @transform_10(%arg0: i32) -> (i32, i32) {
    %c0_i32 = arith.constant 0 : i32
    %c0_i32_0 = arith.constant 0 : i32
    %c0_i32_1 = arith.constant 0 : i32
    return %c0_i32, %c0_i32_0 : i32, i32
  }
  func.func @transform_11(%arg0: i32) -> (i32, i32) {
    %c0_i32 = arith.constant 0 : i32
    %c0_i32_0 = arith.constant 0 : i32
    %c0_i32_1 = arith.constant 0 : i32
    return %c0_i32, %c0_i32_0 : i32, i32
  }
  func.func @transform_12(%arg0: i32) -> (i32, i32) {
    %c0_i32 = arith.constant 0 : i32
    %c0_i32_0 = arith.constant 0 : i32
    %c0_i32_1 = arith.constant 0 : i32
    return %c0_i32, %c0_i32_0 : i32, i32
  }
  func.func @transform_13(%arg0: i32) -> (i32, i32) {
    %c0_i32 = arith.constant 0 : i32
    %c0_i32_0 = arith.constant 0 : i32
    %c0_i32_1 = arith.constant 0 : i32
    return %c0_i32, %c0_i32_0 : i32, i32
  }
  func.func @transform_14(%arg0: i32) -> (i32, i32) {
    %c0_i32 = arith.constant 0 : i32
    %c0_i32_0 = arith.constant 0 : i32
    %c0_i32_1 = arith.constant 0 : i32
    return %c0_i32, %c0_i32_0 : i32, i32
  }
  func.func @transform_15(%arg0: i32) -> (i32, i32) {
    %c0_i32 = arith.constant 0 : i32
    %c0_i32_0 = arith.constant 0 : i32
    %c0_i32_1 = arith.constant 0 : i32
    return %c0_i32, %c0_i32_0 : i32, i32
  }
  func.func @transform_16(%arg0: i32) -> (i32, i32) {
    %c0_i32 = arith.constant 0 : i32
    %c0_i32_0 = arith.constant 0 : i32
    return %arg0, %c0_i32 : i32, i32
  }
}

</mosaic_0001>

<llo_original>
// kernel: pyramid_conv_forward.1
$region0: #{pyramid_conv_forward.1}
  #allocation0 [shape = 'u32[]', space=smem, size = 0x4, offset = 0x4, fixed_abs, tag = 'smem constant byte address 0x4 - core index']
  #allocation1 [shape = 'u32[144,128]{1,0:T(1,128)}', space=vmem, size = 0x12000, scoped, tag = 'internal scratch']
  #allocation2 [shape = 'f32[8,8,512]{2,1,0:T(8,128)}', space=vmem, size = 0x20000, scoped, tag = 'scratch operand']
  %s0 = inlined_call_operand.vmem [shape: f32[8,16,8], index: 0, kind: input, shape index: {}]
  %s1 = inlined_call_operand.vmem [shape: bf16[8,64], index: 1, kind: input, shape index: {}]
  %s2 = inlined_call_operand.vmem [shape: f32[1,64], index: 2, kind: input, shape index: {}]
  %s3 = inlined_call_operand.vmem [shape: bf16[448,128], index: 3, kind: input, shape index: {}]
  %s4 = inlined_call_operand.vmem [shape: f32[1,128], index: 4, kind: input, shape index: {}]
  %s5 = inlined_call_operand.vmem [shape: bf16[128,64], index: 5, kind: input, shape index: {}]
  %s6 = inlined_call_operand.vmem [shape: f32[1,64], index: 6, kind: input, shape index: {}]
  %s7 = inlined_call_operand.vmem [shape: bf16[64,512], index: 7, kind: input, shape index: {}]
  %s8 = inlined_call_operand.vmem [shape: bf16[128,512], index: 8, kind: input, shape index: {}]
  %s9 = inlined_call_operand.vmem [shape: f32[1,512], index: 9, kind: input, shape index: {}]
  %s10 = inlined_call_operand.vmem [shape: bf16[256,512], index: 10, kind: input, shape index: {}]
  %s11 = inlined_call_operand.vmem [shape: f32[1,512], index: 11, kind: input, shape index: {}]
  %s12 = inlined_call_operand.vmem [shape: bf16[128,256], index: 12, kind: input, shape index: {}]
  %s13 = inlined_call_operand.vmem [shape: f32[1,256], index: 13, kind: input, shape index: {}]
  %s14 = inlined_call_operand.vmem [shape: bf16[256,128], index: 14, kind: input, shape index: {}]
  %s15 = inlined_call_operand.vmem [shape: f32[1,128], index: 15, kind: input, shape index: {}]
  %s16 = inlined_call_operand.vmem [shape: f32[16,128], index: 16, kind: output, shape index: {}]
  %s17 = sld [smem:[#allocation0]]
  $region135: #{pyramid_conv_forward.1} parent=0
    _
  %s19 = ssub.s32 1, %s17
  %s20 = scalar_select 0, %s19, %s17
  $region1: #{pyramid_conv_forward.1} parent=0
    #allocation3 [shape = 'u8[65536]{0}', space=vmem, size = 0x10000, scoped, tag = 'input window, operand 0']
    loop: start=0, step=1, limit=4
    $region2: #{pyramid_conv_forward.1} parent=1 // loop_pre_header
      _
    $region3: #{pyramid_conv_forward.1} parent=1 // loop_header
      %s22 = sphi 0, %s26
      %p23 = scmp.ge.s32.totalorder %s22, 4
      %s32 = sphi 0, %s34
      %s35 = sphi 0, %s32
      %s36 = sphi 0, %s35
      %s52 = sphi 0, %s36
      %s56 = sphi 0, %s56
      %s58 = sphi 0, %s56
      %s59 = sphi 0, %s58
      %s73 = sphi 0, %s59
      %s77 = sphi 0, %s77
      %s79 = sphi 0, %s77
      %s80 = sphi 0, %s79
      %s94 = sphi 0, %s80
      %s98 = sphi 0, %s98
      %s100 = sphi 0, %s98
      %s101 = sphi 0, %s100
      %s115 = sphi 0, %s101
      %s119 = sphi 0, %s119
      %s121 = sphi 0, %s119
      %s122 = sphi 0, %s121
      %s136 = sphi 0, %s122
      %s140 = sphi 0, %s140
      %s142 = sphi 0, %s140
      %s143 = sphi 0, %s142
      %s157 = sphi 0, %s143
      %s161 = sphi 0, %s161
      %s163 = sphi 0, %s161
      %s164 = sphi 0, %s163
      %s178 = sphi 0, %s164
      %s182 = sphi 0, %s182
      %s184 = sphi 0, %s182
      %s185 = sphi 0, %s184
      %s199 = sphi 0, %s185
      %s203 = sphi 0, %s203
      %s205 = sphi 0, %s203
      %s206 = sphi 0, %s205
      %s220 = sphi 0, %s206
      %s224 = sphi 0, %s224
      %s226 = sphi 0, %s224
      %s227 = sphi 0, %s226
      %s241 = sphi 0, %s227
      %s245 = sphi 0, %s245
      %s247 = sphi 0, %s245
      %s248 = sphi 0, %s247
      %s262 = sphi 0, %s248
      %s266 = sphi 0, %s266
      %s268 = sphi 0, %s266
      %s269 = sphi 0, %s268
      %s283 = sphi 0, %s269
      %s287 = sphi 0, %s287
      %s289 = sphi 0, %s287
      %s290 = sphi 0, %s289
      %s304 = sphi 0, %s290
      %s308 = sphi 0, %s308
      %s310 = sphi 0, %s308
      %s311 = sphi 0, %s310
      %s325 = sphi 0, %s311
      %s329 = sphi 0, %s329
      %s331 = sphi 0, %s329
      %s332 = sphi 0, %s331
      %s346 = sphi 0, %s332
      %s350 = sphi 0, %s350
      %s352 = sphi 0, %s350
      %s353 = sphi 0, %s352
      %s367 = sphi 0, %s353
      %s373 = sphi 0, %s375
      %s376 = sphi 0, %s373
      %s377 = sphi 0, %s376
      %s393 = sphi 0, %s377
    $region4: #{pyramid_conv_forward.1} parent=1 // loop_header_branch
      %25 = sbr.rel (%p23) target = $region8
    $region5: #{pyramid_conv_forward.1} parent=1 // loop_body
      %s27 = ssub.s32 %s22, 1
      %s28 = ssub.s32 %s22, 2
      %s29 = sadd.s32 %s22, 1
      %s30 = ssub.s32 %s22, %s29
      %p31 = scmp.eq.s32.totalorder %s30, 0
      %s33 = sadd.s32 %s32, 1
      %s34 = scalar_select %p31, %s32, %s33
      %p37 = pneg %p31
      %p38 = scmp.eq.s32.totalorder %s22, 1
      %p39 = por %p37, %p38
      %p40 = scmp.ne.s32.totalorder %s32, %s35
      %p41 = scmp.eq.s32.totalorder %s22, 0
      %p42 = por %p40, %p41
      %p43 = scmp.ne.s32.totalorder %s32, %s35
      %p44 = scmp.eq.s32.totalorder %s27, 1
      %p45 = por %p43, %p44
      %p46 = scmp.ne.s32.totalorder %s35, %s36
      %p47 = scmp.eq.s32.totalorder %s27, 0
      %p48 = por %p46, %p47
      %p49 = scmp.ne.s32.totalorder %s35, %s36
      %p50 = scmp.eq.s32.totalorder %s28, 1
      %p51 = por %p49, %p50
      %p53 = scmp.ne.s32.totalorder %s36, %s52
      %p54 = scmp.eq.s32.totalorder %s28, 0
      %p55 = por %p53, %p54
      %s57 = sadd.s32 %s56, 1
      %p60 = scmp.eq.s32.totalorder %s22, 1
      %p61 = scmp.ne.s32.totalorder %s56, %s58
      %p62 = scmp.eq.s32.totalorder %s22, 0
      %p63 = por %p61, %p62
      %p64 = scmp.ne.s32.totalorder %s56, %s58
      %p65 = scmp.eq.s32.totalorder %s27, 1
      %p66 = por %p64, %p65
      %p67 = scmp.ne.s32.totalorder %s58, %s59
      %p68 = scmp.eq.s32.totalorder %s27, 0
      %p69 = por %p67, %p68
      %p70 = scmp.ne.s32.totalorder %s58, %s59
      %p71 = scmp.eq.s32.totalorder %s28, 1
      %p72 = por %p70, %p71
      %p74 = scmp.ne.s32.totalorder %s59, %s73
      %p75 = scmp.eq.s32.totalorder %s28, 0
      %p76 = por %p74, %p75
      %s78 = sadd.s32 %s77, 1
      %p81 = scmp.eq.s32.totalorder %s22, 1
      %p82 = scmp.ne.s32.totalorder %s77, %s79
      %p83 = scmp.eq.s32.totalorder %s22, 0
      %p84 = por %p82, %p83
      %p85 = scmp.ne.s32.totalorder %s77, %s79
      %p86 = scmp.eq.s32.totalorder %s27, 1
      %p87 = por %p85, %p86
      %p88 = scmp.ne.s32.totalorder %s79, %s80
      %p89 = scmp.eq.s32.totalorder %s27, 0
      %p90 = por %p88, %p89
      %p91 = scmp.ne.s32.totalorder %s79, %s80
      %p92 = scmp.eq.s32.totalorder %s28, 1
      %p93 = por %p91, %p92
      %p95 = scmp.ne.s32.totalorder %s80, %s94
      %p96 = scmp.eq.s32.totalorder %s28, 0
      %p97 = por %p95, %p96
      %s99 = sadd.s32 %s98, 1
      %p102 = scmp.eq.s32.totalorder %s22, 1
      %p103 = scmp.ne.s32.totalorder %s98, %s100
      %p104 = scmp.eq.s32.totalorder %s22, 0
      %p105 = por %p103, %p104
      %p106 = scmp.ne.s32.totalorder %s98, %s100
      %p107 = scmp.eq.s32.totalorder %s27, 1
      %p108 = por %p106, %p107
      %p109 = scmp.ne.s32.totalorder %s100, %s101
      %p110 = scmp.eq.s32.totalorder %s27, 0
      %p111 = por %p109, %p110
      %p112 = scmp.ne.s32.totalorder %s100, %s101
      %p113 = scmp.eq.s32.totalorder %s28, 1
      %p114 = por %p112, %p113
      %p116 = scmp.ne.s32.totalorder %s101, %s115
      %p117 = scmp.eq.s32.totalorder %s28, 0
      %p118 = por %p116, %p117
      %s120 = sadd.s32 %s119, 1
      %p123 = scmp.eq.s32.totalorder %s22, 1
      %p124 = scmp.ne.s32.totalorder %s119, %s121
      %p125 = scmp.eq.s32.totalorder %s22, 0
      %p126 = por %p124, %p125
      %p127 = scmp.ne.s32.totalorder %s119, %s121
      %p128 = scmp.eq.s32.totalorder %s27, 1
      %p129 = por %p127, %p128
      %p130 = scmp.ne.s32.totalorder %s121, %s122
      %p131 = scmp.eq.s32.totalorder %s27, 0
      %p132 = por %p130, %p131
      %p133 = scmp.ne.s32.totalorder %s121, %s122
      %p134 = scmp.eq.s32.totalorder %s28, 1
      %p135 = por %p133, %p134
      %p137 = scmp.ne.s32.totalorder %s122, %s136
      %p138 = scmp.eq.s32.totalorder %s28, 0
      %p139 = por %p137, %p138
      %s141 = sadd.s32 %s140, 1
      %p144 = scmp.eq.s32.totalorder %s22, 1
      %p145 = scmp.ne.s32.totalorder %s140, %s142
      %p146 = scmp.eq.s32.totalorder %s22, 0
      %p147 = por %p145, %p146
      %p148 = scmp.ne.s32.totalorder %s140, %s142
      %p149 = scmp.eq.s32.totalorder %s27, 1
      %p150 = por %p148, %p149
      %p151 = scmp.ne.s32.totalorder %s142, %s143
      %p152 = scmp.eq.s32.totalorder %s27, 0
      %p153 = por %p151, %p152
      %p154 = scmp.ne.s32.totalorder %s142, %s143
      %p155 = scmp.eq.s32.totalorder %s28, 1
      %p156 = por %p154, %p155
      %p158 = scmp.ne.s32.totalorder %s143, %s157
      %p159 = scmp.eq.s32.totalorder %s28, 0
      %p160 = por %p158, %p159
      %s162 = sadd.s32 %s161, 1
      %p165 = scmp.eq.s32.totalorder %s22, 1
      %p166 = scmp.ne.s32.totalorder %s161, %s163
      %p167 = scmp.eq.s32.totalorder %s22, 0
      %p168 = por %p166, %p167
      %p169 = scmp.ne.s32.totalorder %s161, %s163
      %p170 = scmp.eq.s32.totalorder %s27, 1
      %p171 = por %p169, %p170
      %p172 = scmp.ne.s32.totalorder %s163, %s164
      %p173 = scmp.eq.s32.totalorder %s27, 0
      %p174 = por %p172, %p173
      %p175 = scmp.ne.s32.totalorder %s163, %s164
      %p176 = scmp.eq.s32.totalorder %s28, 1
      %p177 = por %p175, %p176
      %p179 = scmp.ne.s32.totalorder %s164, %s178
      %p180 = scmp.eq.s32.totalorder %s28, 0
      %p181 = por %p179, %p180
      %s183 = sadd.s32 %s182, 1
      %p186 = scmp.eq.s32.totalorder %s22, 1
      %p187 = scmp.ne.s32.totalorder %s182, %s184
      %p188 = scmp.eq.s32.totalorder %s22, 0
      %p189 = por %p187, %p188
      %p190 = scmp.ne.s32.totalorder %s182, %s184
      %p191 = scmp.eq.s32.totalorder %s27, 1
      %p192 = por %p190, %p191
      %p193 = scmp.ne.s32.totalorder %s184, %s185
      %p194 = scmp.eq.s32.totalorder %s27, 0
      %p195 = por %p193, %p194
      %p196 = scmp.ne.s32.totalorder %s184, %s185
      %p197 = scmp.eq.s32.totalorder %s28, 1
      %p198 = por %p196, %p197
      %p200 = scmp.ne.s32.totalorder %s185, %s199
      %p201 = scmp.eq.s32.totalorder %s28, 0
      %p202 = por %p200, %p201
      %s204 = sadd.s32 %s203, 1
      %p207 = scmp.eq.s32.totalorder %s22, 1
      %p208 = scmp.ne.s32.totalorder %s203, %s205
      %p209 = scmp.eq.s32.totalorder %s22, 0
      %p210 = por %p208, %p209
      %p211 = scmp.ne.s32.totalorder %s203, %s205
      %p212 = scmp.eq.s32.totalorder %s27, 1
      %p213 = por %p211, %p212
      %p214 = scmp.ne.s32.totalorder %s205, %s206
      %p215 = scmp.eq.s32.totalorder %s27, 0
      %p216 = por %p214, %p215
      %p217 = scmp.ne.s32.totalorder %s205, %s206
      %p218 = scmp.eq.s32.totalorder %s28, 1
      %p219 = por %p217, %p218
      %p221 = scmp.ne.s32.totalorder %s206, %s220
      %p222 = scmp.eq.s32.totalorder %s28, 0
      %p223 = por %p221, %p222
      %s225 = sadd.s32 %s224, 1
      %p228 = scmp.eq.s32.totalorder %s22, 1
      %p229 = scmp.ne.s32.totalorder %s224, %s226
      %p230 = scmp.eq.s32.totalorder %s22, 0
      %p231 = por %p229, %p230
      %p232 = scmp.ne.s32.totalorder %s224, %s226
      %p233 = scmp.eq.s32.totalorder %s27, 1
      %p234 = por %p232, %p233
      %p235 = scmp.ne.s32.totalorder %s226, %s227
      %p236 = scmp.eq.s32.totalorder %s27, 0
      %p237 = por %p235, %p236
      %p238 = scmp.ne.s32.totalorder %s226, %s227
      %p239 = scmp.eq.s32.totalorder %s28, 1
      %p240 = por %p238, %p239
      %p242 = scmp.ne.s32.totalorder %s227, %s241
      %p243 = scmp.eq.s32.totalorder %s28, 0
      %p244 = por %p242, %p243
      %s246 = sadd.s32 %s245, 1
      %p249 = scmp.eq.s32.totalorder %s22, 1
      %p250 = scmp.ne.s32.totalorder %s245, %s247
      %p251 = scmp.eq.s32.totalorder %s22, 0
      %p252 = por %p250, %p251
      %p253 = scmp.ne.s32.totalorder %s245, %s247
      %p254 = scmp.eq.s32.totalorder %s27, 1
      %p255 = por %p253, %p254
      %p256 = scmp.ne.s32.totalorder %s247, %s248
      %p257 = scmp.eq.s32.totalorder %s27, 0
      %p258 = por %p256, %p257
      %p259 = scmp.ne.s32.totalorder %s247, %s248
      %p260 = scmp.eq.s32.totalorder %s28, 1
      %p261 = por %p259, %p260
      %p263 = scmp.ne.s32.totalorder %s248, %s262
      %p264 = scmp.eq.s32.totalorder %s28, 0
      %p265 = por %p263, %p264
      %s267 = sadd.s32 %s266, 1
      %p270 = scmp.eq.s32.totalorder %s22, 1
      %p271 = scmp.ne.s32.totalorder %s266, %s268
      %p272 = scmp.eq.s32.totalorder %s22, 0
      %p273 = por %p271, %p272
      %p274 = scmp.ne.s32.totalorder %s266, %s268
      %p275 = scmp.eq.s32.totalorder %s27, 1
      %p276 = por %p274, %p275
      %p277 = scmp.ne.s32.totalorder %s268, %s269
      %p278 = scmp.eq.s32.totalorder %s27, 0
      %p279 = por %p277, %p278
      %p280 = scmp.ne.s32.totalorder %s268, %s269
      %p281 = scmp.eq.s32.totalorder %s28, 1
      %p282 = por %p280, %p281
      %p284 = scmp.ne.s32.totalorder %s269, %s283
      %p285 = scmp.eq.s32.totalorder %s28, 0
      %p286 = por %p284, %p285
      %s288 = sadd.s32 %s287, 1
      %p291 = scmp.eq.s32.totalorder %s22, 1
      %p292 = scmp.ne.s32.totalorder %s287, %s289
      %p293 = scmp.eq.s32.totalorder %s22, 0
      %p294 = por %p292, %p293
      %p295 = scmp.ne.s32.totalorder %s287, %s289
      %p296 = scmp.eq.s32.totalorder %s27, 1
      %p297 = por %p295, %p296
      %p298 = scmp.ne.s32.totalorder %s289, %s290
      %p299 = scmp.eq.s32.totalorder %s27, 0
      %p300 = por %p298, %p299
      %p301 = scmp.ne.s32.totalorder %s289, %s290
      %p302 = scmp.eq.s32.totalorder %s28, 1
      %p303 = por %p301, %p302
      %p305 = scmp.ne.s32.totalorder %s290, %s304
      %p306 = scmp.eq.s32.totalorder %s28, 0
      %p307 = por %p305, %p306
      %s309 = sadd.s32 %s308, 1
      %p312 = scmp.eq.s32.totalorder %s22, 1
      %p313 = scmp.ne.s32.totalorder %s308, %s310
      %p314 = scmp.eq.s32.totalorder %s22, 0
      %p315 = por %p313, %p314
      %p316 = scmp.ne.s32.totalorder %s308, %s310
      %p317 = scmp.eq.s32.totalorder %s27, 1
      %p318 = por %p316, %p317
      %p319 = scmp.ne.s32.totalorder %s310, %s311
      %p320 = scmp.eq.s32.totalorder %s27, 0
      %p321 = por %p319, %p320
      %p322 = scmp.ne.s32.totalorder %s310, %s311
      %p323 = scmp.eq.s32.totalorder %s28, 1
      %p324 = por %p322, %p323
      %p326 = scmp.ne.s32.totalorder %s311, %s325
      %p327 = scmp.eq.s32.totalorder %s28, 0
      %p328 = por %p326, %p327
      %s330 = sadd.s32 %s329, 1
      %p333 = scmp.eq.s32.totalorder %s22, 1
      %p334 = scmp.ne.s32.totalorder %s329, %s331
      %p335 = scmp.eq.s32.totalorder %s22, 0
      %p336 = por %p334, %p335
      %p337 = scmp.ne.s32.totalorder %s329, %s331
      %p338 = scmp.eq.s32.totalorder %s27, 1
      %p339 = por %p337, %p338
      %p340 = scmp.ne.s32.totalorder %s331, %s332
      %p341 = scmp.eq.s32.totalorder %s27, 0
      %p342 = por %p340, %p341
      %p343 = scmp.ne.s32.totalorder %s331, %s332
      %p344 = scmp.eq.s32.totalorder %s28, 1
      %p345 = por %p343, %p344
      %p347 = scmp.ne.s32.totalorder %s332, %s346
      %p348 = scmp.eq.s32.totalorder %s28, 0
      %p349 = por %p347, %p348
      %s351 = sadd.s32 %s350, 1
      %p354 = scmp.eq.s32.totalorder %s22, 1
      %p355 = scmp.ne.s32.totalorder %s350, %s352
      %p356 = scmp.eq.s32.totalorder %s22, 0
      %p357 = por %p355, %p356
      %p358 = scmp.ne.s32.totalorder %s350, %s352
      %p359 = scmp.eq.s32.totalorder %s27, 1
      %p360 = por %p358, %p359
      %p361 = scmp.ne.s32.totalorder %s352, %s353
      %p362 = scmp.eq.s32.totalorder %s27, 0
      %p363 = por %p361, %p362
      %p364 = scmp.ne.s32.totalorder %s352, %s353
      %p365 = scmp.eq.s32.totalorder %s28, 1
      %p366 = por %p364, %p365
      %p368 = scmp.ne.s32.totalorder %s353, %s367
      %p369 = scmp.eq.s32.totalorder %s28, 0
      %p370 = por %p368, %p369
      %s371 = ssub.s32 %s22, %s29
      %p372 = scmp.eq.s32.totalorder %s371, 0
      %s374 = sadd.s32 %s373, 1
      %s375 = scalar_select %p372, %s373, %s374
      %p378 = pneg %p372
      %p379 = scmp.eq.s32.totalorder %s22, 1
      %p380 = por %p378, %p379
      %p381 = scmp.ne.s32.totalorder %s373, %s376
      %p382 = scmp.eq.s32.totalorder %s22, 0
      %p383 = por %p381, %p382
      %p384 = scmp.ne.s32.totalorder %s373, %s376
      %p385 = scmp.eq.s32.totalorder %s27, 1
      %p386 = por %p384, %p385
      %p387 = scmp.ne.s32.totalorder %s376, %s377
      %p388 = scmp.eq.s32.totalorder %s27, 0
      %p389 = por %p387, %p388
      %p390 = scmp.ne.s32.totalorder %s376, %s377
      %p391 = scmp.eq.s32.totalorder %s28, 1
      %p392 = por %p390, %p391
      %p394 = scmp.ne.s32.totalorder %s377, %s393
      %p395 = scmp.eq.s32.totalorder %s28, 0
      %p396 = por %p394, %p395
      %p397 = scmp.le.s32.totalorder 1, %s22
      %p398 = scmp.lt.s32.totalorder %s22, 3
      %p399 = pnand %p397, %p398
      %p400 = pneg %p399
      // Predicated region
      $region9: #{pyramid_conv_forward.1} parent=5 // pred_check
        _
      $region10: #{pyramid_conv_forward.1} parent=5 // pred_check_branch
        %402 = sbr.rel (%p399) target = $region12
      $region11: #{pyramid_conv_forward.1} parent=5 // pred_region
        %s403 = ssub.s32 %s22, 1
        // Predicated region
        $region13: #{pyramid_conv_forward.1} parent=11 // pred_check
          %p404 = pneg %p69
        $region14: #{pyramid_conv_forward.1} parent=11 // pred_check_branch
          %406 = sbr.rel (%p404) target = $region16
        $region15: #{pyramid_conv_forward.1} parent=11 // pred_region
          _
        $region16: #{pyramid_conv_forward.1} parent=11 // pred_fallthru
          _
        // Predicated region
        $region17: #{pyramid_conv_forward.1} parent=11 // pred_check
          %p407 = pneg %p90
        $region18: #{pyramid_conv_forward.1} parent=11 // pred_check_branch
          %409 = sbr.rel (%p407) target = $region20
        $region19: #{pyramid_conv_forward.1} parent=11 // pred_region
          _
        $region20: #{pyramid_conv_forward.1} parent=11 // pred_fallthru
          _
        // Predicated region
        $region21: #{pyramid_conv_forward.1} parent=11 // pred_check
          %p410 = pneg %p111
        $region22: #{pyramid_conv_forward.1} parent=11 // pred_check_branch
          %412 = sbr.rel (%p410) target = $region24
        $region23: #{pyramid_conv_forward.1} parent=11 // pred_region
          _
        $region24: #{pyramid_conv_forward.1} parent=11 // pred_fallthru
          _
        // Predicated region
        $region25: #{pyramid_conv_forward.1} parent=11 // pred_check
          %p413 = pneg %p132
        $region26: #{pyramid_conv_forward.1} parent=11 // pred_check_branch
          %415 = sbr.rel (%p413) target = $region28
        $region27: #{pyramid_conv_forward.1} parent=11 // pred_region
          _
        $region28: #{pyramid_conv_forward.1} parent=11 // pred_fallthru
          _
        // Predicated region
        $region29: #{pyramid_conv_forward.1} parent=11 // pred_check
          %p416 = pneg %p153
        $region30: #{pyramid_conv_forward.1} parent=11 // pred_check_branch
          %418 = sbr.rel (%p416) target = $region32
        $region31: #{pyramid_conv_forward.1} parent=11 // pred_region
          _
        $region32: #{pyramid_conv_forward.1} parent=11 // pred_fallthru
          _
        // Predicated region
        $region33: #{pyramid_conv_forward.1} parent=11 // pred_check
          %p419 = pneg %p174
        $region34: #{pyramid_conv_forward.1} parent=11 // pred_check_branch
          %421 = sbr.rel (%p419) target = $region36
        $region35: #{pyramid_conv_forward.1} parent=11 // pred_region
          _
        $region36: #{pyramid_conv_forward.1} parent=11 // pred_fallthru
          _
        // Predicated region
        $region37: #{pyramid_conv_forward.1} parent=11 // pred_check
          %p422 = pneg %p195
        $region38: #{pyramid_conv_forward.1} parent=11 // pred_check_branch
          %424 = sbr.rel (%p422) target = $region40
        $region39: #{pyramid_conv_forward.1} parent=11 // pred_region
          _
        $region40: #{pyramid_conv_forward.1} parent=11 // pred_fallthru
          _
        // Predicated region
        $region41: #{pyramid_conv_forward.1} parent=11 // pred_check
          %p425 = pneg %p216
        $region42: #{pyramid_conv_forward.1} parent=11 // pred_check_branch
          %427 = sbr.rel (%p425) target = $region44
        $region43: #{pyramid_conv_forward.1} parent=11 // pred_region
          _
        $region44: #{pyramid_conv_forward.1} parent=11 // pred_fallthru
          _
        // Predicated region
        $region45: #{pyramid_conv_forward.1} parent=11 // pred_check
          %p428 = pneg %p237
        $region46: #{pyramid_conv_forward.1} parent=11 // pred_check_branch
          %430 = sbr.rel (%p428) target = $region48
        $region47: #{pyramid_conv_forward.1} parent=11 // pred_region
          _
        $region48: #{pyramid_conv_forward.1} parent=11 // pred_fallthru
          _
        // Predicated region
        $region49: #{pyramid_conv_forward.1} parent=11 // pred_check
          %p431 = pneg %p258
        $region50: #{pyramid_conv_forward.1} parent=11 // pred_check_branch
          %433 = sbr.rel (%p431) target = $region52
        $region51: #{pyramid_conv_forward.1} parent=11 // pred_region
          _
        $region52: #{pyramid_conv_forward.1} parent=11 // pred_fallthru
          _
        // Predicated region
        $region53: #{pyramid_conv_forward.1} parent=11 // pred_check
          %p434 = pneg %p279
        $region54: #{pyramid_conv_forward.1} parent=11 // pred_check_branch
          %436 = sbr.rel (%p434) target = $region56
        $region55: #{pyramid_conv_forward.1} parent=11 // pred_region
          _
        $region56: #{pyramid_conv_forward.1} parent=11 // pred_fallthru
          _
        // Predicated region
        $region57: #{pyramid_conv_forward.1} parent=11 // pred_check
          %p437 = pneg %p300
        $region58: #{pyramid_conv_forward.1} parent=11 // pred_check_branch
          %439 = sbr.rel (%p437) target = $region60
        $region59: #{pyramid_conv_forward.1} parent=11 // pred_region
          _
        $region60: #{pyramid_conv_forward.1} parent=11 // pred_fallthru
          _
        // Predicated region
        $region61: #{pyramid_conv_forward.1} parent=11 // pred_check
          %p440 = pneg %p321
        $region62: #{pyramid_conv_forward.1} parent=11 // pred_check_branch
          %442 = sbr.rel (%p440) target = $region64
        $region63: #{pyramid_conv_forward.1} parent=11 // pred_region
          _
        $region64: #{pyramid_conv_forward.1} parent=11 // pred_fallthru
          _
        // Predicated region
        $region65: #{pyramid_conv_forward.1} parent=11 // pred_check
          %p443 = pneg %p342
        $region66: #{pyramid_conv_forward.1} parent=11 // pred_check_branch
          %445 = sbr.rel (%p443) target = $region68
        $region67: #{pyramid_conv_forward.1} parent=11 // pred_region
          _
        $region68: #{pyramid_conv_forward.1} parent=11 // pred_fallthru
          _
        // Predicated region
        $region69: #{pyramid_conv_forward.1} parent=11 // pred_check
          %p446 = pneg %p363
        $region70: #{pyramid_conv_forward.1} parent=11 // pred_check_branch
          %448 = sbr.rel (%p446) target = $region72
        $region71: #{pyramid_conv_forward.1} parent=11 // pred_region
          _
        $region72: #{pyramid_conv_forward.1} parent=11 // pred_fallthru
          _
      $region12: #{pyramid_conv_forward.1} parent=5 // pred_fallthru
        _
      %p449 = scmp.lt.s32.totalorder %s22, 2
      // Predicated region
      $region73: #{pyramid_conv_forward.1} parent=5 // pred_check
        %p450 = pneg %p449
      $region74: #{pyramid_conv_forward.1} parent=5 // pred_check_branch
        %452 = sbr.rel (%p450) target = $region76
      $region75: #{pyramid_conv_forward.1} parent=5 // pred_region
        // Predicated region
        $region77: #{pyramid_conv_forward.1} parent=75 // pred_check
          %p453 = pneg %p42
        $region78: #{pyramid_conv_forward.1} parent=75 // pred_check_branch
          %455 = sbr.rel (%p453) target = $region80
        $region79: #{pyramid_conv_forward.1} parent=75 // pred_region
          %s456 = sand.u32 %s32, 1
          %s457 = sand.u32 %s32, 1
          %s458 = smul.addr %s457, 64
          %s459 = scalar_lea.vmem [#allocation3], %s458
          %s460 = smul.addr %s22, 8
          %s461 = scalar_lea.vmem %s0, %s460
          // Predicated region
          $region81: #{pyramid_conv_forward.1} parent=79 // pred_check
            _
          $region82: #{pyramid_conv_forward.1} parent=79 // pred_check_branch
            %463 = sbr.rel (0) target = $region84
          $region83: #{pyramid_conv_forward.1} parent=79 // pred_region
            // Predicated region
            $region85: #{pyramid_conv_forward.1} parent=83 // pred_check
              _
            $region86: #{pyramid_conv_forward.1} parent=83 // pred_check_branch
              %465 = sbr.rel (0) target = $region88
            $region87: #{pyramid_conv_forward.1} parent=83 // pred_region
              // Predicated region
              $region100: #{pyramid_conv_forward.1} parent=87 // pred_check
                _
              $region101: #{pyramid_conv_forward.1} parent=87 // pred_check_branch
                %495 = sbr.rel (0) target = $region103
              $region102: #{pyramid_conv_forward.1} parent=87 // pred_region
                loop: start=0, step=1, limit=1
                $region104: #{pyramid_conv_forward.1} parent=102 // loop_pre_header
                  _
                $region105: #{pyramid_conv_forward.1} parent=102 // loop_header
                  %s497 = sphi 0, %s501
                  %p498 = scmp.ge.s32.totalorder %s497, 1
                  %s502 = sphi %s461, %s461
                  %s503 = sphi %s459, %s459
                $region106: #{pyramid_conv_forward.1} parent=102 // loop_header_branch
                  %500 = sbr.rel (%p498) target = $region110
                $region107: #{pyramid_conv_forward.1} parent=102 // loop_body
                  %v504 = vld [vmem:[%s502] sm:$0xff]
                  %505 = vst [vmem:[%s503] sm:$0xff] %v504
                  %v506 = vld [vmem:[%s502 + $0x10] sm:$0xff]
                  %507 = vst [vmem:[%s503 + $0x8] sm:$0xff] %v506
                  %v508 = vld [vmem:[%s502 + $0x20] sm:$0xff]
                  %509 = vst [vmem:[%s503 + $0x10] sm:$0xff] %v508
                  %v510 = vld [vmem:[%s502 + $0x30] sm:$0xff]
                  %511 = vst [vmem:[%s503 + $0x18] sm:$0xff] %v510
                  %v512 = vld [vmem:[%s502 + $0x40] sm:$0xff]
                  %513 = vst [vmem:[%s503 + $0x20] sm:$0xff] %v512
                  %v514 = vld [vmem:[%s502 + $0x50] sm:$0xff]
                  %515 = vst [vmem:[%s503 + $0x28] sm:$0xff] %v514
                  %v516 = vld [vmem:[%s502 + $0x60] sm:$0xff]
                  %517 = vst [vmem:[%s503 + $0x30] sm:$0xff] %v516
                  %v518 = vld [vmem:[%s502 + $0x70] sm:$0xff]
                  %519 = vst [vmem:[%s503 + $0x38] sm:$0xff] %v518
                $region108: #{pyramid_conv_forward.1} parent=102 // loop_footer
                  %s501 = sadd.s32 1, %s497
                $region109: #{pyramid_conv_forward.1} parent=102 // loop_footer_branch
                  %496 = sbr.rel target = $region105
                $region110: #{pyramid_conv_forward.1} parent=102 // loop_exit
                  _
              $region103: #{pyramid_conv_forward.1} parent=87 // pred_fallthru
                _
              // Predicated region
              $region111: #{pyramid_conv_forward.1} parent=87 // pred_check
                _
              $region112: #{pyramid_conv_forward.1} parent=87 // pred_check_branch
                %521 = sbr.rel target = $region114
              $region113: #{pyramid_conv_forward.1} parent=87 // pred_region
                _
              $region114: #{pyramid_conv_forward.1} parent=87 // pred_fallthru
                _
            $region88: #{pyramid_conv_forward.1} parent=83 // pred_fallthru
              _
            // Predicated region
            $region89: #{pyramid_conv_forward.1} parent=83 // pred_check
              _
            $region90: #{pyramid_conv_forward.1} parent=83 // pred_check_branch
              %467 = sbr.rel target = $region92
            $region91: #{pyramid_conv_forward.1} parent=83 // pred_region
              %s469 = ssub.s32 256, 1
              loop: start=0, step=1, limit=1
              $region93: #{pyramid_conv_forward.1} parent=91 // loop_pre_header
                _
              $region94: #{pyramid_conv_forward.1} parent=91 // loop_header
                %s471 = sphi 0, %s475
                %p472 = scmp.ge.s32.totalorder %s471, 1
                %s476 = sphi %s461, %s461
                %s477 = sphi %s459, %s459
              $region95: #{pyramid_conv_forward.1} parent=91 // loop_header_branch
                %474 = sbr.rel (%p472) target = $region99
              $region96: #{pyramid_conv_forward.1} parent=91 // loop_body
                %v478 = vld [vmem:[%s476] sm:%s469]
                %479 = vst [vmem:[%s477] sm:%s469] %v478
                %v480 = vld [vmem:[%s476 + $0x10] sm:%s469]
                %481 = vst [vmem:[%s477 + $0x8] sm:%s469] %v480
                %v482 = vld [vmem:[%s476 + $0x20] sm:%s469]
                %483 = vst [vmem:[%s477 + $0x10] sm:%s469] %v482
                %v484 = vld [vmem:[%s476 + $0x30] sm:%s469]
                %485 = vst [vmem:[%s477 + $0x18] sm:%s469] %v484
                %v486 = vld [vmem:[%s476 + $0x40] sm:%s469]
                %487 = vst [vmem:[%s477 + $0x20] sm:%s469] %v486
                %v488 = vld [vmem:[%s476 + $0x50] sm:%s469]
                %489 = vst [vmem:[%s477 + $0x28] sm:%s469] %v488
                %v490 = vld [vmem:[%s476 + $0x60] sm:%s469]
                %491 = vst [vmem:[%s477 + $0x30] sm:%s469] %v490
                %v492 = vld [vmem:[%s476 + $0x70] sm:%s469]
                %493 = vst [vmem:[%s477 + $0x38] sm:%s469] %v492
              $region97: #{pyramid_conv_forward.1} parent=91 // loop_footer
                %s475 = sadd.s32 1, %s471
              $region98: #{pyramid_conv_forward.1} parent=91 // loop_footer_branch
                %470 = sbr.rel target = $region94
              $region99: #{pyramid_conv_forward.1} parent=91 // loop_exit
                _
            $region92: #{pyramid_conv_forward.1} parent=83 // pred_fallthru
              _
          $region84: #{pyramid_conv_forward.1} parent=79 // pred_fallthru
            _
          %522 = vnop
        $region80: #{pyramid_conv_forward.1} parent=75 // pred_fallthru
          _
      $region76: #{pyramid_conv_forward.1} parent=5 // pred_fallthru
        _
      %p523 = scmp.le.s32.totalorder 1, %s22
      %p524 = scmp.lt.s32.totalorder %s22, 3
      %p525 = pnand %p523, %p524
      %p526 = pneg %p525
      // Predicated region
      $region115: #{pyramid_conv_forward.1} parent=5 // pred_check
        _
      $region116: #{pyramid_conv_forward.1} parent=5 // pred_check_branch
        %528 = sbr.rel (%p525) target = $region118
      $region117: #{pyramid_conv_forward.1} parent=5 // pred_region
        %s529 = ssub.s32 %s22, 1
        %s530 = sand.u32 %s35, 1
        %s531 = sand.u32 %s35, 1
        %s532 = smul.addr %s531, 64
        %s533 = scalar_lea.vmem [#allocation3], %s532
        // Predicated region
        $region119: #{pyramid_conv_forward.1} parent=117 // pred_check
          %p534 = pneg %p48
        $region120: #{pyramid_conv_forward.1} parent=117 // pred_check_branch
          %536 = sbr.rel (%p534) target = $region122
        $region121: #{pyramid_conv_forward.1} parent=117 // pred_region
          _
        $region122: #{pyramid_conv_forward.1} parent=117 // pred_fallthru
          _
        %s537 = sand.u32 %s35, 1
        %s538 = sand.u32 %s35, 1
        %s539 = smul.addr %s538, 64
        %s540 = scalar_lea.vmem [#allocation3], %s539
        %p541 = pneg %p48
        %p542 = pneg %p45
        %p543 = pneg %p69
        %p544 = pneg %p66
        %p545 = pneg %p90
        %p546 = pneg %p87
        %p547 = pneg %p111
        %p548 = pneg %p108
        %p549 = pneg %p132
        %p550 = pneg %p129
        %p551 = pneg %p153
        %p552 = pneg %p150
        %p553 = pneg %p174
        %p554 = pneg %p171
        %p555 = pneg %p195
        %p556 = pneg %p192
        %p557 = pneg %p216
        %p558 = pneg %p213
        %p559 = pneg %p237
        %p560 = pneg %p234
        %p561 = pneg %p258
        %p562 = pneg %p255
        %p563 = pneg %p279
        %p564 = pneg %p276
        %p565 = pneg %p300
        %p566 = pneg %p297
        %p567 = pneg %p321
        %p568 = pneg %p318
        %p569 = pneg %p342
        %p570 = pneg %p339
        %p571 = pneg %p363
        %p572 = pneg %p360
        %p573 = pneg %p389
        %p574 = pneg %p386
        %p575 = scmp.lt.s32.totalorder %s27, 1
        %s576 = scalar_select %p575, %s27, 1
        %s577 = smul.addr %s576, 8
        %s578 = scalar_lea.vmem %s16, %s577
        %p579 = scmp.lt.s32.totalorder %s27, 1
        %s580 = scalar_select %p579, %s27, 1
        %s581 = smul.addr %s580, 8
        %s582 = scalar_lea.vmem %s16, %s581
        %v584 = vld [vmem:[%s533] sm:$0xff]
        %v585 = vld [vmem:[%s533 + $0x8] sm:$0xff]
        %v586 = vld [vmem:[%s533 + $0x10] sm:$0xff]
        %v587 = vld [vmem:[%s533 + $0x18] sm:$0xff]
        %v588 = vld [vmem:[%s533 + $0x20] sm:$0xff]
        %v589 = vld [vmem:[%s533 + $0x28] sm:$0xff]
        %v590 = vld [vmem:[%s533 + $0x30] sm:$0xff]
        %v591 = vld [vmem:[%s533 + $0x38] sm:$0xff]
        %v592 = vpack.c.bf16 %v585, %v584
        %v593 = vpack.c.bf16 %v587, %v586
        %v594 = vpack.c.bf16 %v589, %v588
        %v595 = vpack.c.bf16 %v591, %v590
        %v596 = vld [vmem:[%s1] sm:$0xf]
        %v597 = vld [vmem:[%s2] sm:$0x1]
        %v599 = vlaneseq
        %v600 = vshrl.u32 %v599, 7
        %v601 = vsub.s32 0, %v600
        %v602 = vrot.slane %v597, %v601
        %vm604 = vcmask 64512
        %v606 = vsel %vm604, %v592, 0
        %v609 = vsel %vm604, %v593, 0
        %v612 = vsel %vm604, %v594, 0
        %v615 = vsel %vm604, %v595, 0
        %vm617 = vcmask 1043456
        %v619 = vsel %vm617, %v596, 0
        %621 = vmatprep.subr.bf16.mxu0 0
        %622 = vmatpush1.bf16.msra.mxu0 0
        %623 = vmatprep.subr.bf16.mxu0 0
        %624 = vmatpush1.bf16.msra.mxu0 0
        %625 = vmatprep.subr.bf16.mxu0 0
        %626 = vmatpush1.bf16.msra.mxu0 0
        %627 = vmatprep.subr.bf16.mxu0 0
        %628 = vmatpush1.bf16.msra.mxu0 0
        %629 = vmatprep.subr.bf16.mxu0 0
        %630 = vmatpush1.bf16.msra.mxu0 0
        %631 = vmatprep.subr.bf16.mxu0 0
        %632 = vmatpush1.bf16.msra.mxu0 0
        %633 = vmatprep.subr.bf16.mxu0 0
        %634 = vmatpush1.bf16.msra.mxu0 0
        %635 = vmatprep.subr.bf16.mxu0 0
        %636 = vmatpush1.bf16.msra.mxu0 %v619
        %637 = vmatprep.subr.bf16.mxu0 0
        %638 = vmatpush2.bf16.msra.mxu0 0
        %639 = vmatprep.subr.bf16.mxu0 0
        %640 = vmatpush2.bf16.msra.mxu0 0
        %641 = vmatprep.subr.bf16.mxu0 0
        %642 = vmatpush2.bf16.msra.mxu0 0
        %643 = vmatprep.subr.bf16.mxu0 0
        %644 = vmatpush2.bf16.msra.mxu0 0
        %645 = vmatprep.subr.bf16.mxu0 0
        %646 = vmatpush2.bf16.msra.mxu0 0
        %647 = vmatprep.subr.bf16.mxu0 0
        %648 = vmatpush2.bf16.msra.mxu0 0
        %649 = vmatprep.subr.bf16.mxu0 0
        %650 = vmatpush2.bf16.msra.mxu0 0
        %651 = vmatprep.subr.bf16.mxu0 0
        %652 = vmatpush2.bf16.msra.mxu0 0
        %653 = vmatprep.mubr.bf16.mxu0 0
        %654 = vmatmul.mubr.bf16.gmra.mxu0 %v606
        %v655 = vpop.f32.mrf.mxu0
        %v656 = vadd.f32 %v602, %v655
        %v657 = vpop.f32.mrf.mxu0
        %v658 = vpop.f32.mrf.mxu0
        %v659 = vadd.f32 %v602, %v658
        %v660 = vpop.f32.mrf.mxu0
        %661 = vmatprep.mubr.bf16.mxu0 0
        %662 = vmatmul.mubr.bf16.gmra.mxu0 %v609
        %v663 = vpop.f32.mrf.mxu0
        %v664 = vadd.f32 %v602, %v663
        %v665 = vpop.f32.mrf.mxu0
        %v666 = vpop.f32.mrf.mxu0
        %v667 = vadd.f32 %v602, %v666
        %v668 = vpop.f32.mrf.mxu0
        %669 = vmatprep.mubr.bf16.mxu0 0
        %670 = vmatmul.mubr.bf16.gmra.mxu0 %v612
        %v671 = vpop.f32.mrf.mxu0
        %v672 = vadd.f32 %v602, %v671
        %v673 = vpop.f32.mrf.mxu0
        %v674 = vpop.f32.mrf.mxu0
        %v675 = vadd.f32 %v602, %v674
        %v676 = vpop.f32.mrf.mxu0
        %677 = vmatprep.mubr.bf16.mxu0 0
        %678 = vmatmul.mubr.bf16.gmra.mxu0 %v615
        %v679 = vpop.f32.mrf.mxu0
        %v680 = vadd.f32 %v602, %v679
        %v681 = vpop.f32.mrf.mxu0
        %v682 = vpop.f32.mrf.mxu0
        %v683 = vadd.f32 %v602, %v682
        %v684 = vpop.f32.mrf.mxu0
        %685 = vdwg.mxu0
        %693 = vrot.lane.b32.xlu0 0.0, 64
        %v694 = vpop.permute.xlu0 %693
        %695 = vrot.lane.b32.xlu0 %v656, 64
        %v696 = vpop.permute.xlu0 %695
        %697 = vrot.lane.b32.xlu0 %v659, 64
        %v698 = vpop.permute.xlu0 %697
        %699 = vrot.lane.b32.xlu0 %v664, 64
        %v700 = vpop.permute.xlu0 %699
        %701 = vrot.lane.b32.xlu0 %v667, 64
        %v702 = vpop.permute.xlu0 %701
        %703 = vrot.lane.b32.xlu0 %v672, 64
        %v704 = vpop.permute.xlu0 %703
        %705 = vrot.lane.b32.xlu0 %v675, 64
        %v706 = vpop.permute.xlu0 %705
        %716 = vrot.lane.b32.xlu0 %v680, 64
        %v717 = vpop.permute.xlu0 %716
        %718 = vrot.lane.b32.xlu0 %v683, 64
        %v719 = vpop.permute.xlu0 %718
        %vm722 = vcmask 523264
        %v723 = vsel %vm722, 0.0, %v694
        %v724 = vsel %vm722, 0.0, %v696
        %v725 = vsel %vm722, %v656, %v698
        %v726 = vsel %vm722, %v659, %v700
        %v727 = vsel %vm722, %v664, %v702
        %v728 = vsel %vm722, %v667, %v704
        %v729 = vsel %vm722, %v672, %v706
        %v730 = vsel %vm722, %v675, %v717
        %v731 = vsel %vm722, %v680, %v719
        %v732 = vsel %vm722, %v683, %v694
        %v733 = vpack.c.bf16 %v723, %v723
        %v734 = vpack.c.bf16 %v725, %v724
        %v735 = vpack.c.bf16 %v727, %v726
        %v736 = vpack.c.bf16 %v672, %v667
        %v737 = vpack.c.bf16 %v729, %v728
        %v738 = vpack.c.bf16 %v680, %v675
        %v739 = vpack.c.bf16 %v731, %v730
        %v740 = vpack.c.bf16 0.0, %v683
        %v741 = vpack.c.bf16 %v723, %v732
        %v742 = vpack.c.bf16 0.0, 0.0
        %v743 = vld [vmem:[%s3] sm:$0xf]
        %v744 = vld [vmem:[%s3 + $0x4] sm:$0xf]
        %v745 = vld [vmem:[%s3 + $0x8] sm:$0xf]
        %v746 = vld [vmem:[%s3 + $0xc] sm:$0xf]
        %v747 = vld [vmem:[%s3 + $0x10] sm:$0xf]
        %v748 = vld [vmem:[%s3 + $0x14] sm:$0xf]
        %v749 = vld [vmem:[%s3 + $0x18] sm:$0xf]
        %v750 = vld [vmem:[%s3 + $0x1c] sm:$0xf]
        %v751 = vld [vmem:[%s3 + $0x20] sm:$0xf]
        %v752 = vld [vmem:[%s3 + $0x24] sm:$0xf]
        %v753 = vld [vmem:[%s3 + $0x28] sm:$0xf]
        %v754 = vld [vmem:[%s3 + $0x2c] sm:$0xf]
        %v755 = vld [vmem:[%s3 + $0x30] sm:$0xf]
        %v756 = vld [vmem:[%s3 + $0x34] sm:$0xf]
        %v757 = vld [vmem:[%s3 + $0x38] sm:$0xf]
        %v758 = vld [vmem:[%s3 + $0x3c] sm:$0xf]
        %v759 = vld [vmem:[%s3 + $0x40] sm:$0xf]
        %v760 = vld [vmem:[%s3 + $0x44] sm:$0xf]
        %v761 = vld [vmem:[%s3 + $0x48] sm:$0xf]
        %v762 = vld [vmem:[%s3 + $0x4c] sm:$0xf]
        %v763 = vld [vmem:[%s3 + $0x50] sm:$0xf]
        %v764 = vld [vmem:[%s3 + $0x54] sm:$0xf]
        %v765 = vld [vmem:[%s3 + $0x58] sm:$0xf]
        %v766 = vld [vmem:[%s3 + $0x5c] sm:$0xf]
        %v767 = vld [vmem:[%s3 + $0x60] sm:$0xf]
        %v768 = vld [vmem:[%s3 + $0x64] sm:$0xf]
        %v769 = vld [vmem:[%s3 + $0x68] sm:$0xf]
        %v770 = vld [vmem:[%s3 + $0x6c] sm:$0xf]
        %v771 = vld [vmem:[%s3 + $0x70] sm:$0xf]
        %v772 = vld [vmem:[%s3 + $0x74] sm:$0xf]
        %v773 = vld [vmem:[%s3 + $0x78] sm:$0xf]
        %v774 = vld [vmem:[%s3 + $0x7c] sm:$0xf]
        %v775 = vld [vmem:[%s3 + $0x80] sm:$0xf]
        %v776 = vld [vmem:[%s3 + $0x84] sm:$0xf]
        %v777 = vld [vmem:[%s3 + $0x88] sm:$0xf]
        %v778 = vld [vmem:[%s3 + $0x8c] sm:$0xf]
        %v779 = vld [vmem:[%s3 + $0x90] sm:$0xf]
        %v780 = vld [vmem:[%s3 + $0x94] sm:$0xf]
        %v781 = vld [vmem:[%s3 + $0x98] sm:$0xf]
        %v782 = vld [vmem:[%s3 + $0x9c] sm:$0xf]
        %v783 = vld [vmem:[%s3 + $0xa0] sm:$0xf]
        %v784 = vld [vmem:[%s3 + $0xa4] sm:$0xf]
        %v785 = vld [vmem:[%s3 + $0xa8] sm:$0xf]
        %v786 = vld [vmem:[%s3 + $0xac] sm:$0xf]
        %v787 = vld [vmem:[%s3 + $0xb0] sm:$0xf]
        %v788 = vld [vmem:[%s3 + $0xb4] sm:$0xf]
        %v789 = vld [vmem:[%s3 + $0xb8] sm:$0xf]
        %v790 = vld [vmem:[%s3 + $0xbc] sm:$0xf]
        %v791 = vld [vmem:[%s3 + $0xc0] sm:$0xf]
        %v792 = vld [vmem:[%s3 + $0xc4] sm:$0xf]
        %v793 = vld [vmem:[%s3 + $0xc8] sm:$0xf]
        %v794 = vld [vmem:[%s3 + $0xcc] sm:$0xf]
        %v795 = vld [vmem:[%s3 + $0xd0] sm:$0xf]
        %v796 = vld [vmem:[%s3 + $0xd4] sm:$0xf]
        %v797 = vld [vmem:[%s3 + $0xd8] sm:$0xf]
        %v798 = vld [vmem:[%s3 + $0xdc] sm:$0xf]
        %v799 = vld [vmem:[%s4] sm:$0x1]
        %v801 = vlaneseq
        %v802 = vshrl.u32 %v801, 7
        %v803 = vsub.s32 0, %v802
        %v804 = vrot.slane %v799, %v803
        %v862 = vunpack.c.l.b16 %v743
        %v863 = vunpack.c.l.b16 %v744
        %v864 = vunpack.c.l.b16 %v745
        %v865 = vunpack.c.l.b16 %v746
        %v866 = vunpack.c.l.b16 %v747
        %v867 = vunpack.c.l.b16 %v748
        %v868 = vunpack.c.l.b16 %v749
        %v869 = vunpack.c.l.b16 %v750
        %v870 = vunpack.c.l.b16 %v751
        %v871 = vunpack.c.l.b16 %v752
        %v872 = vunpack.c.l.b16 %v753
        %v873 = vunpack.c.l.b16 %v754
        %v874 = vunpack.c.l.b16 %v755
        %v875 = vunpack.c.l.b16 %v756
        %v876 = vunpack.c.l.b16 %v757
        %v877 = vunpack.c.l.b16 %v758
        %v878 = vunpack.c.l.b16 %v759
        %v879 = vunpack.c.l.b16 %v760
        %v880 = vunpack.c.l.b16 %v761
        %v881 = vunpack.c.l.b16 %v762
        %v882 = vunpack.c.l.b16 %v763
        %v883 = vunpack.c.l.b16 %v764
        %v884 = vunpack.c.l.b16 %v765
        %v885 = vunpack.c.l.b16 %v766
        %v886 = vunpack.c.l.b16 %v767
        %v887 = vunpack.c.l.b16 %v768
        %v888 = vunpack.c.l.b16 %v769
        %v889 = vunpack.c.l.b16 %v770
        %v890 = vunpack.c.l.b16 %v771
        %v891 = vunpack.c.l.b16 %v772
        %v892 = vunpack.c.l.b16 %v773
        %v893 = vunpack.c.l.b16 %v774
        %v894 = vunpack.c.l.b16 %v775
        %v895 = vunpack.c.l.b16 %v776
        %v896 = vunpack.c.l.b16 %v777
        %v897 = vunpack.c.l.b16 %v778
        %v898 = vunpack.c.l.b16 %v779
        %v899 = vunpack.c.l.b16 %v780
        %v900 = vunpack.c.l.b16 %v781
        %v901 = vunpack.c.l.b16 %v782
        %v902 = vunpack.c.l.b16 %v783
        %v903 = vunpack.c.l.b16 %v784
        %v904 = vunpack.c.l.b16 %v785
        %v905 = vunpack.c.l.b16 %v786
        %v906 = vunpack.c.l.b16 %v787
        %v907 = vunpack.c.l.b16 %v788
        %v908 = vunpack.c.l.b16 %v789
        %v909 = vunpack.c.l.b16 %v790
        %v910 = vunpack.c.l.b16 %v791
        %v911 = vunpack.c.l.b16 %v792
        %v912 = vunpack.c.l.b16 %v793
        %v913 = vunpack.c.l.b16 %v794
        %v914 = vunpack.c.l.b16 %v795
        %v915 = vunpack.c.l.b16 %v796
        %v916 = vunpack.c.l.b16 %v797
        %v917 = vunpack.c.l.b16 %v798
        %v918 = vpack.c.b16 %v863, %v862
        %v919 = vpack.c.b16 %v865, %v864
        %v920 = vpack.c.b16 %v867, %v866
        %v921 = vpack.c.b16 %v869, %v868
        %v922 = vpack.c.b16 %v871, %v870
        %v923 = vpack.c.b16 %v873, %v872
        %v924 = vpack.c.b16 %v875, %v874
        %v925 = vpack.c.b16 %v877, %v876
        %v926 = vpack.c.b16 %v879, %v878
        %v927 = vpack.c.b16 %v881, %v880
        %v928 = vpack.c.b16 %v883, %v882
        %v929 = vpack.c.b16 %v885, %v884
        %v930 = vpack.c.b16 %v887, %v886
        %v931 = vpack.c.b16 %v889, %v888
        %v932 = vpack.c.b16 %v891, %v890
        %v933 = vpack.c.b16 %v893, %v892
        %v934 = vpack.c.b16 %v895, %v894
        %v935 = vpack.c.b16 %v897, %v896
        %v936 = vpack.c.b16 %v899, %v898
        %v937 = vpack.c.b16 %v901, %v900
        %v938 = vpack.c.b16 %v903, %v902
        %v939 = vpack.c.b16 %v905, %v904
        %v940 = vpack.c.b16 %v907, %v906
        %v941 = vpack.c.b16 %v909, %v908
        %v942 = vpack.c.b16 %v911, %v910
        %v943 = vpack.c.b16 %v913, %v912
        %v944 = vpack.c.b16 %v915, %v914
        %v945 = vpack.c.b16 %v917, %v916
        %v975 = vsel %vm722, %v736, 0
        %v978 = vsel %vm722, %v738, 0
        %v981 = vsel %vm722, %v740, 0
        %v984 = vsel %vm722, %v742, 0
        %986 = vmatprep.subr.bf16.mxu0 0
        %987 = vmatpush1.bf16.msra.mxu0 %v925
        %988 = vmatprep.subr.bf16.mxu0 0
        %989 = vmatpush1.bf16.msra.mxu0 %v924
        %990 = vmatprep.subr.bf16.mxu0 0
        %991 = vmatpush1.bf16.msra.mxu0 %v923
        %992 = vmatprep.subr.bf16.mxu0 0
        %993 = vmatpush1.bf16.msra.mxu0 %v922
        %994 = vmatprep.subr.bf16.mxu0 0
        %995 = vmatpush1.bf16.msra.mxu0 %v921
        %996 = vmatprep.subr.bf16.mxu0 0
        %997 = vmatpush1.bf16.msra.mxu0 %v920
        %998 = vmatprep.subr.bf16.mxu0 0
        %999 = vmatpush1.bf16.msra.mxu0 %v919
        %1000 = vmatprep.subr.bf16.mxu0 0
        %1001 = vmatpush1.bf16.msra.mxu0 %v918
        %1002 = vmatprep.subr.bf16.mxu0 0
        %1003 = vmatpush2.bf16.msra.mxu0 %v933
        %1004 = vmatprep.subr.bf16.mxu0 0
        %1005 = vmatpush2.bf16.msra.mxu0 %v932
        %1006 = vmatprep.subr.bf16.mxu0 0
        %1007 = vmatpush2.bf16.msra.mxu0 %v931
        %1008 = vmatprep.subr.bf16.mxu0 0
        %1009 = vmatpush2.bf16.msra.mxu0 %v930
        %1010 = vmatprep.subr.bf16.mxu0 0
        %1011 = vmatpush2.bf16.msra.mxu0 %v929
        %1012 = vmatprep.subr.bf16.mxu0 0
        %1013 = vmatpush2.bf16.msra.mxu0 %v928
        %1014 = vmatprep.subr.bf16.mxu0 0
        %1015 = vmatpush2.bf16.msra.mxu0 %v927
        %1016 = vmatprep.subr.bf16.mxu0 0
        %1017 = vmatpush2.bf16.msra.mxu0 %v926
        %1018 = vmatprep.mubr.bf16.mxu0 %v734
        %1019 = vmatmul.mubr.bf16.gmra.mxu0 %v733
        %v1020 = vpop.f32.mrf.mxu0
        %v1021 = vadd.f32 %v804, %v1020
        %v1022 = vpop.f32.mrf.mxu0
        %v1023 = vpop.f32.mrf.mxu0
        %v1024 = vadd.f32 %v804, %v1023
        %v1025 = vpop.f32.mrf.mxu0
        %1026 = vmatprep.mubr.bf16.mxu0 %v735
        %1027 = vmatmul.mubr.bf16.gmra.mxu0 %v734
        %v1028 = vpop.f32.mrf.mxu0
        %v1029 = vadd.f32 %v804, %v1028
        %v1030 = vpop.f32.mrf.mxu0
        %v1031 = vpop.f32.mrf.mxu0
        %v1032 = vadd.f32 %v804, %v1031
        %v1033 = vpop.f32.mrf.mxu0
        %1034 = vmatprep.mubr.bf16.mxu0 %v737
        %1035 = vmatmul.mubr.bf16.gmra.mxu0 %v735
        %v1036 = vpop.f32.mrf.mxu0
        %v1037 = vadd.f32 %v804, %v1036
        %v1038 = vpop.f32.mrf.mxu0
        %v1039 = vpop.f32.mrf.mxu0
        %v1040 = vadd.f32 %v804, %v1039
        %v1041 = vpop.f32.mrf.mxu0
        %1042 = vmatprep.mubr.bf16.mxu0 %v739
        %1043 = vmatmul.mubr.bf16.gmra.mxu0 %v737
        %v1044 = vpop.f32.mrf.mxu0
        %v1045 = vadd.f32 %v804, %v1044
        %v1046 = vpop.f32.mrf.mxu0
        %v1047 = vpop.f32.mrf.mxu0
        %v1048 = vadd.f32 %v804, %v1047
        %v1049 = vpop.f32.mrf.mxu0
        %1050 = vdwg.mxu0
        %1051 = vmatprep.subr.bf16.mxu0 0
        %1052 = vmatpush1.bf16.msra.mxu0 %v941
        %1053 = vmatprep.subr.bf16.mxu0 0
        %1054 = vmatpush1.bf16.msra.mxu0 %v940
        %1055 = vmatprep.subr.bf16.mxu0 0
        %1056 = vmatpush1.bf16.msra.mxu0 %v939
        %1057 = vmatprep.subr.bf16.mxu0 0
        %1058 = vmatpush1.bf16.msra.mxu0 %v938
        %1059 = vmatprep.subr.bf16.mxu0 0
        %1060 = vmatpush1.bf16.msra.mxu0 %v937
        %1061 = vmatprep.subr.bf16.mxu0 0
        %1062 = vmatpush1.bf16.msra.mxu0 %v936
        %1063 = vmatprep.subr.bf16.mxu0 0
        %1064 = vmatpush1.bf16.msra.mxu0 %v935
        %1065 = vmatprep.subr.bf16.mxu0 0
        %1066 = vmatpush1.bf16.msra.mxu0 %v934
        %1067 = vmatprep.subr.bf16.mxu0 0
        %1068 = vmatpush2.bf16.msra.mxu0 0
        %1069 = vmatprep.subr.bf16.mxu0 0
        %1070 = vmatpush2.bf16.msra.mxu0 0
        %1071 = vmatprep.subr.bf16.mxu0 0
        %1072 = vmatpush2.bf16.msra.mxu0 0
        %1073 = vmatprep.subr.bf16.mxu0 0
        %1074 = vmatpush2.bf16.msra.mxu0 0
        %1075 = vmatprep.subr.bf16.mxu0 0
        %1076 = vmatpush2.bf16.msra.mxu0 %v945
        %1077 = vmatprep.subr.bf16.mxu0 0
        %1078 = vmatpush2.bf16.msra.mxu0 %v944
        %1079 = vmatprep.subr.bf16.mxu0 0
        %1080 = vmatpush2.bf16.msra.mxu0 %v943
        %1081 = vmatprep.subr.bf16.mxu0 0
        %1082 = vmatpush2.bf16.msra.mxu0 %v942
        %1083 = vmatprep.mubr.bf16.mxu0 %v975
        %1084 = vmatmul.mubr.bf16.gmra.mxu0 %v735
        %v1085 = vpop.f32.mrf.mxu0
        %v1086 = vadd.f32 %v1021, %v1085
        %v1087 = vpop.f32.mrf.mxu0
        %v1088 = vpop.f32.mrf.mxu0
        %v1089 = vadd.f32 %v1024, %v1088
        %v1090 = vpop.f32.mrf.mxu0
        %1091 = vmatprep.mubr.bf16.mxu0 %v978
        %1092 = vmatmul.mubr.bf16.gmra.mxu0 %v737
        %v1093 = vpop.f32.mrf.mxu0
        %v1094 = vadd.f32 %v1029, %v1093
        %v1095 = vpop.f32.mrf.mxu0
        %v1096 = vpop.f32.mrf.mxu0
        %v1097 = vadd.f32 %v1032, %v1096
        %v1098 = vpop.f32.mrf.mxu0
        %1099 = vmatprep.mubr.bf16.mxu0 %v981
        %1100 = vmatmul.mubr.bf16.gmra.mxu0 %v739
        %v1101 = vpop.f32.mrf.mxu0
        %v1102 = vadd.f32 %v1037, %v1101
        %v1103 = vpop.f32.mrf.mxu0
        %v1104 = vpop.f32.mrf.mxu0
        %v1105 = vadd.f32 %v1040, %v1104
        %v1106 = vpop.f32.mrf.mxu0
        %1107 = vmatprep.mubr.bf16.mxu0 %v984
        %1108 = vmatmul.mubr.bf16.gmra.mxu0 %v741
        %v1109 = vpop.f32.mrf.mxu0
        %v1110 = vadd.f32 %v1045, %v1109
        %v1111 = vpop.f32.mrf.mxu0
        %v1112 = vpop.f32.mrf.mxu0
        %v1113 = vadd.f32 %v1048, %v1112
        %v1114 = vpop.f32.mrf.mxu0
        %1115 = vdwg.mxu0
        %v1116 = vmax.f32 %v1086, 0.0
        %v1117 = vmax.f32 %v1089, 0.0
        %v1118 = vmax.f32 %v1094, 0.0
        %v1119 = vmax.f32 %v1097, 0.0
        %v1120 = vmax.f32 %v1102, 0.0
        %v1121 = vmax.f32 %v1105, 0.0
        %v1122 = vmax.f32 %v1110, 0.0
        %v1123 = vmax.f32 %v1113, 0.0
        %v1124 = vpack.c.bf16 %v1117, %v1116
        %v1125 = vpack.c.bf16 %v1119, %v1118
        %v1126 = vpack.c.bf16 %v1121, %v1120
        %v1127 = vpack.c.bf16 %v1123, %v1122
        %v1128 = vld [vmem:[%s5] sm:$0xf]
        %v1129 = vld [vmem:[%s5 + $0x4] sm:$0xf]
        %v1130 = vld [vmem:[%s5 + $0x8] sm:$0xf]
        %v1131 = vld [vmem:[%s5 + $0xc] sm:$0xf]
        %v1132 = vld [vmem:[%s5 + $0x10] sm:$0xf]
        %v1133 = vld [vmem:[%s5 + $0x14] sm:$0xf]
        %v1134 = vld [vmem:[%s5 + $0x18] sm:$0xf]
        %v1135 = vld [vmem:[%s5 + $0x1c] sm:$0xf]
        %v1136 = vld [vmem:[%s5 + $0x20] sm:$0xf]
        %v1137 = vld [vmem:[%s5 + $0x24] sm:$0xf]
        %v1138 = vld [vmem:[%s5 + $0x28] sm:$0xf]
        %v1139 = vld [vmem:[%s5 + $0x2c] sm:$0xf]
        %v1140 = vld [vmem:[%s5 + $0x30] sm:$0xf]
        %v1141 = vld [vmem:[%s5 + $0x34] sm:$0xf]
        %v1142 = vld [vmem:[%s5 + $0x38] sm:$0xf]
        %v1143 = vld [vmem:[%s5 + $0x3c] sm:$0xf]
        %v1144 = vld [vmem:[%s6] sm:$0x1]
        %v1146 = vlaneseq
        %v1147 = vshrl.u32 %v1146, 7
        %v1148 = vsub.s32 0, %v1147
        %v1149 = vrot.slane %v1144, %v1148
        %v1167 = vunpack.c.l.b16 %v1128
        %v1168 = vunpack.c.l.b16 %v1129
        %v1169 = vunpack.c.l.b16 %v1130
        %v1170 = vunpack.c.l.b16 %v1131
        %v1171 = vunpack.c.l.b16 %v1132
        %v1172 = vunpack.c.l.b16 %v1133
        %v1173 = vunpack.c.l.b16 %v1134
        %v1174 = vunpack.c.l.b16 %v1135
        %v1175 = vunpack.c.l.b16 %v1136
        %v1176 = vunpack.c.l.b16 %v1137
        %v1177 = vunpack.c.l.b16 %v1138
        %v1178 = vunpack.c.l.b16 %v1139
        %v1179 = vunpack.c.l.b16 %v1140
        %v1180 = vunpack.c.l.b16 %v1141
        %v1181 = vunpack.c.l.b16 %v1142
        %v1182 = vunpack.c.l.b16 %v1143
        %v1183 = vpack.c.b16 %v1168, %v1167
        %v1184 = vpack.c.b16 %v1170, %v1169
        %v1185 = vpack.c.b16 %v1172, %v1171
        %v1186 = vpack.c.b16 %v1174, %v1173
        %v1187 = vpack.c.b16 %v1176, %v1175
        %v1188 = vpack.c.b16 %v1178, %v1177
        %v1189 = vpack.c.b16 %v1180, %v1179
        %v1190 = vpack.c.b16 %v1182, %v1181
        %1199 = vmatprep.subr.bf16.mxu0 0
        %1200 = vmatpush1.bf16.msra.mxu0 %v1190
        %1201 = vmatprep.subr.bf16.mxu0 0
        %1202 = vmatpush1.bf16.msra.mxu0 %v1189
        %1203 = vmatprep.subr.bf16.mxu0 0
        %1204 = vmatpush1.bf16.msra.mxu0 %v1188
        %1205 = vmatprep.subr.bf16.mxu0 0
        %1206 = vmatpush1.bf16.msra.mxu0 %v1187
        %1207 = vmatprep.subr.bf16.mxu0 0
        %1208 = vmatpush1.bf16.msra.mxu0 %v1186
        %1209 = vmatprep.subr.bf16.mxu0 0
        %1210 = vmatpush1.bf16.msra.mxu0 %v1185
        %1211 = vmatprep.subr.bf16.mxu0 0
        %1212 = vmatpush1.bf16.msra.mxu0 %v1184
        %1213 = vmatprep.subr.bf16.mxu0 0
        %1214 = vmatpush1.bf16.msra.mxu0 %v1183
        %1215 = vmatprep.subr.bf16.mxu0 0
        %1216 = vmatpush2.bf16.msra.mxu0 0
        %1217 = vmatprep.subr.bf16.mxu0 0
        %1218 = vmatpush2.bf16.msra.mxu0 0
        %1219 = vmatprep.subr.bf16.mxu0 0
        %1220 = vmatpush2.bf16.msra.mxu0 0
        %1221 = vmatprep.subr.bf16.mxu0 0
        %1222 = vmatpush2.bf16.msra.mxu0 0
        %1223 = vmatprep.subr.bf16.mxu0 0
        %1224 = vmatpush2.bf16.msra.mxu0 0
        %1225 = vmatprep.subr.bf16.mxu0 0
        %1226 = vmatpush2.bf16.msra.mxu0 0
        %1227 = vmatprep.subr.bf16.mxu0 0
        %1228 = vmatpush2.bf16.msra.mxu0 0
        %1229 = vmatprep.subr.bf16.mxu0 0
        %1230 = vmatpush2.bf16.msra.mxu0 0
        %1231 = vmatprep.mubr.bf16.mxu0 0
        %1232 = vmatmul.mubr.bf16.gmra.mxu0 %v1124
        %v1233 = vpop.f32.mrf.mxu0
        %v1234 = vadd.f32 %v1149, %v1233
        %v1235 = vpop.f32.mrf.mxu0
        %v1236 = vpop.f32.mrf.mxu0
        %v1237 = vadd.f32 %v1149, %v1236
        %v1238 = vpop.f32.mrf.mxu0
        %1239 = vmatprep.mubr.bf16.mxu0 0
        %1240 = vmatmul.mubr.bf16.gmra.mxu0 %v1125
        %v1241 = vpop.f32.mrf.mxu0
        %v1242 = vadd.f32 %v1149, %v1241
        %v1243 = vpop.f32.mrf.mxu0
        %v1244 = vpop.f32.mrf.mxu0
        %v1245 = vadd.f32 %v1149, %v1244
        %v1246 = vpop.f32.mrf.mxu0
        %1247 = vmatprep.mubr.bf16.mxu0 0
        %1248 = vmatmul.mubr.bf16.gmra.mxu0 %v1126
        %v1249 = vpop.f32.mrf.mxu0
        %v1250 = vadd.f32 %v1149, %v1249
        %v1251 = vpop.f32.mrf.mxu0
        %v1252 = vpop.f32.mrf.mxu0
        %v1253 = vadd.f32 %v1149, %v1252
        %v1254 = vpop.f32.mrf.mxu0
        %1255 = vmatprep.mubr.bf16.mxu0 0
        %1256 = vmatmul.mubr.bf16.gmra.mxu0 %v1127
        %v1257 = vpop.f32.mrf.mxu0
        %v1258 = vadd.f32 %v1149, %v1257
        %v1259 = vpop.f32.mrf.mxu0
        %v1260 = vpop.f32.mrf.mxu0
        %v1261 = vadd.f32 %v1149, %v1260
        %v1262 = vpop.f32.mrf.mxu0
        %1263 = vdwg.mxu0
        %v1264 = vpack.c.bf16 %v1237, %v1234
        %v1265 = vpack.c.bf16 %v1245, %v1242
        %v1266 = vpack.c.bf16 %v1253, %v1250
        %v1267 = vpack.c.bf16 %v1261, %v1258
        %v1268 = vld [vmem:[%s7] sm:$0xff]
        %v1269 = vld [vmem:[%s7 + $0x8] sm:$0xff]
        %v1270 = vld [vmem:[%s7 + $0x10] sm:$0xff]
        %v1271 = vld [vmem:[%s7 + $0x18] sm:$0xff]
        %v1272 = vld [vmem:[%s7 + $0x20] sm:$0xff]
        %v1273 = vld [vmem:[%s7 + $0x28] sm:$0xff]
        %v1274 = vld [vmem:[%s7 + $0x30] sm:$0xff]
        %v1275 = vld [vmem:[%s7 + $0x38] sm:$0xff]
        %v1276 = vld [vmem:[%s7 + $0x40] sm:$0xff]
        %v1277 = vld [vmem:[%s7 + $0x48] sm:$0xff]
        %v1278 = vld [vmem:[%s7 + $0x50] sm:$0xff]
        %v1279 = vld [vmem:[%s7 + $0x58] sm:$0xff]
        %v1280 = vld [vmem:[%s7 + $0x60] sm:$0xff]
        %v1281 = vld [vmem:[%s7 + $0x68] sm:$0xff]
        %v1282 = vld [vmem:[%s7 + $0x70] sm:$0xff]
        %v1283 = vld [vmem:[%s7 + $0x78] sm:$0xff]
        %v1284 = vld [vmem:[%s9] sm:$0xf]
        %v1286 = vlaneseq
        %v1287 = vshrl.u32 %v1286, 7
        %v1288 = vsub.s32 0, %v1287
        %v1289 = vrot.slane %v1284, %v1288
        %v1290 = vlaneseq
        %v1291 = vshrl.u32 %v1290, 7
        %v1292 = vsub.s32 1, %v1291
        %v1293 = vrot.slane %v1284, %v1292
        %v1294 = vlaneseq
        %v1295 = vshrl.u32 %v1294, 7
        %v1296 = vsub.s32 2, %v1295
        %v1297 = vrot.slane %v1284, %v1296
        %v1298 = vlaneseq
        %v1299 = vshrl.u32 %v1298, 7
        %v1300 = vsub.s32 3, %v1299
        %v1301 = vrot.slane %v1284, %v1300
        %v1322 = vunpack.c.l.b16 %v1268
        %v1323 = vunpack.c.h.b16 %v1268
        %v1324 = vunpack.c.l.b16 %v1269
        %v1325 = vunpack.c.h.b16 %v1269
        %v1326 = vunpack.c.l.b16 %v1270
        %v1327 = vunpack.c.h.b16 %v1270
        %v1328 = vunpack.c.l.b16 %v1271
        %v1329 = vunpack.c.h.b16 %v1271
        %v1330 = vunpack.c.l.b16 %v1272
        %v1331 = vunpack.c.h.b16 %v1272
        %v1332 = vunpack.c.l.b16 %v1273
        %v1333 = vunpack.c.h.b16 %v1273
        %v1334 = vunpack.c.l.b16 %v1274
        %v1335 = vunpack.c.h.b16 %v1274
        %v1336 = vunpack.c.l.b16 %v1275
        %v1337 = vunpack.c.h.b16 %v1275
        %v1338 = vunpack.c.l.b16 %v1276
        %v1339 = vunpack.c.h.b16 %v1276
        %v1340 = vunpack.c.l.b16 %v1277
        %v1341 = vunpack.c.h.b16 %v1277
        %v1342 = vunpack.c.l.b16 %v1278
        %v1343 = vunpack.c.h.b16 %v1278
        %v1344 = vunpack.c.l.b16 %v1279
        %v1345 = vunpack.c.h.b16 %v1279
        %v1346 = vunpack.c.l.b16 %v1280
        %v1347 = vunpack.c.h.b16 %v1280
        %v1348 = vunpack.c.l.b16 %v1281
        %v1349 = vunpack.c.h.b16 %v1281
        %v1350 = vunpack.c.l.b16 %v1282
        %v1351 = vunpack.c.h.b16 %v1282
        %v1352 = vunpack.c.l.b16 %v1283
        %v1353 = vunpack.c.h.b16 %v1283
        %v1354 = vpack.c.b16 %v1326, %v1322
        %v1355 = vpack.c.b16 %v1327, %v1323
        %v1356 = vpack.c.b16 %v1328, %v1324
        %v1357 = vpack.c.b16 %v1329, %v1325
        %v1358 = vpack.c.b16 %v1334, %v1330
        %v1359 = vpack.c.b16 %v1335, %v1331
        %v1360 = vpack.c.b16 %v1336, %v1332
        %v1361 = vpack.c.b16 %v1337, %v1333
        %v1362 = vpack.c.b16 %v1342, %v1338
        %v1363 = vpack.c.b16 %v1343, %v1339
        %v1364 = vpack.c.b16 %v1344, %v1340
        %v1365 = vpack.c.b16 %v1345, %v1341
        %v1366 = vpack.c.b16 %v1350, %v1346
        %v1367 = vpack.c.b16 %v1351, %v1347
        %v1368 = vpack.c.b16 %v1352, %v1348
        %v1369 = vpack.c.b16 %v1353, %v1349
        %v1387 = vsel %vm722, %v1264, 0
        %v1390 = vsel %vm722, %v1265, 0
        %v1393 = vsel %vm722, %v1266, 0
        %v1396 = vsel %vm722, %v1267, 0
        %1398 = vmatprep.subr.bf16.mxu0 0
        %1399 = vmatpush1.bf16.msra.mxu0 0
        %1400 = vmatprep.subr.bf16.mxu0 0
        %1401 = vmatpush1.bf16.msra.mxu0 0
        %1402 = vmatprep.subr.bf16.mxu0 0
        %1403 = vmatpush1.bf16.msra.mxu0 0
        %1404 = vmatprep.subr.bf16.mxu0 0
        %1405 = vmatpush1.bf16.msra.mxu0 0
        %1406 = vmatprep.subr.bf16.mxu0 %v1367
        %1407 = vmatpush1.bf16.msra.mxu0 %v1366
        %1408 = vmatprep.subr.bf16.mxu0 %v1363
        %1409 = vmatpush1.bf16.msra.mxu0 %v1362
        %1410 = vmatprep.subr.bf16.mxu0 %v1359
        %1411 = vmatpush1.bf16.msra.mxu0 %v1358
        %1412 = vmatprep.subr.bf16.mxu0 %v1355
        %1413 = vmatpush1.bf16.msra.mxu0 %v1354
        %1414 = vmatprep.subr.bf16.mxu0 0
        %1415 = vmatpush2.bf16.msra.mxu0 0
        %1416 = vmatprep.subr.bf16.mxu0 0
        %1417 = vmatpush2.bf16.msra.mxu0 0
        %1418 = vmatprep.subr.bf16.mxu0 0
        %1419 = vmatpush2.bf16.msra.mxu0 0
        %1420 = vmatprep.subr.bf16.mxu0 0
        %1421 = vmatpush2.bf16.msra.mxu0 0
        %1422 = vmatprep.subr.bf16.mxu0 0
        %1423 = vmatpush2.bf16.msra.mxu0 0
        %1424 = vmatprep.subr.bf16.mxu0 0
        %1425 = vmatpush2.bf16.msra.mxu0 0
        %1426 = vmatprep.subr.bf16.mxu0 0
        %1427 = vmatpush2.bf16.msra.mxu0 0
        %1428 = vmatprep.subr.bf16.mxu0 0
        %1429 = vmatpush2.bf16.msra.mxu0 0
        %1430 = vmatprep.mubr.bf16.mxu0 0
        %1431 = vmatmul.mubr.bf16.gmra.mxu0 %v1387
        %v1432 = vpop.f32.mrf.mxu0
        %v1433 = vadd.f32 %v1289, %v1432
        %v1434 = vpop.f32.mrf.mxu0
        %v1435 = vadd.f32 %v1293, %v1434
        %v1436 = vpop.f32.mrf.mxu0
        %v1437 = vadd.f32 %v1289, %v1436
        %v1438 = vpop.f32.mrf.mxu0
        %v1439 = vadd.f32 %v1293, %v1438
        %1440 = vmatprep.mubr.bf16.mxu0 0
        %1441 = vmatmul.mubr.bf16.gmra.mxu0 %v1390
        %v1442 = vpop.f32.mrf.mxu0
        %v1443 = vadd.f32 %v1289, %v1442
        %v1444 = vpop.f32.mrf.mxu0
        %v1445 = vadd.f32 %v1293, %v1444
        %v1446 = vpop.f32.mrf.mxu0
        %v1447 = vadd.f32 %v1289, %v1446
        %v1448 = vpop.f32.mrf.mxu0
        %v1449 = vadd.f32 %v1293, %v1448
        %1450 = vmatprep.mubr.bf16.mxu0 0
        %1451 = vmatmul.mubr.bf16.gmra.mxu0 %v1393
        %v1452 = vpop.f32.mrf.mxu0
        %v1453 = vadd.f32 %v1289, %v1452
        %v1454 = vpop.f32.mrf.mxu0
        %v1455 = vadd.f32 %v1293, %v1454
        %v1456 = vpop.f32.mrf.mxu0
        %v1457 = vadd.f32 %v1289, %v1456
        %v1458 = vpop.f32.mrf.mxu0
        %v1459 = vadd.f32 %v1293, %v1458
        %1460 = vmatprep.mubr.bf16.mxu0 0
        %1461 = vmatmul.mubr.bf16.gmra.mxu0 %v1396
        %v1462 = vpop.f32.mrf.mxu0
        %v1463 = vadd.f32 %v1289, %v1462
        %v1464 = vpop.f32.mrf.mxu0
        %v1465 = vadd.f32 %v1293, %v1464
        %v1466 = vpop.f32.mrf.mxu0
        %v1467 = vadd.f32 %v1289, %v1466
        %v1468 = vpop.f32.mrf.mxu0
        %v1469 = vadd.f32 %v1293, %v1468
        %1470 = vdwg.mxu0
        %1471 = vmatprep.subr.bf16.mxu0 0
        %1472 = vmatpush1.bf16.msra.mxu0 0
        %1473 = vmatprep.subr.bf16.mxu0 0
        %1474 = vmatpush1.bf16.msra.mxu0 0
        %1475 = vmatprep.subr.bf16.mxu0 0
        %1476 = vmatpush1.bf16.msra.mxu0 0
        %1477 = vmatprep.subr.bf16.mxu0 0
        %1478 = vmatpush1.bf16.msra.mxu0 0
        %1479 = vmatprep.subr.bf16.mxu0 %v1369
        %1480 = vmatpush1.bf16.msra.mxu0 %v1368
        %1481 = vmatprep.subr.bf16.mxu0 %v1365
        %1482 = vmatpush1.bf16.msra.mxu0 %v1364
        %1483 = vmatprep.subr.bf16.mxu0 %v1361
        %1484 = vmatpush1.bf16.msra.mxu0 %v1360
        %1485 = vmatprep.subr.bf16.mxu0 %v1357
        %1486 = vmatpush1.bf16.msra.mxu0 %v1356
        %1487 = vmatprep.subr.bf16.mxu0 0
        %1488 = vmatpush2.bf16.msra.mxu0 0
        %1489 = vmatprep.subr.bf16.mxu0 0
        %1490 = vmatpush2.bf16.msra.mxu0 0
        %1491 = vmatprep.subr.bf16.mxu0 0
        %1492 = vmatpush2.bf16.msra.mxu0 0
        %1493 = vmatprep.subr.bf16.mxu0 0
        %1494 = vmatpush2.bf16.msra.mxu0 0
        %1495 = vmatprep.subr.bf16.mxu0 0
        %1496 = vmatpush2.bf16.msra.mxu0 0
        %1497 = vmatprep.subr.bf16.mxu0 0
        %1498 = vmatpush2.bf16.msra.mxu0 0
        %1499 = vmatprep.subr.bf16.mxu0 0
        %1500 = vmatpush2.bf16.msra.mxu0 0
        %1501 = vmatprep.subr.bf16.mxu0 0
        %1502 = vmatpush2.bf16.msra.mxu0 0
        %1503 = vmatprep.mubr.bf16.mxu0 0
        %1504 = vmatmul.mubr.bf16.gmra.mxu0 %v1387
        %v1505 = vpop.f32.mrf.mxu0
        %v1506 = vadd.f32 %v1297, %v1505
        %v1507 = vpop.f32.mrf.mxu0
        %v1508 = vadd.f32 %v1301, %v1507
        %v1509 = vpop.f32.mrf.mxu0
        %v1510 = vadd.f32 %v1297, %v1509
        %v1511 = vpop.f32.mrf.mxu0
        %v1512 = vadd.f32 %v1301, %v1511
        %1513 = vmatprep.mubr.bf16.mxu0 0
        %1514 = vmatmul.mubr.bf16.gmra.mxu0 %v1390
        %v1515 = vpop.f32.mrf.mxu0
        %v1516 = vadd.f32 %v1297, %v1515
        %v1517 = vpop.f32.mrf.mxu0
        %v1518 = vadd.f32 %v1301, %v1517
        %v1519 = vpop.f32.mrf.mxu0
        %v1520 = vadd.f32 %v1297, %v1519
        %v1521 = vpop.f32.mrf.mxu0
        %v1522 = vadd.f32 %v1301, %v1521
        %1523 = vmatprep.mubr.bf16.mxu0 0
        %1524 = vmatmul.mubr.bf16.gmra.mxu0 %v1393
        %v1525 = vpop.f32.mrf.mxu0
        %v1526 = vadd.f32 %v1297, %v1525
        %v1527 = vpop.f32.mrf.mxu0
        %v1528 = vadd.f32 %v1301, %v1527
        %v1529 = vpop.f32.mrf.mxu0
        %v1530 = vadd.f32 %v1297, %v1529
        %v1531 = vpop.f32.mrf.mxu0
        %v1532 = vadd.f32 %v1301, %v1531
        %1533 = vmatprep.mubr.bf16.mxu0 0
        %1534 = vmatmul.mubr.bf16.gmra.mxu0 %v1396
        %v1535 = vpop.f32.mrf.mxu0
        %v1536 = vadd.f32 %v1297, %v1535
        %v1537 = vpop.f32.mrf.mxu0
        %v1538 = vadd.f32 %v1301, %v1537
        %v1539 = vpop.f32.mrf.mxu0
        %v1540 = vadd.f32 %v1297, %v1539
        %v1541 = vpop.f32.mrf.mxu0
        %v1542 = vadd.f32 %v1301, %v1541
        %1543 = vdwg.mxu0
        %1544 = vst [vmem:[#allocation2] sm:$0xff] %v1433
        %1545 = vst [vmem:[#allocation2 + $0x8] sm:$0xff] %v1435
        %1546 = vst [vmem:[#allocation2 + $0x10] sm:$0xff] %v1506
        %1547 = vst [vmem:[#allocation2 + $0x18] sm:$0xff] %v1508
        %1548 = vst [vmem:[#allocation2 + $0x20] sm:$0xff] %v1437
        %1549 = vst [vmem:[#allocation2 + $0x28] sm:$0xff] %v1439
        %1550 = vst [vmem:[#allocation2 + $0x30] sm:$0xff] %v1510
        %1551 = vst [vmem:[#allocation2 + $0x38] sm:$0xff] %v1512
        %1552 = vst [vmem:[#allocation2 + $0x40] sm:$0xff] %v1443
        %1553 = vst [vmem:[#allocation2 + $0x48] sm:$0xff] %v1445
        %1554 = vst [vmem:[#allocation2 + $0x50] sm:$0xff] %v1516
        %1555 = vst [vmem:[#allocation2 + $0x58] sm:$0xff] %v1518
        %1556 = vst [vmem:[#allocation2 + $0x60] sm:$0xff] %v1447
        %1557 = vst [vmem:[#allocation2 + $0x68] sm:$0xff] %v1449
        %1558 = vst [vmem:[#allocation2 + $0x70] sm:$0xff] %v1520
        %1559 = vst [vmem:[#allocation2 + $0x78] sm:$0xff] %v1522
        %1560 = vst [vmem:[#allocation2 + $0x80] sm:$0xff] %v1453
        %1561 = vst [vmem:[#allocation2 + $0x88] sm:$0xff] %v1455
        %1562 = vst [vmem:[#allocation2 + $0x90] sm:$0xff] %v1526
        %1563 = vst [vmem:[#allocation2 + $0x98] sm:$0xff] %v1528
        %1564 = vst [vmem:[#allocation2 + $0xa0] sm:$0xff] %v1457
        %1565 = vst [vmem:[#allocation2 + $0xa8] sm:$0xff] %v1459
        %1566 = vst [vmem:[#allocation2 + $0xb0] sm:$0xff] %v1530
        %1567 = vst [vmem:[#allocation2 + $0xb8] sm:$0xff] %v1532
        %1568 = vst [vmem:[#allocation2 + $0xc0] sm:$0xff] %v1463
        %1569 = vst [vmem:[#allocation2 + $0xc8] sm:$0xff] %v1465
        %1570 = vst [vmem:[#allocation2 + $0xd0] sm:$0xff] %v1536
        %1571 = vst [vmem:[#allocation2 + $0xd8] sm:$0xff] %v1538
        %1572 = vst [vmem:[#allocation2 + $0xe0] sm:$0xff] %v1467
        %1573 = vst [vmem:[#allocation2 + $0xe8] sm:$0xff] %v1469
        %1574 = vst [vmem:[#allocation2 + $0xf0] sm:$0xff] %v1540
        %1575 = vst [vmem:[#allocation2 + $0xf8] sm:$0xff] %v1542
        %v1576 = vld [vmem:[%s8] sm:$0xff]
        %v1577 = vld [vmem:[%s8 + $0x8] sm:$0xff]
        %v1578 = vld [vmem:[%s8 + $0x10] sm:$0xff]
        %v1579 = vld [vmem:[%s8 + $0x18] sm:$0xff]
        %v1580 = vld [vmem:[%s8 + $0x20] sm:$0xff]
        %v1581 = vld [vmem:[%s8 + $0x28] sm:$0xff]
        %v1582 = vld [vmem:[%s8 + $0x30] sm:$0xff]
        %v1583 = vld [vmem:[%s8 + $0x38] sm:$0xff]
        %v1584 = vld [vmem:[%s8 + $0x40] sm:$0xff]
        %v1585 = vld [vmem:[%s8 + $0x48] sm:$0xff]
        %v1586 = vld [vmem:[%s8 + $0x50] sm:$0xff]
        %v1587 = vld [vmem:[%s8 + $0x58] sm:$0xff]
        %v1588 = vld [vmem:[%s8 + $0x60] sm:$0xff]
        %v1589 = vld [vmem:[%s8 + $0x68] sm:$0xff]
        %v1590 = vld [vmem:[%s8 + $0x70] sm:$0xff]
        %v1591 = vld [vmem:[%s8 + $0x78] sm:$0xff]
        %v1592 = vld [vmem:[%s8 + $0x80] sm:$0xff]
        %v1593 = vld [vmem:[%s8 + $0x88] sm:$0xff]
        %v1594 = vld [vmem:[%s8 + $0x90] sm:$0xff]
        %v1595 = vld [vmem:[%s8 + $0x98] sm:$0xff]
        %v1596 = vld [vmem:[%s8 + $0xa0] sm:$0xff]
        %v1597 = vld [vmem:[%s8 + $0xa8] sm:$0xff]
        %v1598 = vld [vmem:[%s8 + $0xb0] sm:$0xff]
        %v1599 = vld [vmem:[%s8 + $0xb8] sm:$0xff]
        %v1600 = vld [vmem:[%s8 + $0xc0] sm:$0xff]
        %v1601 = vld [vmem:[%s8 + $0xc8] sm:$0xff]
        %v1602 = vld [vmem:[%s8 + $0xd0] sm:$0xff]
        %v1603 = vld [vmem:[%s8 + $0xd8] sm:$0xff]
        %v1604 = vld [vmem:[%s8 + $0xe0] sm:$0xff]
        %v1605 = vld [vmem:[%s8 + $0xe8] sm:$0xff]
        %v1606 = vld [vmem:[%s8 + $0xf0] sm:$0xff]
        %v1607 = vld [vmem:[%s8 + $0xf8] sm:$0xff]
        %v1608 = vld [vmem:[%s10] sm:$0xff]
        %v1609 = vld [vmem:[%s10 + $0x8] sm:$0xff]
        %v1610 = vld [vmem:[%s10 + $0x10] sm:$0xff]
        %v1611 = vld [vmem:[%s10 + $0x18] sm:$0xff]
        %v1612 = vld [vmem:[%s10 + $0x20] sm:$0xff]
        %v1613 = vld [vmem:[%s10 + $0x28] sm:$0xff]
        %v1614 = vld [vmem:[%s10 + $0x30] sm:$0xff]
        %v1615 = vld [vmem:[%s10 + $0x38] sm:$0xff]
        %v1616 = vld [vmem:[%s10 + $0x40] sm:$0xff]
        %v1617 = vld [vmem:[%s10 + $0x48] sm:$0xff]
        %v1618 = vld [vmem:[%s10 + $0x50] sm:$0xff]
        %v1619 = vld [vmem:[%s10 + $0x58] sm:$0xff]
        %v1620 = vld [vmem:[%s10 + $0x60] sm:$0xff]
        %v1621 = vld [vmem:[%s10 + $0x68] sm:$0xff]
        %v1622 = vld [vmem:[%s10 + $0x70] sm:$0xff]
        %v1623 = vld [vmem:[%s10 + $0x78] sm:$0xff]
        %v1624 = vld [vmem:[%s10 + $0x80] sm:$0xff]
        %v1625 = vld [vmem:[%s10 + $0x88] sm:$0xff]
        %v1626 = vld [vmem:[%s10 + $0x90] sm:$0xff]
        %v1627 = vld [vmem:[%s10 + $0x98] sm:$0xff]
        %v1628 = vld [vmem:[%s10 + $0xa0] sm:$0xff]
        %v1629 = vld [vmem:[%s10 + $0xa8] sm:$0xff]
        %v1630 = vld [vmem:[%s10 + $0xb0] sm:$0xff]
        %v1631 = vld [vmem:[%s10 + $0xb8] sm:$0xff]
        %v1632 = vld [vmem:[%s10 + $0xc0] sm:$0xff]
        %v1633 = vld [vmem:[%s10 + $0xc8] sm:$0xff]
        %v1634 = vld [vmem:[%s10 + $0xd0] sm:$0xff]
        %v1635 = vld [vmem:[%s10 + $0xd8] sm:$0xff]
        %v1636 = vld [vmem:[%s10 + $0xe0] sm:$0xff]
        %v1637 = vld [vmem:[%s10 + $0xe8] sm:$0xff]
        %v1638 = vld [vmem:[%s10 + $0xf0] sm:$0xff]
        %v1639 = vld [vmem:[%s10 + $0xf8] sm:$0xff]
        %v1640 = vld [vmem:[%s10 + $0x100] sm:$0xff]
        %v1641 = vld [vmem:[%s10 + $0x108] sm:$0xff]
        %v1642 = vld [vmem:[%s10 + $0x110] sm:$0xff]
        %v1643 = vld [vmem:[%s10 + $0x118] sm:$0xff]
        %v1644 = vld [vmem:[%s10 + $0x120] sm:$0xff]
        %v1645 = vld [vmem:[%s10 + $0x128] sm:$0xff]
        %v1646 = vld [vmem:[%s10 + $0x130] sm:$0xff]
        %v1647 = vld [vmem:[%s10 + $0x138] sm:$0xff]
        %v1648 = vld [vmem:[%s10 + $0x140] sm:$0xff]
        %v1649 = vld [vmem:[%s10 + $0x148] sm:$0xff]
        %v1650 = vld [vmem:[%s10 + $0x150] sm:$0xff]
        %v1651 = vld [vmem:[%s10 + $0x158] sm:$0xff]
        %v1652 = vld [vmem:[%s10 + $0x160] sm:$0xff]
        %v1653 = vld [vmem:[%s10 + $0x168] sm:$0xff]
        %v1654 = vld [vmem:[%s10 + $0x170] sm:$0xff]
        %v1655 = vld [vmem:[%s10 + $0x178] sm:$0xff]
        %v1656 = vld [vmem:[%s10 + $0x180] sm:$0xff]
        %v1657 = vld [vmem:[%s10 + $0x188] sm:$0xff]
        %v1658 = vld [vmem:[%s10 + $0x190] sm:$0xff]
        %v1659 = vld [vmem:[%s10 + $0x198] sm:$0xff]
        %v1660 = vld [vmem:[%s10 + $0x1a0] sm:$0xff]
        %v1661 = vld [vmem:[%s10 + $0x1a8] sm:$0xff]
        %v1662 = vld [vmem:[%s10 + $0x1b0] sm:$0xff]
        %v1663 = vld [vmem:[%s10 + $0x1b8] sm:$0xff]
        %v1664 = vld [vmem:[%s10 + $0x1c0] sm:$0xff]
        %v1665 = vld [vmem:[%s10 + $0x1c8] sm:$0xff]
        %v1666 = vld [vmem:[%s10 + $0x1d0] sm:$0xff]
        %v1667 = vld [vmem:[%s10 + $0x1d8] sm:$0xff]
        %v1668 = vld [vmem:[%s10 + $0x1e0] sm:$0xff]
        %v1669 = vld [vmem:[%s10 + $0x1e8] sm:$0xff]
        %v1670 = vld [vmem:[%s10 + $0x1f0] sm:$0xff]
        %v1671 = vld [vmem:[%s10 + $0x1f8] sm:$0xff]
        %v1672 = vld [vmem:[%s11] sm:$0xf]
        %v1673 = vld [vmem:[#allocation2] sm:$0xff]
        %v1674 = vld [vmem:[#allocation2 + $0x8] sm:$0xff]
        %v1675 = vld [vmem:[#allocation2 + $0x10] sm:$0xff]
        %v1676 = vld [vmem:[#allocation2 + $0x18] sm:$0xff]
        %v1709 = vunpack.c.l.b16 %v1576
        %v1710 = vunpack.c.h.b16 %v1576
        %v1711 = vunpack.c.l.b16 %v1577
        %v1712 = vunpack.c.h.b16 %v1577
        %v1713 = vunpack.c.l.b16 %v1578
        %v1714 = vunpack.c.h.b16 %v1578
        %v1715 = vunpack.c.l.b16 %v1579
        %v1716 = vunpack.c.h.b16 %v1579
        %v1717 = vunpack.c.l.b16 %v1580
        %v1718 = vunpack.c.h.b16 %v1580
        %v1719 = vunpack.c.l.b16 %v1581
        %v1720 = vunpack.c.h.b16 %v1581
        %v1721 = vunpack.c.l.b16 %v1582
        %v1722 = vunpack.c.h.b16 %v1582
        %v1723 = vunpack.c.l.b16 %v1583
        %v1724 = vunpack.c.h.b16 %v1583
        %v1725 = vunpack.c.l.b16 %v1584
        %v1726 = vunpack.c.h.b16 %v1584
        %v1727 = vunpack.c.l.b16 %v1585
        %v1728 = vunpack.c.h.b16 %v1585
        %v1729 = vunpack.c.l.b16 %v1586
        %v1730 = vunpack.c.h.b16 %v1586
        %v1731 = vunpack.c.l.b16 %v1587
        %v1732 = vunpack.c.h.b16 %v1587
        %v1733 = vunpack.c.l.b16 %v1588
        %v1734 = vunpack.c.h.b16 %v1588
        %v1735 = vunpack.c.l.b16 %v1589
        %v1736 = vunpack.c.h.b16 %v1589
        %v1737 = vunpack.c.l.b16 %v1590
        %v1738 = vunpack.c.h.b16 %v1590
        %v1739 = vunpack.c.l.b16 %v1591
        %v1740 = vunpack.c.h.b16 %v1591
        %v1741 = vunpack.c.l.b16 %v1592
        %v1742 = vunpack.c.h.b16 %v1592
        %v1743 = vunpack.c.l.b16 %v1593
        %v1744 = vunpack.c.h.b16 %v1593
        %v1745 = vunpack.c.l.b16 %v1594
        %v1746 = vunpack.c.h.b16 %v1594
        %v1747 = vunpack.c.l.b16 %v1595
        %v1748 = vunpack.c.h.b16 %v1595
        %v1749 = vunpack.c.l.b16 %v1596
        %v1750 = vunpack.c.h.b16 %v1596
        %v1751 = vunpack.c.l.b16 %v1597
        %v1752 = vunpack.c.h.b16 %v1597
        %v1753 = vunpack.c.l.b16 %v1598
        %v1754 = vunpack.c.h.b16 %v1598
        %v1755 = vunpack.c.l.b16 %v1599
        %v1756 = vunpack.c.h.b16 %v1599
        %v1757 = vunpack.c.l.b16 %v1600
        %v1758 = vunpack.c.h.b16 %v1600
        %v1759 = vunpack.c.l.b16 %v1601
        %v1760 = vunpack.c.h.b16 %v1601
        %v1761 = vunpack.c.l.b16 %v1602
        %v1762 = vunpack.c.h.b16 %v1602
        %v1763 = vunpack.c.l.b16 %v1603
        %v1764 = vunpack.c.h.b16 %v1603
        %v1765 = vunpack.c.l.b16 %v1604
        %v1766 = vunpack.c.h.b16 %v1604
        %v1767 = vunpack.c.l.b16 %v1605
        %v1768 = vunpack.c.h.b16 %v1605
        %v1769 = vunpack.c.l.b16 %v1606
        %v1770 = vunpack.c.h.b16 %v1606
        %v1771 = vunpack.c.l.b16 %v1607
        %v1772 = vunpack.c.h.b16 %v1607
        %v1773 = vpack.c.b16 %v1713, %v1709
        %v1774 = vpack.c.b16 %v1714, %v1710
        %v1775 = vpack.c.b16 %v1715, %v1711
        %v1776 = vpack.c.b16 %v1716, %v1712
        %v1777 = vpack.c.b16 %v1721, %v1717
        %v1778 = vpack.c.b16 %v1722, %v1718
        %v1779 = vpack.c.b16 %v1723, %v1719
        %v1780 = vpack.c.b16 %v1724, %v1720
        %v1781 = vpack.c.b16 %v1729, %v1725
        %v1782 = vpack.c.b16 %v1730, %v1726
        %v1783 = vpack.c.b16 %v1731, %v1727
        %v1784 = vpack.c.b16 %v1732, %v1728
        %v1785 = vpack.c.b16 %v1737, %v1733
        %v1786 = vpack.c.b16 %v1738, %v1734
        %v1787 = vpack.c.b16 %v1739, %v1735
        %v1788 = vpack.c.b16 %v1740, %v1736
        %v1789 = vpack.c.b16 %v1745, %v1741
        %v1790 = vpack.c.b16 %v1746, %v1742
        %v1791 = vpack.c.b16 %v1747, %v1743
        %v1792 = vpack.c.b16 %v1748, %v1744
        %v1793 = vpack.c.b16 %v1753, %v1749
        %v1794 = vpack.c.b16 %v1754, %v1750
        %v1795 = vpack.c.b16 %v1755, %v1751
        %v1796 = vpack.c.b16 %v1756, %v1752
        %v1797 = vpack.c.b16 %v1761, %v1757
        %v1798 = vpack.c.b16 %v1762, %v1758
        %v1799 = vpack.c.b16 %v1763, %v1759
        %v1800 = vpack.c.b16 %v1764, %v1760
        %v1801 = vpack.c.b16 %v1769, %v1765
        %v1802 = vpack.c.b16 %v1770, %v1766
        %v1803 = vpack.c.b16 %v1771, %v1767
        %v1804 = vpack.c.b16 %v1772, %v1768
        %1837 = vmatprep.subr.bf16.mxu0 %v1802
        %1838 = vmatpush1.bf16.msra.mxu0 %v1801
        %1839 = vmatprep.subr.bf16.mxu0 %v1798
        %1840 = vmatpush1.bf16.msra.mxu0 %v1797
        %1841 = vmatprep.subr.bf16.mxu0 %v1794
        %1842 = vmatpush1.bf16.msra.mxu0 %v1793
        %1843 = vmatprep.subr.bf16.mxu0 %v1790
        %1844 = vmatpush1.bf16.msra.mxu0 %v1789
        %1845 = vmatprep.subr.bf16.mxu0 %v1786
        %1846 = vmatpush1.bf16.msra.mxu0 %v1785
        %1847 = vmatprep.subr.bf16.mxu0 %v1782
        %1848 = vmatpush1.bf16.msra.mxu0 %v1781
        %1849 = vmatprep.subr.bf16.mxu0 %v1778
        %1850 = vmatpush1.bf16.msra.mxu0 %v1777
        %1851 = vmatprep.subr.bf16.mxu0 %v1774
        %1852 = vmatpush1.bf16.msra.mxu0 %v1773
        %1853 = vmatprep.subr.bf16.mxu0 0
        %1854 = vmatpush2.bf16.msra.mxu0 0
        %1855 = vmatprep.subr.bf16.mxu0 0
        %1856 = vmatpush2.bf16.msra.mxu0 0
        %1857 = vmatprep.subr.bf16.mxu0 0
        %1858 = vmatpush2.bf16.msra.mxu0 0
        %1859 = vmatprep.subr.bf16.mxu0 0
        %1860 = vmatpush2.bf16.msra.mxu0 0
        %1861 = vmatprep.subr.bf16.mxu0 0
        %1862 = vmatpush2.bf16.msra.mxu0 0
        %1863 = vmatprep.subr.bf16.mxu0 0
        %1864 = vmatpush2.bf16.msra.mxu0 0
        %1865 = vmatprep.subr.bf16.mxu0 0
        %1866 = vmatpush2.bf16.msra.mxu0 0
        %1867 = vmatprep.subr.bf16.mxu0 0
        %1868 = vmatpush2.bf16.msra.mxu0 0
        %1869 = vmatprep.mubr.bf16.mxu0 0
        %1870 = vmatmul.mubr.bf16.gmra.mxu0 0
        %v1871 = vpop.f32.mrf.mxu0
        %v1872 = vadd.f32 0.0, %v1871
        %v1873 = vpop.f32.mrf.mxu0
        %v1874 = vadd.f32 0.0, %v1873
        %v1875 = vpop.f32.mrf.mxu0
        %v1876 = vpop.f32.mrf.mxu0
        %1877 = vdwg.mxu0
        %1878 = vmatprep.subr.bf16.mxu0 %v1804
        %1879 = vmatpush1.bf16.msra.mxu0 %v1803
        %1880 = vmatprep.subr.bf16.mxu0 %v1800
        %1881 = vmatpush1.bf16.msra.mxu0 %v1799
        %1882 = vmatprep.subr.bf16.mxu0 %v1796
        %1883 = vmatpush1.bf16.msra.mxu0 %v1795
        %1884 = vmatprep.subr.bf16.mxu0 %v1792
        %1885 = vmatpush1.bf16.msra.mxu0 %v1791
        %1886 = vmatprep.subr.bf16.mxu0 %v1788
        %1887 = vmatpush1.bf16.msra.mxu0 %v1787
        %1888 = vmatprep.subr.bf16.mxu0 %v1784
        %1889 = vmatpush1.bf16.msra.mxu0 %v1783
        %1890 = vmatprep.subr.bf16.mxu0 %v1780
        %1891 = vmatpush1.bf16.msra.mxu0 %v1779
        %1892 = vmatprep.subr.bf16.mxu0 %v1776
        %1893 = vmatpush1.bf16.msra.mxu0 %v1775
        %1894 = vmatprep.subr.bf16.mxu0 0
        %1895 = vmatpush2.bf16.msra.mxu0 0
        %1896 = vmatprep.subr.bf16.mxu0 0
        %1897 = vmatpush2.bf16.msra.mxu0 0
        %1898 = vmatprep.subr.bf16.mxu0 0
        %1899 = vmatpush2.bf16.msra.mxu0 0
        %1900 = vmatprep.subr.bf16.mxu0 0
        %1901 = vmatpush2.bf16.msra.mxu0 0
        %1902 = vmatprep.subr.bf16.mxu0 0
        %1903 = vmatpush2.bf16.msra.mxu0 0
        %1904 = vmatprep.subr.bf16.mxu0 0
        %1905 = vmatpush2.bf16.msra.mxu0 0
        %1906 = vmatprep.subr.bf16.mxu0 0
        %1907 = vmatpush2.bf16.msra.mxu0 0
        %1908 = vmatprep.subr.bf16.mxu0 0
        %1909 = vmatpush2.bf16.msra.mxu0 0
        %1910 = vmatprep.mubr.bf16.mxu0 0
        %1911 = vmatmul.mubr.bf16.gmra.mxu0 0
        %v1912 = vpop.f32.mrf.mxu0
        %v1913 = vadd.f32 0.0, %v1912
        %v1914 = vpop.f32.mrf.mxu0
        %v1915 = vadd.f32 0.0, %v1914
        %v1916 = vpop.f32.mrf.mxu0
        %v1917 = vpop.f32.mrf.mxu0
        %1918 = vdwg.mxu0
        %v1919 = vadd.f32 %v1673, %v1872
        %v1920 = vadd.f32 %v1674, %v1874
        %v1921 = vadd.f32 %v1675, %v1913
        %v1922 = vadd.f32 %v1676, %v1915
        %v1923 = vxor.u32 %v1919, 2147483648
        %v1924 = vmul.f32 %v1923, 1.442695
        %v1925 = vpow.pop %v1924
        %v1926 = vadd.f32 %v1925, 1.0
        %v1927 = vrcp.pop %v1926
        %v1928 = vmul.f32 1.0, %v1927
        %v1929 = vxor.u32 %v1920, 2147483648
        %v1930 = vmul.f32 %v1929, 1.442695
        %v1931 = vpow.pop %v1930
        %v1932 = vadd.f32 %v1931, 1.0
        %v1933 = vrcp.pop %v1932
        %v1934 = vmul.f32 1.0, %v1933
        %v1935 = vtanh.pop %v1921
        %v1936 = vxor.u32 %v1922, 2147483648
        %v1937 = vmul.f32 %v1936, 1.442695
        %v1938 = vpow.pop %v1937
        %v1939 = vadd.f32 %v1938, 1.0
        %v1940 = vrcp.pop %v1939
        %v1941 = vmul.f32 1.0, %v1940
        %v1942 = vmul.f32 %v1934, 0.0
        %v1943 = vmul.f32 %v1928, %v1935
        %v1944 = vadd.f32 %v1942, %v1943
        %v1945 = vtanh.pop %v1944
        %v1946 = vmul.f32 %v1941, %v1945
        %v1947 = vpack.c.bf16 %v1946, %v1946
        %v1949 = vlaneseq
        %v1950 = vshrl.u32 %v1949, 7
        %v1951 = vsub.s32 0, %v1950
        %v1952 = vrot.slane %v1672, %v1951
        %v1953 = vlaneseq
        %v1954 = vshrl.u32 %v1953, 7
        %v1955 = vsub.s32 1, %v1954
        %v1956 = vrot.slane %v1672, %v1955
        %v1957 = vlaneseq
        %v1958 = vshrl.u32 %v1957, 7
        %v1959 = vsub.s32 2, %v1958
        %v1960 = vrot.slane %v1672, %v1959
        %v1961 = vlaneseq
        %v1962 = vshrl.u32 %v1961, 7
        %v1963 = vsub.s32 3, %v1962
        %v1964 = vrot.slane %v1672, %v1963
        %v2033 = vunpack.c.l.b16 %v1608
        %v2034 = vunpack.c.h.b16 %v1608
        %v2035 = vunpack.c.l.b16 %v1609
        %v2036 = vunpack.c.h.b16 %v1609
        %v2037 = vunpack.c.l.b16 %v1610
        %v2038 = vunpack.c.h.b16 %v1610
        %v2039 = vunpack.c.l.b16 %v1611
        %v2040 = vunpack.c.h.b16 %v1611
        %v2041 = vunpack.c.l.b16 %v1612
        %v2042 = vunpack.c.h.b16 %v1612
        %v2043 = vunpack.c.l.b16 %v1613
        %v2044 = vunpack.c.h.b16 %v1613
        %v2045 = vunpack.c.l.b16 %v1614
        %v2046 = vunpack.c.h.b16 %v1614
        %v2047 = vunpack.c.l.b16 %v1615
        %v2048 = vunpack.c.h.b16 %v1615
        %v2049 = vunpack.c.l.b16 %v1616
        %v2050 = vunpack.c.h.b16 %v1616
        %v2051 = vunpack.c.l.b16 %v1617
        %v2052 = vunpack.c.h.b16 %v1617
        %v2053 = vunpack.c.l.b16 %v1618
        %v2054 = vunpack.c.h.b16 %v1618
        %v2055 = vunpack.c.l.b16 %v1619
        %v2056 = vunpack.c.h.b16 %v1619
        %v2057 = vunpack.c.l.b16 %v1620
        %v2058 = vunpack.c.h.b16 %v1620
        %v2059 = vunpack.c.l.b16 %v1621
        %v2060 = vunpack.c.h.b16 %v1621
        %v2061 = vunpack.c.l.b16 %v1622
        %v2062 = vunpack.c.h.b16 %v1622
        %v2063 = vunpack.c.l.b16 %v1623
        %v2064 = vunpack.c.h.b16 %v1623
        %v2065 = vunpack.c.l.b16 %v1624
        %v2066 = vunpack.c.h.b16 %v1624
        %v2067 = vunpack.c.l.b16 %v1625
        %v2068 = vunpack.c.h.b16 %v1625
        %v2069 = vunpack.c.l.b16 %v1626
        %v2070 = vunpack.c.h.b16 %v1626
        %v2071 = vunpack.c.l.b16 %v1627
        %v2072 = vunpack.c.h.b16 %v1627
        %v2073 = vunpack.c.l.b16 %v1628
        %v2074 = vunpack.c.h.b16 %v1628
        %v2075 = vunpack.c.l.b16 %v1629
        %v2076 = vunpack.c.h.b16 %v1629
        %v2077 = vunpack.c.l.b16 %v1630
        %v2078 = vunpack.c.h.b16 %v1630
        %v2079 = vunpack.c.l.b16 %v1631
        %v2080 = vunpack.c.h.b16 %v1631
        %v2081 = vunpack.c.l.b16 %v1632
        %v2082 = vunpack.c.h.b16 %v1632
        %v2083 = vunpack.c.l.b16 %v1633
        %v2084 = vunpack.c.h.b16 %v1633
        %v2085 = vunpack.c.l.b16 %v1634
        %v2086 = vunpack.c.h.b16 %v1634
        %v2087 = vunpack.c.l.b16 %v1635
        %v2088 = vunpack.c.h.b16 %v1635
        %v2089 = vunpack.c.l.b16 %v1636
        %v2090 = vunpack.c.h.b16 %v1636
        %v2091 = vunpack.c.l.b16 %v1637
        %v2092 = vunpack.c.h.b16 %v1637
        %v2093 = vunpack.c.l.b16 %v1638
        %v2094 = vunpack.c.h.b16 %v1638
        %v2095 = vunpack.c.l.b16 %v1639
        %v2096 = vunpack.c.h.b16 %v1639
        %v2097 = vunpack.c.l.b16 %v1640
        %v2098 = vunpack.c.h.b16 %v1640
        %v2099 = vunpack.c.l.b16 %v1641
        %v2100 = vunpack.c.h.b16 %v1641
        %v2101 = vunpack.c.l.b16 %v1642
        %v2102 = vunpack.c.h.b16 %v1642
        %v2103 = vunpack.c.l.b16 %v1643
        %v2104 = vunpack.c.h.b16 %v1643
        %v2105 = vunpack.c.l.b16 %v1644
        %v2106 = vunpack.c.h.b16 %v1644
        %v2107 = vunpack.c.l.b16 %v1645
        %v2108 = vunpack.c.h.b16 %v1645
        %v2109 = vunpack.c.l.b16 %v1646
        %v2110 = vunpack.c.h.b16 %v1646
        %v2111 = vunpack.c.l.b16 %v1647
        %v2112 = vunpack.c.h.b16 %v1647
        %v2113 = vunpack.c.l.b16 %v1648
        %v2114 = vunpack.c.h.b16 %v1648
        %v2115 = vunpack.c.l.b16 %v1649
        %v2116 = vunpack.c.h.b16 %v1649
        %v2117 = vunpack.c.l.b16 %v1650
        %v2118 = vunpack.c.h.b16 %v1650
        %v2119 = vunpack.c.l.b16 %v1651
        %v2120 = vunpack.c.h.b16 %v1651
        %v2121 = vunpack.c.l.b16 %v1652
        %v2122 = vunpack.c.h.b16 %v1652
        %v2123 = vunpack.c.l.b16 %v1653
        %v2124 = vunpack.c.h.b16 %v1653
        %v2125 = vunpack.c.l.b16 %v1654
        %v2126 = vunpack.c.h.b16 %v1654
        %v2127 = vunpack.c.l.b16 %v1655
        %v2128 = vunpack.c.h.b16 %v1655
        %v2129 = vunpack.c.l.b16 %v1656
        %v2130 = vunpack.c.h.b16 %v1656
        %v2131 = vunpack.c.l.b16 %v1657
        %v2132 = vunpack.c.h.b16 %v1657
        %v2133 = vunpack.c.l.b16 %v1658
        %v2134 = vunpack.c.h.b16 %v1658
        %v2135 = vunpack.c.l.b16 %v1659
        %v2136 = vunpack.c.h.b16 %v1659
        %v2137 = vunpack.c.l.b16 %v1660
        %v2138 = vunpack.c.h.b16 %v1660
        %v2139 = vunpack.c.l.b16 %v1661
        %v2140 = vunpack.c.h.b16 %v1661
        %v2141 = vunpack.c.l.b16 %v1662
        %v2142 = vunpack.c.h.b16 %v1662
        %v2143 = vunpack.c.l.b16 %v1663
        %v2144 = vunpack.c.h.b16 %v1663
        %v2145 = vunpack.c.l.b16 %v1664
        %v2146 = vunpack.c.h.b16 %v1664
        %v2147 = vunpack.c.l.b16 %v1665
        %v2148 = vunpack.c.h.b16 %v1665
        %v2149 = vunpack.c.l.b16 %v1666
        %v2150 = vunpack.c.h.b16 %v1666
        %v2151 = vunpack.c.l.b16 %v1667
        %v2152 = vunpack.c.h.b16 %v1667
        %v2153 = vunpack.c.l.b16 %v1668
        %v2154 = vunpack.c.h.b16 %v1668
        %v2155 = vunpack.c.l.b16 %v1669
        %v2156 = vunpack.c.h.b16 %v1669
        %v2157 = vunpack.c.l.b16 %v1670
        %v2158 = vunpack.c.h.b16 %v1670
        %v2159 = vunpack.c.l.b16 %v1671
        %v2160 = vunpack.c.h.b16 %v1671
        %v2161 = vpack.c.b16 %v2037, %v2033
        %v2162 = vpack.c.b16 %v2038, %v2034
        %v2163 = vpack.c.b16 %v2039, %v2035
        %v2164 = vpack.c.b16 %v2040, %v2036
        %v2165 = vpack.c.b16 %v2045, %v2041
        %v2166 = vpack.c.b16 %v2046, %v2042
        %v2167 = vpack.c.b16 %v2047, %v2043
        %v2168 = vpack.c.b16 %v2048, %v2044
        %v2169 = vpack.c.b16 %v2053, %v2049
        %v2170 = vpack.c.b16 %v2054, %v2050
        %v2171 = vpack.c.b16 %v2055, %v2051
        %v2172 = vpack.c.b16 %v2056, %v2052
        %v2173 = vpack.c.b16 %v2061, %v2057
        %v2174 = vpack.c.b16 %v2062, %v2058
        %v2175 = vpack.c.b16 %v2063, %v2059
        %v2176 = vpack.c.b16 %v2064, %v2060
        %v2177 = vpack.c.b16 %v2069, %v2065
        %v2178 = vpack.c.b16 %v2070, %v2066
        %v2179 = vpack.c.b16 %v2071, %v2067
        %v2180 = vpack.c.b16 %v2072, %v2068
        %v2181 = vpack.c.b16 %v2077, %v2073
        %v2182 = vpack.c.b16 %v2078, %v2074
        %v2183 = vpack.c.b16 %v2079, %v2075
        %v2184 = vpack.c.b16 %v2080, %v2076
        %v2185 = vpack.c.b16 %v2085, %v2081
        %v2186 = vpack.c.b16 %v2086, %v2082
        %v2187 = vpack.c.b16 %v2087, %v2083
        %v2188 = vpack.c.b16 %v2088, %v2084
        %v2189 = vpack.c.b16 %v2093, %v2089
        %v2190 = vpack.c.b16 %v2094, %v2090
        %v2191 = vpack.c.b16 %v2095, %v2091
        %v2192 = vpack.c.b16 %v2096, %v2092
        %v2193 = vpack.c.b16 %v2101, %v2097
        %v2194 = vpack.c.b16 %v2102, %v2098
        %v2195 = vpack.c.b16 %v2103, %v2099
        %v2196 = vpack.c.b16 %v2104, %v2100
        %v2197 = vpack.c.b16 %v2109, %v2105
        %v2198 = vpack.c.b16 %v2110, %v2106
        %v2199 = vpack.c.b16 %v2111, %v2107
        %v2200 = vpack.c.b16 %v2112, %v2108
        %v2201 = vpack.c.b16 %v2117, %v2113
        %v2202 = vpack.c.b16 %v2118, %v2114
        %v2203 = vpack.c.b16 %v2119, %v2115
        %v2204 = vpack.c.b16 %v2120, %v2116
        %v2205 = vpack.c.b16 %v2125, %v2121
        %v2206 = vpack.c.b16 %v2126, %v2122
        %v2207 = vpack.c.b16 %v2127, %v2123
        %v2208 = vpack.c.b16 %v2128, %v2124
        %v2209 = vpack.c.b16 %v2133, %v2129
        %v2210 = vpack.c.b16 %v2134, %v2130
        %v2211 = vpack.c.b16 %v2135, %v2131
        %v2212 = vpack.c.b16 %v2136, %v2132
        %v2213 = vpack.c.b16 %v2141, %v2137
        %v2214 = vpack.c.b16 %v2142, %v2138
        %v2215 = vpack.c.b16 %v2143, %v2139
        %v2216 = vpack.c.b16 %v2144, %v2140
        %v2217 = vpack.c.b16 %v2149, %v2145
        %v2218 = vpack.c.b16 %v2150, %v2146
        %v2219 = vpack.c.b16 %v2151, %v2147
        %v2220 = vpack.c.b16 %v2152, %v2148
        %v2221 = vpack.c.b16 %v2157, %v2153
        %v2222 = vpack.c.b16 %v2158, %v2154
        %v2223 = vpack.c.b16 %v2159, %v2155
        %v2224 = vpack.c.b16 %v2160, %v2156
        %2289 = vmatprep.subr.bf16.mxu0 %v2190
        %2290 = vmatpush1.bf16.msra.mxu0 %v2189
        %2291 = vmatprep.subr.bf16.mxu0 %v2186
        %2292 = vmatpush1.bf16.msra.mxu0 %v2185
        %2293 = vmatprep.subr.bf16.mxu0 %v2182
        %2294 = vmatpush1.bf16.msra.mxu0 %v2181
        %2295 = vmatprep.subr.bf16.mxu0 %v2178
        %2296 = vmatpush1.bf16.msra.mxu0 %v2177
        %2297 = vmatprep.subr.bf16.mxu0 %v2174
        %2298 = vmatpush1.bf16.msra.mxu0 %v2173
        %2299 = vmatprep.subr.bf16.mxu0 %v2170
        %2300 = vmatpush1.bf16.msra.mxu0 %v2169
        %2301 = vmatprep.subr.bf16.mxu0 %v2166
        %2302 = vmatpush1.bf16.msra.mxu0 %v2165
        %2303 = vmatprep.subr.bf16.mxu0 %v2162
        %2304 = vmatpush1.bf16.msra.mxu0 %v2161
        %2305 = vmatprep.subr.bf16.mxu0 %v2222
        %2306 = vmatpush2.bf16.msra.mxu0 %v2221
        %2307 = vmatprep.subr.bf16.mxu0 %v2218
        %2308 = vmatpush2.bf16.msra.mxu0 %v2217
        %2309 = vmatprep.subr.bf16.mxu0 %v2214
        %2310 = vmatpush2.bf16.msra.mxu0 %v2213
        %2311 = vmatprep.subr.bf16.mxu0 %v2210
        %2312 = vmatpush2.bf16.msra.mxu0 %v2209
        %2313 = vmatprep.subr.bf16.mxu0 %v2206
        %2314 = vmatpush2.bf16.msra.mxu0 %v2205
        %2315 = vmatprep.subr.bf16.mxu0 %v2202
        %2316 = vmatpush2.bf16.msra.mxu0 %v2201
        %2317 = vmatprep.subr.bf16.mxu0 %v2198
        %2318 = vmatpush2.bf16.msra.mxu0 %v2197
        %2319 = vmatprep.subr.bf16.mxu0 %v2194
        %2320 = vmatpush2.bf16.msra.mxu0 %v2193
        %2321 = vmatprep.mubr.bf16.mxu0 %v742
        %2322 = vmatmul.mubr.bf16.gmra.mxu0 %v1947
        %v2323 = vpop.f32.mrf.mxu0
        %v2324 = vadd.f32 %v1952, %v2323
        %v2325 = vpop.f32.mrf.mxu0
        %v2326 = vadd.f32 %v1956, %v2325
        %v2327 = vpop.f32.mrf.mxu0
        %v2328 = vpop.f32.mrf.mxu0
        %2329 = vdwg.mxu0
        %2330 = vmatprep.subr.bf16.mxu0 %v2192
        %2331 = vmatpush1.bf16.msra.mxu0 %v2191
        %2332 = vmatprep.subr.bf16.mxu0 %v2188
        %2333 = vmatpush1.bf16.msra.mxu0 %v2187
        %2334 = vmatprep.subr.bf16.mxu0 %v2184
        %2335 = vmatpush1.bf16.msra.mxu0 %v2183
        %2336 = vmatprep.subr.bf16.mxu0 %v2180
        %2337 = vmatpush1.bf16.msra.mxu0 %v2179
        %2338 = vmatprep.subr.bf16.mxu0 %v2176
        %2339 = vmatpush1.bf16.msra.mxu0 %v2175
        %2340 = vmatprep.subr.bf16.mxu0 %v2172
        %2341 = vmatpush1.bf16.msra.mxu0 %v2171
        %2342 = vmatprep.subr.bf16.mxu0 %v2168
        %2343 = vmatpush1.bf16.msra.mxu0 %v2167
        %2344 = vmatprep.subr.bf16.mxu0 %v2164
        %2345 = vmatpush1.bf16.msra.mxu0 %v2163
        %2346 = vmatprep.subr.bf16.mxu0 %v2224
        %2347 = vmatpush2.bf16.msra.mxu0 %v2223
        %2348 = vmatprep.subr.bf16.mxu0 %v2220
        %2349 = vmatpush2.bf16.msra.mxu0 %v2219
        %2350 = vmatprep.subr.bf16.mxu0 %v2216
        %2351 = vmatpush2.bf16.msra.mxu0 %v2215
        %2352 = vmatprep.subr.bf16.mxu0 %v2212
        %2353 = vmatpush2.bf16.msra.mxu0 %v2211
        %2354 = vmatprep.subr.bf16.mxu0 %v2208
        %2355 = vmatpush2.bf16.msra.mxu0 %v2207
        %2356 = vmatprep.subr.bf16.mxu0 %v2204
        %2357 = vmatpush2.bf16.msra.mxu0 %v2203
        %2358 = vmatprep.subr.bf16.mxu0 %v2200
        %2359 = vmatpush2.bf16.msra.mxu0 %v2199
        %2360 = vmatprep.subr.bf16.mxu0 %v2196
        %2361 = vmatpush2.bf16.msra.mxu0 %v2195
        %2362 = vmatprep.mubr.bf16.mxu0 %v742
        %2363 = vmatmul.mubr.bf16.gmra.mxu0 %v1947
        %v2364 = vpop.f32.mrf.mxu0
        %v2365 = vadd.f32 %v1960, %v2364
        %v2366 = vpop.f32.mrf.mxu0
        %v2367 = vadd.f32 %v1964, %v2366
        %v2368 = vpop.f32.mrf.mxu0
        %v2369 = vpop.f32.mrf.mxu0
        %2370 = vdwg.mxu0
        %v2371 = vxor.u32 %v2324, 2147483648
        %v2372 = vmul.f32 %v2371, 1.442695
        %v2373 = vpow.pop %v2372
        %v2374 = vadd.f32 %v2373, 1.0
        %v2375 = vrcp.pop %v2374
        %v2376 = vmul.f32 1.0, %v2375
        %v2377 = vxor.u32 %v2326, 2147483648
        %v2378 = vmul.f32 %v2377, 1.442695
        %v2379 = vpow.pop %v2378
        %v2380 = vadd.f32 %v2379, 1.0
        %v2381 = vrcp.pop %v2380
        %v2382 = vmul.f32 1.0, %v2381
        %v2383 = vtanh.pop %v2365
        %v2384 = vxor.u32 %v2367, 2147483648
        %v2385 = vmul.f32 %v2384, 1.442695
        %v2386 = vpow.pop %v2385
        %v2387 = vadd.f32 %v2386, 1.0
        %v2388 = vrcp.pop %v2387
        %v2389 = vmul.f32 1.0, %v2388
        %v2390 = vmul.f32 %v2382, 0.0
        %v2391 = vmul.f32 %v2376, %v2383
        %v2392 = vadd.f32 %v2390, %v2391
        %v2393 = vtanh.pop %v2392
        %v2394 = vmul.f32 %v2389, %v2393
        %s2395 = scalar_lea.vmem [#allocation2], 32
        %v2396 = vld [vmem:[%s2395] sm:$0xff]
        %v2397 = vld [vmem:[%s2395 + $0x8] sm:$0xff]
        %v2398 = vld [vmem:[%s2395 + $0x10] sm:$0xff]
        %v2399 = vld [vmem:[%s2395 + $0x18] sm:$0xff]
        %2400 = vmatprep.subr.bf16.mxu0 %v1802
        %2401 = vmatpush1.bf16.msra.mxu0 %v1801
        %2402 = vmatprep.subr.bf16.mxu0 %v1798
        %2403 = vmatpush1.bf16.msra.mxu0 %v1797
        %2404 = vmatprep.subr.bf16.mxu0 %v1794
        %2405 = vmatpush1.bf16.msra.mxu0 %v1793
        %2406 = vmatprep.subr.bf16.mxu0 %v1790
        %2407 = vmatpush1.bf16.msra.mxu0 %v1789
        %2408 = vmatprep.subr.bf16.mxu0 %v1786
        %2409 = vmatpush1.bf16.msra.mxu0 %v1785
        %2410 = vmatprep.subr.bf16.mxu0 %v1782
        %2411 = vmatpush1.bf16.msra.mxu0 %v1781
        %2412 = vmatprep.subr.bf16.mxu0 %v1778
        %2413 = vmatpush1.bf16.msra.mxu0 %v1777
        %2414 = vmatprep.subr.bf16.mxu0 %v1774
        %2415 = vmatpush1.bf16.msra.mxu0 %v1773
        %2416 = vmatprep.subr.bf16.mxu0 0
        %2417 = vmatpush2.bf16.msra.mxu0 0
        %2418 = vmatprep.subr.bf16.mxu0 0
        %2419 = vmatpush2.bf16.msra.mxu0 0
        %2420 = vmatprep.subr.bf16.mxu0 0
        %2421 = vmatpush2.bf16.msra.mxu0 0
        %2422 = vmatprep.subr.bf16.mxu0 0
        %2423 = vmatpush2.bf16.msra.mxu0 0
        %2424 = vmatprep.subr.bf16.mxu0 0
        %2425 = vmatpush2.bf16.msra.mxu0 0
        %2426 = vmatprep.subr.bf16.mxu0 0
        %2427 = vmatpush2.bf16.msra.mxu0 0
        %2428 = vmatprep.subr.bf16.mxu0 0
        %2429 = vmatpush2.bf16.msra.mxu0 0
        %2430 = vmatprep.subr.bf16.mxu0 0
        %2431 = vmatpush2.bf16.msra.mxu0 0
        %2432 = vmatprep.mubr.bf16.mxu0 0
        %2433 = vmatmul.mubr.bf16.gmra.mxu0 %v1947
        %v2434 = vpop.f32.mrf.mxu0
        %v2435 = vadd.f32 0.0, %v2434
        %v2436 = vpop.f32.mrf.mxu0
        %v2437 = vadd.f32 0.0, %v2436
        %v2438 = vpop.f32.mrf.mxu0
        %v2439 = vpop.f32.mrf.mxu0
        %2440 = vdwg.mxu0
        %2441 = vmatprep.subr.bf16.mxu0 %v1804
        %2442 = vmatpush1.bf16.msra.mxu0 %v1803
        %2443 = vmatprep.subr.bf16.mxu0 %v1800
        %2444 = vmatpush1.bf16.msra.mxu0 %v1799
        %2445 = vmatprep.subr.bf16.mxu0 %v1796
        %2446 = vmatpush1.bf16.msra.mxu0 %v1795
        %2447 = vmatprep.subr.bf16.mxu0 %v1792
        %2448 = vmatpush1.bf16.msra.mxu0 %v1791
        %2449 = vmatprep.subr.bf16.mxu0 %v1788
        %2450 = vmatpush1.bf16.msra.mxu0 %v1787
        %2451 = vmatprep.subr.bf16.mxu0 %v1784
        %2452 = vmatpush1.bf16.msra.mxu0 %v1783
        %2453 = vmatprep.subr.bf16.mxu0 %v1780
        %2454 = vmatpush1.bf16.msra.mxu0 %v1779
        %2455 = vmatprep.subr.bf16.mxu0 %v1776
        %2456 = vmatpush1.bf16.msra.mxu0 %v1775
        %2457 = vmatprep.subr.bf16.mxu0 0
        %2458 = vmatpush2.bf16.msra.mxu0 0
        %2459 = vmatprep.subr.bf16.mxu0 0
        %2460 = vmatpush2.bf16.msra.mxu0 0
        %2461 = vmatprep.subr.bf16.mxu0 0
        %2462 = vmatpush2.bf16.msra.mxu0 0
        %2463 = vmatprep.subr.bf16.mxu0 0
        %2464 = vmatpush2.bf16.msra.mxu0 0
        %2465 = vmatprep.subr.bf16.mxu0 0
        %2466 = vmatpush2.bf16.msra.mxu0 0
        %2467 = vmatprep.subr.bf16.mxu0 0
        %2468 = vmatpush2.bf16.msra.mxu0 0
        %2469 = vmatprep.subr.bf16.mxu0 0
        %2470 = vmatpush2.bf16.msra.mxu0 0
        %2471 = vmatprep.subr.bf16.mxu0 0
        %2472 = vmatpush2.bf16.msra.mxu0 0
        %2473 = vmatprep.mubr.bf16.mxu0 0
        %2474 = vmatmul.mubr.bf16.gmra.mxu0 %v1947
        %v2475 = vpop.f32.mrf.mxu0
        %v2476 = vadd.f32 0.0, %v2475
        %v2477 = vpop.f32.mrf.mxu0
        %v2478 = vadd.f32 0.0, %v2477
        %v2479 = vpop.f32.mrf.mxu0
        %v2480 = vpop.f32.mrf.mxu0
        %2481 = vdwg.mxu0
        %v2482 = vadd.f32 %v2396, %v2435
        %v2483 = vadd.f32 %v2397, %v2437
        %v2484 = vadd.f32 %v2398, %v2476
        %v2485 = vadd.f32 %v2399, %v2478
        %v2486 = vxor.u32 %v2482, 2147483648
        %v2487 = vmul.f32 %v2486, 1.442695
        %v2488 = vpow.pop %v2487
        %v2489 = vadd.f32 %v2488, 1.0
        %v2490 = vrcp.pop %v2489
        %v2491 = vmul.f32 1.0, %v2490
        %v2492 = vxor.u32 %v2483, 2147483648
        %v2493 = vmul.f32 %v2492, 1.442695
        %v2494 = vpow.pop %v2493
        %v2495 = vadd.f32 %v2494, 1.0
        %v2496 = vrcp.pop %v2495
        %v2497 = vmul.f32 1.0, %v2496
        %v2498 = vtanh.pop %v2484
        %v2499 = vxor.u32 %v2485, 2147483648
        %v2500 = vmul.f32 %v2499, 1.442695
        %v2501 = vpow.pop %v2500
        %v2502 = vadd.f32 %v2501, 1.0
        %v2503 = vrcp.pop %v2502
        %v2504 = vmul.f32 1.0, %v2503
        %v2505 = vmul.f32 %v2497, %v1944
        %v2506 = vmul.f32 %v2491, %v2498
        %v2507 = vadd.f32 %v2505, %v2506
        %v2508 = vtanh.pop %v2507
        %v2509 = vmul.f32 %v2504, %v2508
        %v2510 = vpack.c.bf16 %v2509, %v2509
        %v2511 = vpack.c.bf16 %v2394, %v2394
        %2512 = vmatprep.subr.bf16.mxu0 %v2190
        %2513 = vmatpush1.bf16.msra.mxu0 %v2189
        %2514 = vmatprep.subr.bf16.mxu0 %v2186
        %2515 = vmatpush1.bf16.msra.mxu0 %v2185
        %2516 = vmatprep.subr.bf16.mxu0 %v2182
        %2517 = vmatpush1.bf16.msra.mxu0 %v2181
        %2518 = vmatprep.subr.bf16.mxu0 %v2178
        %2519 = vmatpush1.bf16.msra.mxu0 %v2177
        %2520 = vmatprep.subr.bf16.mxu0 %v2174
        %2521 = vmatpush1.bf16.msra.mxu0 %v2173
        %2522 = vmatprep.subr.bf16.mxu0 %v2170
        %2523 = vmatpush1.bf16.msra.mxu0 %v2169
        %2524 = vmatprep.subr.bf16.mxu0 %v2166
        %2525 = vmatpush1.bf16.msra.mxu0 %v2165
        %2526 = vmatprep.subr.bf16.mxu0 %v2162
        %2527 = vmatpush1.bf16.msra.mxu0 %v2161
        %2528 = vmatprep.subr.bf16.mxu0 %v2222
        %2529 = vmatpush2.bf16.msra.mxu0 %v2221
        %2530 = vmatprep.subr.bf16.mxu0 %v2218
        %2531 = vmatpush2.bf16.msra.mxu0 %v2217
        %2532 = vmatprep.subr.bf16.mxu0 %v2214
        %2533 = vmatpush2.bf16.msra.mxu0 %v2213
        %2534 = vmatprep.subr.bf16.mxu0 %v2210
        %2535 = vmatpush2.bf16.msra.mxu0 %v2209
        %2536 = vmatprep.subr.bf16.mxu0 %v2206
        %2537 = vmatpush2.bf16.msra.mxu0 %v2205
        %2538 = vmatprep.subr.bf16.mxu0 %v2202
        %2539 = vmatpush2.bf16.msra.mxu0 %v2201
        %2540 = vmatprep.subr.bf16.mxu0 %v2198
        %2541 = vmatpush2.bf16.msra.mxu0 %v2197
        %2542 = vmatprep.subr.bf16.mxu0 %v2194
        %2543 = vmatpush2.bf16.msra.mxu0 %v2193
        %2544 = vmatprep.mubr.bf16.mxu0 %v2511
        %2545 = vmatmul.mubr.bf16.gmra.mxu0 %v2510
        %v2546 = vpop.f32.mrf.mxu0
        %v2547 = vadd.f32 %v1952, %v2546
        %v2548 = vpop.f32.mrf.mxu0
        %v2549 = vadd.f32 %v1956, %v2548
        %v2550 = vpop.f32.mrf.mxu0
        %v2551 = vpop.f32.mrf.mxu0
        %2552 = vdwg.mxu0
        %2553 = vmatprep.subr.bf16.mxu0 %v2192
        %2554 = vmatpush1.bf16.msra.mxu0 %v2191
        %2555 = vmatprep.subr.bf16.mxu0 %v2188
        %2556 = vmatpush1.bf16.msra.mxu0 %v2187
        %2557 = vmatprep.subr.bf16.mxu0 %v2184
        %2558 = vmatpush1.bf16.msra.mxu0 %v2183
        %2559 = vmatprep.subr.bf16.mxu0 %v2180
        %2560 = vmatpush1.bf16.msra.mxu0 %v2179
        %2561 = vmatprep.subr.bf16.mxu0 %v2176
        %2562 = vmatpush1.bf16.msra.mxu0 %v2175
        %2563 = vmatprep.subr.bf16.mxu0 %v2172
        %2564 = vmatpush1.bf16.msra.mxu0 %v2171
        %2565 = vmatprep.subr.bf16.mxu0 %v2168
        %2566 = vmatpush1.bf16.msra.mxu0 %v2167
        %2567 = vmatprep.subr.bf16.mxu0 %v2164
        %2568 = vmatpush1.bf16.msra.mxu0 %v2163
        %2569 = vmatprep.subr.bf16.mxu0 %v2224
        %2570 = vmatpush2.bf16.msra.mxu0 %v2223
        %2571 = vmatprep.subr.bf16.mxu0 %v2220
        %2572 = vmatpush2.bf16.msra.mxu0 %v2219
        %2573 = vmatprep.subr.bf16.mxu0 %v2216
        %2574 = vmatpush2.bf16.msra.mxu0 %v2215
        %2575 = vmatprep.subr.bf16.mxu0 %v2212
        %2576 = vmatpush2.bf16.msra.mxu0 %v2211
        %2577 = vmatprep.subr.bf16.mxu0 %v2208
        %2578 = vmatpush2.bf16.msra.mxu0 %v2207
        %2579 = vmatprep.subr.bf16.mxu0 %v2204
        %2580 = vmatpush2.bf16.msra.mxu0 %v2203
        %2581 = vmatprep.subr.bf16.mxu0 %v2200
        %2582 = vmatpush2.bf16.msra.mxu0 %v2199
        %2583 = vmatprep.subr.bf16.mxu0 %v2196
        %2584 = vmatpush2.bf16.msra.mxu0 %v2195
        %2585 = vmatprep.mubr.bf16.mxu0 %v2511
        %2586 = vmatmul.mubr.bf16.gmra.mxu0 %v2510
        %v2587 = vpop.f32.mrf.mxu0
        %v2588 = vadd.f32 %v1960, %v2587
        %v2589 = vpop.f32.mrf.mxu0
        %v2590 = vadd.f32 %v1964, %v2589
        %v2591 = vpop.f32.mrf.mxu0
        %v2592 = vpop.f32.mrf.mxu0
        %2593 = vdwg.mxu0
        %v2594 = vxor.u32 %v2547, 2147483648
        %v2595 = vmul.f32 %v2594, 1.442695
        %v2596 = vpow.pop %v2595
        %v2597 = vadd.f32 %v2596, 1.0
        %v2598 = vrcp.pop %v2597
        %v2599 = vmul.f32 1.0, %v2598
        %v2600 = vxor.u32 %v2549, 2147483648
        %v2601 = vmul.f32 %v2600, 1.442695
        %v2602 = vpow.pop %v2601
        %v2603 = vadd.f32 %v2602, 1.0
        %v2604 = vrcp.pop %v2603
        %v2605 = vmul.f32 1.0, %v2604
        %v2606 = vtanh.pop %v2588
        %v2607 = vxor.u32 %v2590, 2147483648
        %v2608 = vmul.f32 %v2607, 1.442695
        %v2609 = vpow.pop %v2608
        %v2610 = vadd.f32 %v2609, 1.0
        %v2611 = vrcp.pop %v2610
        %v2612 = vmul.f32 1.0, %v2611
        %v2613 = vmul.f32 %v2605, %v2392
        %v2614 = vmul.f32 %v2599, %v2606
        %v2615 = vadd.f32 %v2613, %v2614
        %v2616 = vtanh.pop %v2615
        %v2617 = vmul.f32 %v2612, %v2616
        %s2618 = scalar_lea.vmem [#allocation2], 64
        %v2619 = vld [vmem:[%s2618] sm:$0xff]
        %v2620 = vld [vmem:[%s2618 + $0x8] sm:$0xff]
        %v2621 = vld [vmem:[%s2618 + $0x10] sm:$0xff]
        %v2622 = vld [vmem:[%s2618 + $0x18] sm:$0xff]
        %2623 = vmatprep.subr.bf16.mxu0 %v1802
        %2624 = vmatpush1.bf16.msra.mxu0 %v1801
        %2625 = vmatprep.subr.bf16.mxu0 %v1798
        %2626 = vmatpush1.bf16.msra.mxu0 %v1797
        %2627 = vmatprep.subr.bf16.mxu0 %v1794
        %2628 = vmatpush1.bf16.msra.mxu0 %v1793
        %2629 = vmatprep.subr.bf16.mxu0 %v1790
        %2630 = vmatpush1.bf16.msra.mxu0 %v1789
        %2631 = vmatprep.subr.bf16.mxu0 %v1786
        %2632 = vmatpush1.bf16.msra.mxu0 %v1785
        %2633 = vmatprep.subr.bf16.mxu0 %v1782
        %2634 = vmatpush1.bf16.msra.mxu0 %v1781
        %2635 = vmatprep.subr.bf16.mxu0 %v1778
        %2636 = vmatpush1.bf16.msra.mxu0 %v1777
        %2637 = vmatprep.subr.bf16.mxu0 %v1774
        %2638 = vmatpush1.bf16.msra.mxu0 %v1773
        %2639 = vmatprep.subr.bf16.mxu0 0
        %2640 = vmatpush2.bf16.msra.mxu0 0
        %2641 = vmatprep.subr.bf16.mxu0 0
        %2642 = vmatpush2.bf16.msra.mxu0 0
        %2643 = vmatprep.subr.bf16.mxu0 0
        %2644 = vmatpush2.bf16.msra.mxu0 0
        %2645 = vmatprep.subr.bf16.mxu0 0
        %2646 = vmatpush2.bf16.msra.mxu0 0
        %2647 = vmatprep.subr.bf16.mxu0 0
        %2648 = vmatpush2.bf16.msra.mxu0 0
        %2649 = vmatprep.subr.bf16.mxu0 0
        %2650 = vmatpush2.bf16.msra.mxu0 0
        %2651 = vmatprep.subr.bf16.mxu0 0
        %2652 = vmatpush2.bf16.msra.mxu0 0
        %2653 = vmatprep.subr.bf16.mxu0 0
        %2654 = vmatpush2.bf16.msra.mxu0 0
        %2655 = vmatprep.mubr.bf16.mxu0 0
        %2656 = vmatmul.mubr.bf16.gmra.mxu0 %v2510
        %v2657 = vpop.f32.mrf.mxu0
        %v2658 = vadd.f32 0.0, %v2657
        %v2659 = vpop.f32.mrf.mxu0
        %v2660 = vadd.f32 0.0, %v2659
        %v2661 = vpop.f32.mrf.mxu0
        %v2662 = vpop.f32.mrf.mxu0
        %2663 = vdwg.mxu0
        %2664 = vmatprep.subr.bf16.mxu0 %v1804
        %2665 = vmatpush1.bf16.msra.mxu0 %v1803
        %2666 = vmatprep.subr.bf16.mxu0 %v1800
        %2667 = vmatpush1.bf16.msra.mxu0 %v1799
        %2668 = vmatprep.subr.bf16.mxu0 %v1796
        %2669 = vmatpush1.bf16.msra.mxu0 %v1795
        %2670 = vmatprep.subr.bf16.mxu0 %v1792
        %2671 = vmatpush1.bf16.msra.mxu0 %v1791
        %2672 = vmatprep.subr.bf16.mxu0 %v1788
        %2673 = vmatpush1.bf16.msra.mxu0 %v1787
        %2674 = vmatprep.subr.bf16.mxu0 %v1784
        %2675 = vmatpush1.bf16.msra.mxu0 %v1783
        %2676 = vmatprep.subr.bf16.mxu0 %v1780
        %2677 = vmatpush1.bf16.msra.mxu0 %v1779
        %2678 = vmatprep.subr.bf16.mxu0 %v1776
        %2679 = vmatpush1.bf16.msra.mxu0 %v1775
        %2680 = vmatprep.subr.bf16.mxu0 0
        %2681 = vmatpush2.bf16.msra.mxu0 0
        %2682 = vmatprep.subr.bf16.mxu0 0
        %2683 = vmatpush2.bf16.msra.mxu0 0
        %2684 = vmatprep.subr.bf16.mxu0 0
        %2685 = vmatpush2.bf16.msra.mxu0 0
        %2686 = vmatprep.subr.bf16.mxu0 0
        %2687 = vmatpush2.bf16.msra.mxu0 0
        %2688 = vmatprep.subr.bf16.mxu0 0
        %2689 = vmatpush2.bf16.msra.mxu0 0
        %2690 = vmatprep.subr.bf16.mxu0 0
        %2691 = vmatpush2.bf16.msra.mxu0 0
        %2692 = vmatprep.subr.bf16.mxu0 0
        %2693 = vmatpush2.bf16.msra.mxu0 0
        %2694 = vmatprep.subr.bf16.mxu0 0
        %2695 = vmatpush2.bf16.msra.mxu0 0
        %2696 = vmatprep.mubr.bf16.mxu0 0
        %2697 = vmatmul.mubr.bf16.gmra.mxu0 %v2510
        %v2698 = vpop.f32.mrf.mxu0
        %v2699 = vadd.f32 0.0, %v2698
        %v2700 = vpop.f32.mrf.mxu0
        %v2701 = vadd.f32 0.0, %v2700
        %v2702 = vpop.f32.mrf.mxu0
        %v2703 = vpop.f32.mrf.mxu0
        %2704 = vdwg.mxu0
        %v2705 = vadd.f32 %v2619, %v2658
        %v2706 = vadd.f32 %v2620, %v2660
        %v2707 = vadd.f32 %v2621, %v2699
        %v2708 = vadd.f32 %v2622, %v2701
        %v2709 = vxor.u32 %v2705, 2147483648
        %v2710 = vmul.f32 %v2709, 1.442695
        %v2711 = vpow.pop %v2710
        %v2712 = vadd.f32 %v2711, 1.0
        %v2713 = vrcp.pop %v2712
        %v2714 = vmul.f32 1.0, %v2713
        %v2715 = vxor.u32 %v2706, 2147483648
        %v2716 = vmul.f32 %v2715, 1.442695
        %v2717 = vpow.pop %v2716
        %v2718 = vadd.f32 %v2717, 1.0
        %v2719 = vrcp.pop %v2718
        %v2720 = vmul.f32 1.0, %v2719
        %v2721 = vtanh.pop %v2707
        %v2722 = vxor.u32 %v2708, 2147483648
        %v2723 = vmul.f32 %v2722, 1.442695
        %v2724 = vpow.pop %v2723
        %v2725 = vadd.f32 %v2724, 1.0
        %v2726 = vrcp.pop %v2725
        %v2727 = vmul.f32 1.0, %v2726
        %v2728 = vmul.f32 %v2720, %v2507
        %v2729 = vmul.f32 %v2714, %v2721
        %v2730 = vadd.f32 %v2728, %v2729
        %v2731 = vtanh.pop %v2730
        %v2732 = vmul.f32 %v2727, %v2731
        %v2733 = vpack.c.bf16 %v2732, %v2732
        %v2734 = vpack.c.bf16 %v2617, %v2617
        %2735 = vmatprep.subr.bf16.mxu0 %v2190
        %2736 = vmatpush1.bf16.msra.mxu0 %v2189
        %2737 = vmatprep.subr.bf16.mxu0 %v2186
        %2738 = vmatpush1.bf16.msra.mxu0 %v2185
        %2739 = vmatprep.subr.bf16.mxu0 %v2182
        %2740 = vmatpush1.bf16.msra.mxu0 %v2181
        %2741 = vmatprep.subr.bf16.mxu0 %v2178
        %2742 = vmatpush1.bf16.msra.mxu0 %v2177
        %2743 = vmatprep.subr.bf16.mxu0 %v2174
        %2744 = vmatpush1.bf16.msra.mxu0 %v2173
        %2745 = vmatprep.subr.bf16.mxu0 %v2170
        %2746 = vmatpush1.bf16.msra.mxu0 %v2169
        %2747 = vmatprep.subr.bf16.mxu0 %v2166
        %2748 = vmatpush1.bf16.msra.mxu0 %v2165
        %2749 = vmatprep.subr.bf16.mxu0 %v2162
        %2750 = vmatpush1.bf16.msra.mxu0 %v2161
        %2751 = vmatprep.subr.bf16.mxu0 %v2222
        %2752 = vmatpush2.bf16.msra.mxu0 %v2221
        %2753 = vmatprep.subr.bf16.mxu0 %v2218
        %2754 = vmatpush2.bf16.msra.mxu0 %v2217
        %2755 = vmatprep.subr.bf16.mxu0 %v2214
        %2756 = vmatpush2.bf16.msra.mxu0 %v2213
        %2757 = vmatprep.subr.bf16.mxu0 %v2210
        %2758 = vmatpush2.bf16.msra.mxu0 %v2209
        %2759 = vmatprep.subr.bf16.mxu0 %v2206
        %2760 = vmatpush2.bf16.msra.mxu0 %v2205
        %2761 = vmatprep.subr.bf16.mxu0 %v2202
        %2762 = vmatpush2.bf16.msra.mxu0 %v2201
        %2763 = vmatprep.subr.bf16.mxu0 %v2198
        %2764 = vmatpush2.bf16.msra.mxu0 %v2197
        %2765 = vmatprep.subr.bf16.mxu0 %v2194
        %2766 = vmatpush2.bf16.msra.mxu0 %v2193
        %2767 = vmatprep.mubr.bf16.mxu0 %v2734
        %2768 = vmatmul.mubr.bf16.gmra.mxu0 %v2733
        %v2769 = vpop.f32.mrf.mxu0
        %v2770 = vadd.f32 %v1952, %v2769
        %v2771 = vpop.f32.mrf.mxu0
        %v2772 = vadd.f32 %v1956, %v2771
        %v2773 = vpop.f32.mrf.mxu0
        %v2774 = vpop.f32.mrf.mxu0
        %2775 = vdwg.mxu0
        %2776 = vmatprep.subr.bf16.mxu0 %v2192
        %2777 = vmatpush1.bf16.msra.mxu0 %v2191
        %2778 = vmatprep.subr.bf16.mxu0 %v2188
        %2779 = vmatpush1.bf16.msra.mxu0 %v2187
        %2780 = vmatprep.subr.bf16.mxu0 %v2184
        %2781 = vmatpush1.bf16.msra.mxu0 %v2183
        %2782 = vmatprep.subr.bf16.mxu0 %v2180
        %2783 = vmatpush1.bf16.msra.mxu0 %v2179
        %2784 = vmatprep.subr.bf16.mxu0 %v2176
        %2785 = vmatpush1.bf16.msra.mxu0 %v2175
        %2786 = vmatprep.subr.bf16.mxu0 %v2172
        %2787 = vmatpush1.bf16.msra.mxu0 %v2171
        %2788 = vmatprep.subr.bf16.mxu0 %v2168
        %2789 = vmatpush1.bf16.msra.mxu0 %v2167
        %2790 = vmatprep.subr.bf16.mxu0 %v2164
        %2791 = vmatpush1.bf16.msra.mxu0 %v2163
        %2792 = vmatprep.subr.bf16.mxu0 %v2224
        %2793 = vmatpush2.bf16.msra.mxu0 %v2223
        %2794 = vmatprep.subr.bf16.mxu0 %v2220
        %2795 = vmatpush2.bf16.msra.mxu0 %v2219
        %2796 = vmatprep.subr.bf16.mxu0 %v2216
        %2797 = vmatpush2.bf16.msra.mxu0 %v2215
        %2798 = vmatprep.subr.bf16.mxu0 %v2212
        %2799 = vmatpush2.bf16.msra.mxu0 %v2211
        %2800 = vmatprep.subr.bf16.mxu0 %v2208
        %2801 = vmatpush2.bf16.msra.mxu0 %v2207
        %2802 = vmatprep.subr.bf16.mxu0 %v2204
        %2803 = vmatpush2.bf16.msra.mxu0 %v2203
        %2804 = vmatprep.subr.bf16.mxu0 %v2200
        %2805 = vmatpush2.bf16.msra.mxu0 %v2199
        %2806 = vmatprep.subr.bf16.mxu0 %v2196
        %2807 = vmatpush2.bf16.msra.mxu0 %v2195
        %2808 = vmatprep.mubr.bf16.mxu0 %v2734
        %2809 = vmatmul.mubr.bf16.gmra.mxu0 %v2733
        %v2810 = vpop.f32.mrf.mxu0
        %v2811 = vadd.f32 %v1960, %v2810
        %v2812 = vpop.f32.mrf.mxu0
        %v2813 = vadd.f32 %v1964, %v2812
        %v2814 = vpop.f32.mrf.mxu0
        %v2815 = vpop.f32.mrf.mxu0
        %2816 = vdwg.mxu0
        %v2817 = vxor.u32 %v2770, 2147483648
        %v2818 = vmul.f32 %v2817, 1.442695
        %v2819 = vpow.pop %v2818
        %v2820 = vadd.f32 %v2819, 1.0
        %v2821 = vrcp.pop %v2820
        %v2822 = vmul.f32 1.0, %v2821
        %v2823 = vxor.u32 %v2772, 2147483648
        %v2824 = vmul.f32 %v2823, 1.442695
        %v2825 = vpow.pop %v2824
        %v2826 = vadd.f32 %v2825, 1.0
        %v2827 = vrcp.pop %v2826
        %v2828 = vmul.f32 1.0, %v2827
        %v2829 = vtanh.pop %v2811
        %v2830 = vxor.u32 %v2813, 2147483648
        %v2831 = vmul.f32 %v2830, 1.442695
        %v2832 = vpow.pop %v2831
        %v2833 = vadd.f32 %v2832, 1.0
        %v2834 = vrcp.pop %v2833
        %v2835 = vmul.f32 1.0, %v2834
        %v2836 = vmul.f32 %v2828, %v2615
        %v2837 = vmul.f32 %v2822, %v2829
        %v2838 = vadd.f32 %v2836, %v2837
        %v2839 = vtanh.pop %v2838
        %v2840 = vmul.f32 %v2835, %v2839
        %s2841 = scalar_lea.vmem [#allocation2], 96
        %v2842 = vld [vmem:[%s2841] sm:$0xff]
        %v2843 = vld [vmem:[%s2841 + $0x8] sm:$0xff]
        %v2844 = vld [vmem:[%s2841 + $0x10] sm:$0xff]
        %v2845 = vld [vmem:[%s2841 + $0x18] sm:$0xff]
        %2846 = vmatprep.subr.bf16.mxu0 %v1802
        %2847 = vmatpush1.bf16.msra.mxu0 %v1801
        %2848 = vmatprep.subr.bf16.mxu0 %v1798
        %2849 = vmatpush1.bf16.msra.mxu0 %v1797
        %2850 = vmatprep.subr.bf16.mxu0 %v1794
        %2851 = vmatpush1.bf16.msra.mxu0 %v1793
        %2852 = vmatprep.subr.bf16.mxu0 %v1790
        %2853 = vmatpush1.bf16.msra.mxu0 %v1789
        %2854 = vmatprep.subr.bf16.mxu0 %v1786
        %2855 = vmatpush1.bf16.msra.mxu0 %v1785
        %2856 = vmatprep.subr.bf16.mxu0 %v1782
        %2857 = vmatpush1.bf16.msra.mxu0 %v1781
        %2858 = vmatprep.subr.bf16.mxu0 %v1778
        %2859 = vmatpush1.bf16.msra.mxu0 %v1777
        %2860 = vmatprep.subr.bf16.mxu0 %v1774
        %2861 = vmatpush1.bf16.msra.mxu0 %v1773
        %2862 = vmatprep.subr.bf16.mxu0 0
        %2863 = vmatpush2.bf16.msra.mxu0 0
        %2864 = vmatprep.subr.bf16.mxu0 0
        %2865 = vmatpush2.bf16.msra.mxu0 0
        %2866 = vmatprep.subr.bf16.mxu0 0
        %2867 = vmatpush2.bf16.msra.mxu0 0
        %2868 = vmatprep.subr.bf16.mxu0 0
        %2869 = vmatpush2.bf16.msra.mxu0 0
        %2870 = vmatprep.subr.bf16.mxu0 0
        %2871 = vmatpush2.bf16.msra.mxu0 0
        %2872 = vmatprep.subr.bf16.mxu0 0
        %2873 = vmatpush2.bf16.msra.mxu0 0
        %2874 = vmatprep.subr.bf16.mxu0 0
        %2875 = vmatpush2.bf16.msra.mxu0 0
        %2876 = vmatprep.subr.bf16.mxu0 0
        %2877 = vmatpush2.bf16.msra.mxu0 0
        %2878 = vmatprep.mubr.bf16.mxu0 0
        %2879 = vmatmul.mubr.bf16.gmra.mxu0 %v2733
        %v2880 = vpop.f32.mrf.mxu0
        %v2881 = vadd.f32 0.0, %v2880
        %v2882 = vpop.f32.mrf.mxu0
        %v2883 = vadd.f32 0.0, %v2882
        %v2884 = vpop.f32.mrf.mxu0
        %v2885 = vpop.f32.mrf.mxu0
        %2886 = vdwg.mxu0
        %2887 = vmatprep.subr.bf16.mxu0 %v1804
        %2888 = vmatpush1.bf16.msra.mxu0 %v1803
        %2889 = vmatprep.subr.bf16.mxu0 %v1800
        %2890 = vmatpush1.bf16.msra.mxu0 %v1799
        %2891 = vmatprep.subr.bf16.mxu0 %v1796
        %2892 = vmatpush1.bf16.msra.mxu0 %v1795
        %2893 = vmatprep.subr.bf16.mxu0 %v1792
        %2894 = vmatpush1.bf16.msra.mxu0 %v1791
        %2895 = vmatprep.subr.bf16.mxu0 %v1788
        %2896 = vmatpush1.bf16.msra.mxu0 %v1787
        %2897 = vmatprep.subr.bf16.mxu0 %v1784
        %2898 = vmatpush1.bf16.msra.mxu0 %v1783
        %2899 = vmatprep.subr.bf16.mxu0 %v1780
        %2900 = vmatpush1.bf16.msra.mxu0 %v1779
        %2901 = vmatprep.subr.bf16.mxu0 %v1776
        %2902 = vmatpush1.bf16.msra.mxu0 %v1775
        %2903 = vmatprep.subr.bf16.mxu0 0
        %2904 = vmatpush2.bf16.msra.mxu0 0
        %2905 = vmatprep.subr.bf16.mxu0 0
        %2906 = vmatpush2.bf16.msra.mxu0 0
        %2907 = vmatprep.subr.bf16.mxu0 0
        %2908 = vmatpush2.bf16.msra.mxu0 0
        %2909 = vmatprep.subr.bf16.mxu0 0
        %2910 = vmatpush2.bf16.msra.mxu0 0
        %2911 = vmatprep.subr.bf16.mxu0 0
        %2912 = vmatpush2.bf16.msra.mxu0 0
        %2913 = vmatprep.subr.bf16.mxu0 0
        %2914 = vmatpush2.bf16.msra.mxu0 0
        %2915 = vmatprep.subr.bf16.mxu0 0
        %2916 = vmatpush2.bf16.msra.mxu0 0
        %2917 = vmatprep.subr.bf16.mxu0 0
        %2918 = vmatpush2.bf16.msra.mxu0 0
        %2919 = vmatprep.mubr.bf16.mxu0 0
        %2920 = vmatmul.mubr.bf16.gmra.mxu0 %v2733
        %v2921 = vpop.f32.mrf.mxu0
        %v2922 = vadd.f32 0.0, %v2921
        %v2923 = vpop.f32.mrf.mxu0
        %v2924 = vadd.f32 0.0, %v2923
        %v2925 = vpop.f32.mrf.mxu0
        %v2926 = vpop.f32.mrf.mxu0
        %2927 = vdwg.mxu0
        %v2928 = vadd.f32 %v2842, %v2881
        %v2929 = vadd.f32 %v2843, %v2883
        %v2930 = vadd.f32 %v2844, %v2922
        %v2931 = vadd.f32 %v2845, %v2924
        %v2932 = vxor.u32 %v2928, 2147483648
        %v2933 = vmul.f32 %v2932, 1.442695
        %v2934 = vpow.pop %v2933
        %v2935 = vadd.f32 %v2934, 1.0
        %v2936 = vrcp.pop %v2935
        %v2937 = vmul.f32 1.0, %v2936
        %v2938 = vxor.u32 %v2929, 2147483648
        %v2939 = vmul.f32 %v2938, 1.442695
        %v2940 = vpow.pop %v2939
        %v2941 = vadd.f32 %v2940, 1.0
        %v2942 = vrcp.pop %v2941
        %v2943 = vmul.f32 1.0, %v2942
        %v2944 = vtanh.pop %v2930
        %v2945 = vxor.u32 %v2931, 2147483648
        %v2946 = vmul.f32 %v2945, 1.442695
        %v2947 = vpow.pop %v2946
        %v2948 = vadd.f32 %v2947, 1.0
        %v2949 = vrcp.pop %v2948
        %v2950 = vmul.f32 1.0, %v2949
        %v2951 = vmul.f32 %v2943, %v2730
        %v2952 = vmul.f32 %v2937, %v2944
        %v2953 = vadd.f32 %v2951, %v2952
        %v2954 = vtanh.pop %v2953
        %v2955 = vmul.f32 %v2950, %v2954
        %v2956 = vpack.c.bf16 %v2955, %v2955
        %v2957 = vpack.c.bf16 %v2840, %v2840
        %2958 = vmatprep.subr.bf16.mxu0 %v2190
        %2959 = vmatpush1.bf16.msra.mxu0 %v2189
        %2960 = vmatprep.subr.bf16.mxu0 %v2186
        %2961 = vmatpush1.bf16.msra.mxu0 %v2185
        %2962 = vmatprep.subr.bf16.mxu0 %v2182
        %2963 = vmatpush1.bf16.msra.mxu0 %v2181
        %2964 = vmatprep.subr.bf16.mxu0 %v2178
        %2965 = vmatpush1.bf16.msra.mxu0 %v2177
        %2966 = vmatprep.subr.bf16.mxu0 %v2174
        %2967 = vmatpush1.bf16.msra.mxu0 %v2173
        %2968 = vmatprep.subr.bf16.mxu0 %v2170
        %2969 = vmatpush1.bf16.msra.mxu0 %v2169
        %2970 = vmatprep.subr.bf16.mxu0 %v2166
        %2971 = vmatpush1.bf16.msra.mxu0 %v2165
        %2972 = vmatprep.subr.bf16.mxu0 %v2162
        %2973 = vmatpush1.bf16.msra.mxu0 %v2161
        %2974 = vmatprep.subr.bf16.mxu0 %v2222
        %2975 = vmatpush2.bf16.msra.mxu0 %v2221
        %2976 = vmatprep.subr.bf16.mxu0 %v2218
        %2977 = vmatpush2.bf16.msra.mxu0 %v2217
        %2978 = vmatprep.subr.bf16.mxu0 %v2214
        %2979 = vmatpush2.bf16.msra.mxu0 %v2213
        %2980 = vmatprep.subr.bf16.mxu0 %v2210
        %2981 = vmatpush2.bf16.msra.mxu0 %v2209
        %2982 = vmatprep.subr.bf16.mxu0 %v2206
        %2983 = vmatpush2.bf16.msra.mxu0 %v2205
        %2984 = vmatprep.subr.bf16.mxu0 %v2202
        %2985 = vmatpush2.bf16.msra.mxu0 %v2201
        %2986 = vmatprep.subr.bf16.mxu0 %v2198
        %2987 = vmatpush2.bf16.msra.mxu0 %v2197
        %2988 = vmatprep.subr.bf16.mxu0 %v2194
        %2989 = vmatpush2.bf16.msra.mxu0 %v2193
        %2990 = vmatprep.mubr.bf16.mxu0 %v2957
        %2991 = vmatmul.mubr.bf16.gmra.mxu0 %v2956
        %v2992 = vpop.f32.mrf.mxu0
        %v2993 = vadd.f32 %v1952, %v2992
        %v2994 = vpop.f32.mrf.mxu0
        %v2995 = vadd.f32 %v1956, %v2994
        %v2996 = vpop.f32.mrf.mxu0
        %v2997 = vpop.f32.mrf.mxu0
        %2998 = vdwg.mxu0
        %2999 = vmatprep.subr.bf16.mxu0 %v2192
        %3000 = vmatpush1.bf16.msra.mxu0 %v2191
        %3001 = vmatprep.subr.bf16.mxu0 %v2188
        %3002 = vmatpush1.bf16.msra.mxu0 %v2187
        %3003 = vmatprep.subr.bf16.mxu0 %v2184
        %3004 = vmatpush1.bf16.msra.mxu0 %v2183
        %3005 = vmatprep.subr.bf16.mxu0 %v2180
        %3006 = vmatpush1.bf16.msra.mxu0 %v2179
        %3007 = vmatprep.subr.bf16.mxu0 %v2176
        %3008 = vmatpush1.bf16.msra.mxu0 %v2175
        %3009 = vmatprep.subr.bf16.mxu0 %v2172
        %3010 = vmatpush1.bf16.msra.mxu0 %v2171
        %3011 = vmatprep.subr.bf16.mxu0 %v2168
        %3012 = vmatpush1.bf16.msra.mxu0 %v2167
        %3013 = vmatprep.subr.bf16.mxu0 %v2164
        %3014 = vmatpush1.bf16.msra.mxu0 %v2163
        %3015 = vmatprep.subr.bf16.mxu0 %v2224
        %3016 = vmatpush2.bf16.msra.mxu0 %v2223
        %3017 = vmatprep.subr.bf16.mxu0 %v2220
        %3018 = vmatpush2.bf16.msra.mxu0 %v2219
        %3019 = vmatprep.subr.bf16.mxu0 %v2216
        %3020 = vmatpush2.bf16.msra.mxu0 %v2215
        %3021 = vmatprep.subr.bf16.mxu0 %v2212
        %3022 = vmatpush2.bf16.msra.mxu0 %v2211
        %3023 = vmatprep.subr.bf16.mxu0 %v2208
        %3024 = vmatpush2.bf16.msra.mxu0 %v2207
        %3025 = vmatprep.subr.bf16.mxu0 %v2204
        %3026 = vmatpush2.bf16.msra.mxu0 %v2203
        %3027 = vmatprep.subr.bf16.mxu0 %v2200
        %3028 = vmatpush2.bf16.msra.mxu0 %v2199
        %3029 = vmatprep.subr.bf16.mxu0 %v2196
        %3030 = vmatpush2.bf16.msra.mxu0 %v2195
        %3031 = vmatprep.mubr.bf16.mxu0 %v2957
        %3032 = vmatmul.mubr.bf16.gmra.mxu0 %v2956
        %v3033 = vpop.f32.mrf.mxu0
        %v3034 = vadd.f32 %v1960, %v3033
        %v3035 = vpop.f32.mrf.mxu0
        %v3036 = vadd.f32 %v1964, %v3035
        %v3037 = vpop.f32.mrf.mxu0
        %v3038 = vpop.f32.mrf.mxu0
        %3039 = vdwg.mxu0
        %v3040 = vxor.u32 %v2993, 2147483648
        %v3041 = vmul.f32 %v3040, 1.442695
        %v3042 = vpow.pop %v3041
        %v3043 = vadd.f32 %v3042, 1.0
        %v3044 = vrcp.pop %v3043
        %v3045 = vmul.f32 1.0, %v3044
        %v3046 = vxor.u32 %v2995, 2147483648
        %v3047 = vmul.f32 %v3046, 1.442695
        %v3048 = vpow.pop %v3047
        %v3049 = vadd.f32 %v3048, 1.0
        %v3050 = vrcp.pop %v3049
        %v3051 = vmul.f32 1.0, %v3050
        %v3052 = vtanh.pop %v3034
        %v3053 = vxor.u32 %v3036, 2147483648
        %v3054 = vmul.f32 %v3053, 1.442695
        %v3055 = vpow.pop %v3054
        %v3056 = vadd.f32 %v3055, 1.0
        %v3057 = vrcp.pop %v3056
        %v3058 = vmul.f32 1.0, %v3057
        %v3059 = vmul.f32 %v3051, %v2838
        %v3060 = vmul.f32 %v3045, %v3052
        %v3061 = vadd.f32 %v3059, %v3060
        %v3062 = vtanh.pop %v3061
        %v3063 = vmul.f32 %v3058, %v3062
        %s3064 = scalar_lea.vmem [#allocation2], 128
        %v3065 = vld [vmem:[%s3064] sm:$0xff]
        %v3066 = vld [vmem:[%s3064 + $0x8] sm:$0xff]
        %v3067 = vld [vmem:[%s3064 + $0x10] sm:$0xff]
        %v3068 = vld [vmem:[%s3064 + $0x18] sm:$0xff]
        %3069 = vmatprep.subr.bf16.mxu0 %v1802
        %3070 = vmatpush1.bf16.msra.mxu0 %v1801
        %3071 = vmatprep.subr.bf16.mxu0 %v1798
        %3072 = vmatpush1.bf16.msra.mxu0 %v1797
        %3073 = vmatprep.subr.bf16.mxu0 %v1794
        %3074 = vmatpush1.bf16.msra.mxu0 %v1793
        %3075 = vmatprep.subr.bf16.mxu0 %v1790
        %3076 = vmatpush1.bf16.msra.mxu0 %v1789
        %3077 = vmatprep.subr.bf16.mxu0 %v1786
        %3078 = vmatpush1.bf16.msra.mxu0 %v1785
        %3079 = vmatprep.subr.bf16.mxu0 %v1782
        %3080 = vmatpush1.bf16.msra.mxu0 %v1781
        %3081 = vmatprep.subr.bf16.mxu0 %v1778
        %3082 = vmatpush1.bf16.msra.mxu0 %v1777
        %3083 = vmatprep.subr.bf16.mxu0 %v1774
        %3084 = vmatpush1.bf16.msra.mxu0 %v1773
        %3085 = vmatprep.subr.bf16.mxu0 0
        %3086 = vmatpush2.bf16.msra.mxu0 0
        %3087 = vmatprep.subr.bf16.mxu0 0
        %3088 = vmatpush2.bf16.msra.mxu0 0
        %3089 = vmatprep.subr.bf16.mxu0 0
        %3090 = vmatpush2.bf16.msra.mxu0 0
        %3091 = vmatprep.subr.bf16.mxu0 0
        %3092 = vmatpush2.bf16.msra.mxu0 0
        %3093 = vmatprep.subr.bf16.mxu0 0
        %3094 = vmatpush2.bf16.msra.mxu0 0
        %3095 = vmatprep.subr.bf16.mxu0 0
        %3096 = vmatpush2.bf16.msra.mxu0 0
        %3097 = vmatprep.subr.bf16.mxu0 0
        %3098 = vmatpush2.bf16.msra.mxu0 0
        %3099 = vmatprep.subr.bf16.mxu0 0
        %3100 = vmatpush2.bf16.msra.mxu0 0
        %3101 = vmatprep.mubr.bf16.mxu0 0
        %3102 = vmatmul.mubr.bf16.gmra.mxu0 %v2956
        %v3103 = vpop.f32.mrf.mxu0
        %v3104 = vadd.f32 0.0, %v3103
        %v3105 = vpop.f32.mrf.mxu0
        %v3106 = vadd.f32 0.0, %v3105
        %v3107 = vpop.f32.mrf.mxu0
        %v3108 = vpop.f32.mrf.mxu0
        %3109 = vdwg.mxu0
        %3110 = vmatprep.subr.bf16.mxu0 %v1804
        %3111 = vmatpush1.bf16.msra.mxu0 %v1803
        %3112 = vmatprep.subr.bf16.mxu0 %v1800
        %3113 = vmatpush1.bf16.msra.mxu0 %v1799
        %3114 = vmatprep.subr.bf16.mxu0 %v1796
        %3115 = vmatpush1.bf16.msra.mxu0 %v1795
        %3116 = vmatprep.subr.bf16.mxu0 %v1792
        %3117 = vmatpush1.bf16.msra.mxu0 %v1791
        %3118 = vmatprep.subr.bf16.mxu0 %v1788
        %3119 = vmatpush1.bf16.msra.mxu0 %v1787
        %3120 = vmatprep.subr.bf16.mxu0 %v1784
        %3121 = vmatpush1.bf16.msra.mxu0 %v1783
        %3122 = vmatprep.subr.bf16.mxu0 %v1780
        %3123 = vmatpush1.bf16.msra.mxu0 %v1779
        %3124 = vmatprep.subr.bf16.mxu0 %v1776
        %3125 = vmatpush1.bf16.msra.mxu0 %v1775
        %3126 = vmatprep.subr.bf16.mxu0 0
        %3127 = vmatpush2.bf16.msra.mxu0 0
        %3128 = vmatprep.subr.bf16.mxu0 0
        %3129 = vmatpush2.bf16.msra.mxu0 0
        %3130 = vmatprep.subr.bf16.mxu0 0
        %3131 = vmatpush2.bf16.msra.mxu0 0
        %3132 = vmatprep.subr.bf16.mxu0 0
        %3133 = vmatpush2.bf16.msra.mxu0 0
        %3134 = vmatprep.subr.bf16.mxu0 0
        %3135 = vmatpush2.bf16.msra.mxu0 0
        %3136 = vmatprep.subr.bf16.mxu0 0
        %3137 = vmatpush2.bf16.msra.mxu0 0
        %3138 = vmatprep.subr.bf16.mxu0 0
        %3139 = vmatpush2.bf16.msra.mxu0 0
        %3140 = vmatprep.subr.bf16.mxu0 0
        %3141 = vmatpush2.bf16.msra.mxu0 0
        %3142 = vmatprep.mubr.bf16.mxu0 0
        %3143 = vmatmul.mubr.bf16.gmra.mxu0 %v2956
        %v3144 = vpop.f32.mrf.mxu0
        %v3145 = vadd.f32 0.0, %v3144
        %v3146 = vpop.f32.mrf.mxu0
        %v3147 = vadd.f32 0.0, %v3146
        %v3148 = vpop.f32.mrf.mxu0
        %v3149 = vpop.f32.mrf.mxu0
        %3150 = vdwg.mxu0
        %v3151 = vadd.f32 %v3065, %v3104
        %v3152 = vadd.f32 %v3066, %v3106
        %v3153 = vadd.f32 %v3067, %v3145
        %v3154 = vadd.f32 %v3068, %v3147
        %v3155 = vxor.u32 %v3151, 2147483648
        %v3156 = vmul.f32 %v3155, 1.442695
        %v3157 = vpow.pop %v3156
        %v3158 = vadd.f32 %v3157, 1.0
        %v3159 = vrcp.pop %v3158
        %v3160 = vmul.f32 1.0, %v3159
        %v3161 = vxor.u32 %v3152, 2147483648
        %v3162 = vmul.f32 %v3161, 1.442695
        %v3163 = vpow.pop %v3162
        %v3164 = vadd.f32 %v3163, 1.0
        %v3165 = vrcp.pop %v3164
        %v3166 = vmul.f32 1.0, %v3165
        %v3167 = vtanh.pop %v3153
        %v3168 = vxor.u32 %v3154, 2147483648
        %v3169 = vmul.f32 %v3168, 1.442695
        %v3170 = vpow.pop %v3169
        %v3171 = vadd.f32 %v3170, 1.0
        %v3172 = vrcp.pop %v3171
        %v3173 = vmul.f32 1.0, %v3172
        %v3174 = vmul.f32 %v3166, %v2953
        %v3175 = vmul.f32 %v3160, %v3167
        %v3176 = vadd.f32 %v3174, %v3175
        %v3177 = vtanh.pop %v3176
        %v3178 = vmul.f32 %v3173, %v3177
        %v3179 = vpack.c.bf16 %v3178, %v3178
        %v3180 = vpack.c.bf16 %v3063, %v3063
        %3181 = vmatprep.subr.bf16.mxu0 %v2190
        %3182 = vmatpush1.bf16.msra.mxu0 %v2189
        %3183 = vmatprep.subr.bf16.mxu0 %v2186
        %3184 = vmatpush1.bf16.msra.mxu0 %v2185
        %3185 = vmatprep.subr.bf16.mxu0 %v2182
        %3186 = vmatpush1.bf16.msra.mxu0 %v2181
        %3187 = vmatprep.subr.bf16.mxu0 %v2178
        %3188 = vmatpush1.bf16.msra.mxu0 %v2177
        %3189 = vmatprep.subr.bf16.mxu0 %v2174
        %3190 = vmatpush1.bf16.msra.mxu0 %v2173
        %3191 = vmatprep.subr.bf16.mxu0 %v2170
        %3192 = vmatpush1.bf16.msra.mxu0 %v2169
        %3193 = vmatprep.subr.bf16.mxu0 %v2166
        %3194 = vmatpush1.bf16.msra.mxu0 %v2165
        %3195 = vmatprep.subr.bf16.mxu0 %v2162
        %3196 = vmatpush1.bf16.msra.mxu0 %v2161
        %3197 = vmatprep.subr.bf16.mxu0 %v2222
        %3198 = vmatpush2.bf16.msra.mxu0 %v2221
        %3199 = vmatprep.subr.bf16.mxu0 %v2218
        %3200 = vmatpush2.bf16.msra.mxu0 %v2217
        %3201 = vmatprep.subr.bf16.mxu0 %v2214
        %3202 = vmatpush2.bf16.msra.mxu0 %v2213
        %3203 = vmatprep.subr.bf16.mxu0 %v2210
        %3204 = vmatpush2.bf16.msra.mxu0 %v2209
        %3205 = vmatprep.subr.bf16.mxu0 %v2206
        %3206 = vmatpush2.bf16.msra.mxu0 %v2205
        %3207 = vmatprep.subr.bf16.mxu0 %v2202
        %3208 = vmatpush2.bf16.msra.mxu0 %v2201
        %3209 = vmatprep.subr.bf16.mxu0 %v2198
        %3210 = vmatpush2.bf16.msra.mxu0 %v2197
        %3211 = vmatprep.subr.bf16.mxu0 %v2194
        %3212 = vmatpush2.bf16.msra.mxu0 %v2193
        %3213 = vmatprep.mubr.bf16.mxu0 %v3180
        %3214 = vmatmul.mubr.bf16.gmra.mxu0 %v3179
        %v3215 = vpop.f32.mrf.mxu0
        %v3216 = vadd.f32 %v1952, %v3215
        %v3217 = vpop.f32.mrf.mxu0
        %v3218 = vadd.f32 %v1956, %v3217
        %v3219 = vpop.f32.mrf.mxu0
        %v3220 = vpop.f32.mrf.mxu0
        %3221 = vdwg.mxu0
        %3222 = vmatprep.subr.bf16.mxu0 %v2192
        %3223 = vmatpush1.bf16.msra.mxu0 %v2191
        %3224 = vmatprep.subr.bf16.mxu0 %v2188
        %3225 = vmatpush1.bf16.msra.mxu0 %v2187
        %3226 = vmatprep.subr.bf16.mxu0 %v2184
        %3227 = vmatpush1.bf16.msra.mxu0 %v2183
        %3228 = vmatprep.subr.bf16.mxu0 %v2180
        %3229 = vmatpush1.bf16.msra.mxu0 %v2179
        %3230 = vmatprep.subr.bf16.mxu0 %v2176
        %3231 = vmatpush1.bf16.msra.mxu0 %v2175
        %3232 = vmatprep.subr.bf16.mxu0 %v2172
        %3233 = vmatpush1.bf16.msra.mxu0 %v2171
        %3234 = vmatprep.subr.bf16.mxu0 %v2168
        %3235 = vmatpush1.bf16.msra.mxu0 %v2167
        %3236 = vmatprep.subr.bf16.mxu0 %v2164
        %3237 = vmatpush1.bf16.msra.mxu0 %v2163
        %3238 = vmatprep.subr.bf16.mxu0 %v2224
        %3239 = vmatpush2.bf16.msra.mxu0 %v2223
        %3240 = vmatprep.subr.bf16.mxu0 %v2220
        %3241 = vmatpush2.bf16.msra.mxu0 %v2219
        %3242 = vmatprep.subr.bf16.mxu0 %v2216
        %3243 = vmatpush2.bf16.msra.mxu0 %v2215
        %3244 = vmatprep.subr.bf16.mxu0 %v2212
        %3245 = vmatpush2.bf16.msra.mxu0 %v2211
        %3246 = vmatprep.subr.bf16.mxu0 %v2208
        %3247 = vmatpush2.bf16.msra.mxu0 %v2207
        %3248 = vmatprep.subr.bf16.mxu0 %v2204
        %3249 = vmatpush2.bf16.msra.mxu0 %v2203
        %3250 = vmatprep.subr.bf16.mxu0 %v2200
        %3251 = vmatpush2.bf16.msra.mxu0 %v2199
        %3252 = vmatprep.subr.bf16.mxu0 %v2196
        %3253 = vmatpush2.bf16.msra.mxu0 %v2195
        %3254 = vmatprep.mubr.bf16.mxu0 %v3180
        %3255 = vmatmul.mubr.bf16.gmra.mxu0 %v3179
        %v3256 = vpop.f32.mrf.mxu0
        %v3257 = vadd.f32 %v1960, %v3256
        %v3258 = vpop.f32.mrf.mxu0
        %v3259 = vadd.f32 %v1964, %v3258
        %v3260 = vpop.f32.mrf.mxu0
        %v3261 = vpop.f32.mrf.mxu0
        %3262 = vdwg.mxu0
        %v3263 = vxor.u32 %v3216, 2147483648
        %v3264 = vmul.f32 %v3263, 1.442695
        %v3265 = vpow.pop %v3264
        %v3266 = vadd.f32 %v3265, 1.0
        %v3267 = vrcp.pop %v3266
        %v3268 = vmul.f32 1.0, %v3267
        %v3269 = vxor.u32 %v3218, 2147483648
        %v3270 = vmul.f32 %v3269, 1.442695
        %v3271 = vpow.pop %v3270
        %v3272 = vadd.f32 %v3271, 1.0
        %v3273 = vrcp.pop %v3272
        %v3274 = vmul.f32 1.0, %v3273
        %v3275 = vtanh.pop %v3257
        %v3276 = vxor.u32 %v3259, 2147483648
        %v3277 = vmul.f32 %v3276, 1.442695
        %v3278 = vpow.pop %v3277
        %v3279 = vadd.f32 %v3278, 1.0
        %v3280 = vrcp.pop %v3279
        %v3281 = vmul.f32 1.0, %v3280
        %v3282 = vmul.f32 %v3274, %v3061
        %v3283 = vmul.f32 %v3268, %v3275
        %v3284 = vadd.f32 %v3282, %v3283
        %v3285 = vtanh.pop %v3284
        %v3286 = vmul.f32 %v3281, %v3285
        %s3287 = scalar_lea.vmem [#allocation2], 160
        %v3288 = vld [vmem:[%s3287] sm:$0xff]
        %v3289 = vld [vmem:[%s3287 + $0x8] sm:$0xff]
        %v3290 = vld [vmem:[%s3287 + $0x10] sm:$0xff]
        %v3291 = vld [vmem:[%s3287 + $0x18] sm:$0xff]
        %3292 = vmatprep.subr.bf16.mxu0 %v1802
        %3293 = vmatpush1.bf16.msra.mxu0 %v1801
        %3294 = vmatprep.subr.bf16.mxu0 %v1798
        %3295 = vmatpush1.bf16.msra.mxu0 %v1797
        %3296 = vmatprep.subr.bf16.mxu0 %v1794
        %3297 = vmatpush1.bf16.msra.mxu0 %v1793
        %3298 = vmatprep.subr.bf16.mxu0 %v1790
        %3299 = vmatpush1.bf16.msra.mxu0 %v1789
        %3300 = vmatprep.subr.bf16.mxu0 %v1786
        %3301 = vmatpush1.bf16.msra.mxu0 %v1785
        %3302 = vmatprep.subr.bf16.mxu0 %v1782
        %3303 = vmatpush1.bf16.msra.mxu0 %v1781
        %3304 = vmatprep.subr.bf16.mxu0 %v1778
        %3305 = vmatpush1.bf16.msra.mxu0 %v1777
        %3306 = vmatprep.subr.bf16.mxu0 %v1774
        %3307 = vmatpush1.bf16.msra.mxu0 %v1773
        %3308 = vmatprep.subr.bf16.mxu0 0
        %3309 = vmatpush2.bf16.msra.mxu0 0
        %3310 = vmatprep.subr.bf16.mxu0 0
        %3311 = vmatpush2.bf16.msra.mxu0 0
        %3312 = vmatprep.subr.bf16.mxu0 0
        %3313 = vmatpush2.bf16.msra.mxu0 0
        %3314 = vmatprep.subr.bf16.mxu0 0
        %3315 = vmatpush2.bf16.msra.mxu0 0
        %3316 = vmatprep.subr.bf16.mxu0 0
        %3317 = vmatpush2.bf16.msra.mxu0 0
        %3318 = vmatprep.subr.bf16.mxu0 0
        %3319 = vmatpush2.bf16.msra.mxu0 0
        %3320 = vmatprep.subr.bf16.mxu0 0
        %3321 = vmatpush2.bf16.msra.mxu0 0
        %3322 = vmatprep.subr.bf16.mxu0 0
        %3323 = vmatpush2.bf16.msra.mxu0 0
        %3324 = vmatprep.mubr.bf16.mxu0 0
        %3325 = vmatmul.mubr.bf16.gmra.mxu0 %v3179
        %v3326 = vpop.f32.mrf.mxu0
        %v3327 = vadd.f32 0.0, %v3326
        %v3328 = vpop.f32.mrf.mxu0
        %v3329 = vadd.f32 0.0, %v3328
        %v3330 = vpop.f32.mrf.mxu0
        %v3331 = vpop.f32.mrf.mxu0
        %3332 = vdwg.mxu0
        %3333 = vmatprep.subr.bf16.mxu0 %v1804
        %3334 = vmatpush1.bf16.msra.mxu0 %v1803
        %3335 = vmatprep.subr.bf16.mxu0 %v1800
        %3336 = vmatpush1.bf16.msra.mxu0 %v1799
        %3337 = vmatprep.subr.bf16.mxu0 %v1796
        %3338 = vmatpush1.bf16.msra.mxu0 %v1795
        %3339 = vmatprep.subr.bf16.mxu0 %v1792
        %3340 = vmatpush1.bf16.msra.mxu0 %v1791
        %3341 = vmatprep.subr.bf16.mxu0 %v1788
        %3342 = vmatpush1.bf16.msra.mxu0 %v1787
        %3343 = vmatprep.subr.bf16.mxu0 %v1784
        %3344 = vmatpush1.bf16.msra.mxu0 %v1783
        %3345 = vmatprep.subr.bf16.mxu0 %v1780
        %3346 = vmatpush1.bf16.msra.mxu0 %v1779
        %3347 = vmatprep.subr.bf16.mxu0 %v1776
        %3348 = vmatpush1.bf16.msra.mxu0 %v1775
        %3349 = vmatprep.subr.bf16.mxu0 0
        %3350 = vmatpush2.bf16.msra.mxu0 0
        %3351 = vmatprep.subr.bf16.mxu0 0
        %3352 = vmatpush2.bf16.msra.mxu0 0
        %3353 = vmatprep.subr.bf16.mxu0 0
        %3354 = vmatpush2.bf16.msra.mxu0 0
        %3355 = vmatprep.subr.bf16.mxu0 0
        %3356 = vmatpush2.bf16.msra.mxu0 0
        %3357 = vmatprep.subr.bf16.mxu0 0
        %3358 = vmatpush2.bf16.msra.mxu0 0
        %3359 = vmatprep.subr.bf16.mxu0 0
        %3360 = vmatpush2.bf16.msra.mxu0 0
        %3361 = vmatprep.subr.bf16.mxu0 0
        %3362 = vmatpush2.bf16.msra.mxu0 0
        %3363 = vmatprep.subr.bf16.mxu0 0
        %3364 = vmatpush2.bf16.msra.mxu0 0
        %3365 = vmatprep.mubr.bf16.mxu0 0
        %3366 = vmatmul.mubr.bf16.gmra.mxu0 %v3179
        %v3367 = vpop.f32.mrf.mxu0
        %v3368 = vadd.f32 0.0, %v3367
        %v3369 = vpop.f32.mrf.mxu0
        %v3370 = vadd.f32 0.0, %v3369
        %v3371 = vpop.f32.mrf.mxu0
        %v3372 = vpop.f32.mrf.mxu0
        %3373 = vdwg.mxu0
        %v3374 = vadd.f32 %v3288, %v3327
        %v3375 = vadd.f32 %v3289, %v3329
        %v3376 = vadd.f32 %v3290, %v3368
        %v3377 = vadd.f32 %v3291, %v3370
        %v3378 = vxor.u32 %v3374, 2147483648
        %v3379 = vmul.f32 %v3378, 1.442695
        %v3380 = vpow.pop %v3379
        %v3381 = vadd.f32 %v3380, 1.0
        %v3382 = vrcp.pop %v3381
        %v3383 = vmul.f32 1.0, %v3382
        %v3384 = vxor.u32 %v3375, 2147483648
        %v3385 = vmul.f32 %v3384, 1.442695
        %v3386 = vpow.pop %v3385
        %v3387 = vadd.f32 %v3386, 1.0
        %v3388 = vrcp.pop %v3387
        %v3389 = vmul.f32 1.0, %v3388
        %v3390 = vtanh.pop %v3376
        %v3391 = vxor.u32 %v3377, 2147483648
        %v3392 = vmul.f32 %v3391, 1.442695
        %v3393 = vpow.pop %v3392
        %v3394 = vadd.f32 %v3393, 1.0
        %v3395 = vrcp.pop %v3394
        %v3396 = vmul.f32 1.0, %v3395
        %v3397 = vmul.f32 %v3389, %v3176
        %v3398 = vmul.f32 %v3383, %v3390
        %v3399 = vadd.f32 %v3397, %v3398
        %v3400 = vtanh.pop %v3399
        %v3401 = vmul.f32 %v3396, %v3400
        %v3402 = vpack.c.bf16 %v3401, %v3401
        %v3403 = vpack.c.bf16 %v3286, %v3286
        %3404 = vmatprep.subr.bf16.mxu0 %v2190
        %3405 = vmatpush1.bf16.msra.mxu0 %v2189
        %3406 = vmatprep.subr.bf16.mxu0 %v2186
        %3407 = vmatpush1.bf16.msra.mxu0 %v2185
        %3408 = vmatprep.subr.bf16.mxu0 %v2182
        %3409 = vmatpush1.bf16.msra.mxu0 %v2181
        %3410 = vmatprep.subr.bf16.mxu0 %v2178
        %3411 = vmatpush1.bf16.msra.mxu0 %v2177
        %3412 = vmatprep.subr.bf16.mxu0 %v2174
        %3413 = vmatpush1.bf16.msra.mxu0 %v2173
        %3414 = vmatprep.subr.bf16.mxu0 %v2170
        %3415 = vmatpush1.bf16.msra.mxu0 %v2169
        %3416 = vmatprep.subr.bf16.mxu0 %v2166
        %3417 = vmatpush1.bf16.msra.mxu0 %v2165
        %3418 = vmatprep.subr.bf16.mxu0 %v2162
        %3419 = vmatpush1.bf16.msra.mxu0 %v2161
        %3420 = vmatprep.subr.bf16.mxu0 %v2222
        %3421 = vmatpush2.bf16.msra.mxu0 %v2221
        %3422 = vmatprep.subr.bf16.mxu0 %v2218
        %3423 = vmatpush2.bf16.msra.mxu0 %v2217
        %3424 = vmatprep.subr.bf16.mxu0 %v2214
        %3425 = vmatpush2.bf16.msra.mxu0 %v2213
        %3426 = vmatprep.subr.bf16.mxu0 %v2210
        %3427 = vmatpush2.bf16.msra.mxu0 %v2209
        %3428 = vmatprep.subr.bf16.mxu0 %v2206
        %3429 = vmatpush2.bf16.msra.mxu0 %v2205
        %3430 = vmatprep.subr.bf16.mxu0 %v2202
        %3431 = vmatpush2.bf16.msra.mxu0 %v2201
        %3432 = vmatprep.subr.bf16.mxu0 %v2198
        %3433 = vmatpush2.bf16.msra.mxu0 %v2197
        %3434 = vmatprep.subr.bf16.mxu0 %v2194
        %3435 = vmatpush2.bf16.msra.mxu0 %v2193
        %3436 = vmatprep.mubr.bf16.mxu0 %v3403
        %3437 = vmatmul.mubr.bf16.gmra.mxu0 %v3402
        %v3438 = vpop.f32.mrf.mxu0
        %v3439 = vadd.f32 %v1952, %v3438
        %v3440 = vpop.f32.mrf.mxu0
        %v3441 = vadd.f32 %v1956, %v3440
        %v3442 = vpop.f32.mrf.mxu0
        %v3443 = vpop.f32.mrf.mxu0
        %3444 = vdwg.mxu0
        %3445 = vmatprep.subr.bf16.mxu0 %v2192
        %3446 = vmatpush1.bf16.msra.mxu0 %v2191
        %3447 = vmatprep.subr.bf16.mxu0 %v2188
        %3448 = vmatpush1.bf16.msra.mxu0 %v2187
        %3449 = vmatprep.subr.bf16.mxu0 %v2184
        %3450 = vmatpush1.bf16.msra.mxu0 %v2183
        %3451 = vmatprep.subr.bf16.mxu0 %v2180
        %3452 = vmatpush1.bf16.msra.mxu0 %v2179
        %3453 = vmatprep.subr.bf16.mxu0 %v2176
        %3454 = vmatpush1.bf16.msra.mxu0 %v2175
        %3455 = vmatprep.subr.bf16.mxu0 %v2172
        %3456 = vmatpush1.bf16.msra.mxu0 %v2171
        %3457 = vmatprep.subr.bf16.mxu0 %v2168
        %3458 = vmatpush1.bf16.msra.mxu0 %v2167
        %3459 = vmatprep.subr.bf16.mxu0 %v2164
        %3460 = vmatpush1.bf16.msra.mxu0 %v2163
        %3461 = vmatprep.subr.bf16.mxu0 %v2224
        %3462 = vmatpush2.bf16.msra.mxu0 %v2223
        %3463 = vmatprep.subr.bf16.mxu0 %v2220
        %3464 = vmatpush2.bf16.msra.mxu0 %v2219
        %3465 = vmatprep.subr.bf16.mxu0 %v2216
        %3466 = vmatpush2.bf16.msra.mxu0 %v2215
        %3467 = vmatprep.subr.bf16.mxu0 %v2212
        %3468 = vmatpush2.bf16.msra.mxu0 %v2211
        %3469 = vmatprep.subr.bf16.mxu0 %v2208
        %3470 = vmatpush2.bf16.msra.mxu0 %v2207
        %3471 = vmatprep.subr.bf16.mxu0 %v2204
        %3472 = vmatpush2.bf16.msra.mxu0 %v2203
        %3473 = vmatprep.subr.bf16.mxu0 %v2200
        %3474 = vmatpush2.bf16.msra.mxu0 %v2199
        %3475 = vmatprep.subr.bf16.mxu0 %v2196
        %3476 = vmatpush2.bf16.msra.mxu0 %v2195
        %3477 = vmatprep.mubr.bf16.mxu0 %v3403
        %3478 = vmatmul.mubr.bf16.gmra.mxu0 %v3402
        %v3479 = vpop.f32.mrf.mxu0
        %v3480 = vadd.f32 %v1960, %v3479
        %v3481 = vpop.f32.mrf.mxu0
        %v3482 = vadd.f32 %v1964, %v3481
        %v3483 = vpop.f32.mrf.mxu0
        %v3484 = vpop.f32.mrf.mxu0
        %3485 = vdwg.mxu0
        %v3486 = vxor.u32 %v3439, 2147483648
        %v3487 = vmul.f32 %v3486, 1.442695
        %v3488 = vpow.pop %v3487
        %v3489 = vadd.f32 %v3488, 1.0
        %v3490 = vrcp.pop %v3489
        %v3491 = vmul.f32 1.0, %v3490
        %v3492 = vxor.u32 %v3441, 2147483648
        %v3493 = vmul.f32 %v3492, 1.442695
        %v3494 = vpow.pop %v3493
        %v3495 = vadd.f32 %v3494, 1.0
        %v3496 = vrcp.pop %v3495
        %v3497 = vmul.f32 1.0, %v3496
        %v3498 = vtanh.pop %v3480
        %v3499 = vxor.u32 %v3482, 2147483648
        %v3500 = vmul.f32 %v3499, 1.442695
        %v3501 = vpow.pop %v3500
        %v3502 = vadd.f32 %v3501, 1.0
        %v3503 = vrcp.pop %v3502
        %v3504 = vmul.f32 1.0, %v3503
        %v3505 = vmul.f32 %v3497, %v3284
        %v3506 = vmul.f32 %v3491, %v3498
        %v3507 = vadd.f32 %v3505, %v3506
        %v3508 = vtanh.pop %v3507
        %v3509 = vmul.f32 %v3504, %v3508
        %s3510 = scalar_lea.vmem [#allocation2], 192
        %v3511 = vld [vmem:[%s3510] sm:$0xff]
        %v3512 = vld [vmem:[%s3510 + $0x8] sm:$0xff]
        %v3513 = vld [vmem:[%s3510 + $0x10] sm:$0xff]
        %v3514 = vld [vmem:[%s3510 + $0x18] sm:$0xff]
        %3515 = vmatprep.subr.bf16.mxu0 %v1802
        %3516 = vmatpush1.bf16.msra.mxu0 %v1801
        %3517 = vmatprep.subr.bf16.mxu0 %v1798
        %3518 = vmatpush1.bf16.msra.mxu0 %v1797
        %3519 = vmatprep.subr.bf16.mxu0 %v1794
        %3520 = vmatpush1.bf16.msra.mxu0 %v1793
        %3521 = vmatprep.subr.bf16.mxu0 %v1790
        %3522 = vmatpush1.bf16.msra.mxu0 %v1789
        %3523 = vmatprep.subr.bf16.mxu0 %v1786
        %3524 = vmatpush1.bf16.msra.mxu0 %v1785
        %3525 = vmatprep.subr.bf16.mxu0 %v1782
        %3526 = vmatpush1.bf16.msra.mxu0 %v1781
        %3527 = vmatprep.subr.bf16.mxu0 %v1778
        %3528 = vmatpush1.bf16.msra.mxu0 %v1777
        %3529 = vmatprep.subr.bf16.mxu0 %v1774
        %3530 = vmatpush1.bf16.msra.mxu0 %v1773
        %3531 = vmatprep.subr.bf16.mxu0 0
        %3532 = vmatpush2.bf16.msra.mxu0 0
        %3533 = vmatprep.subr.bf16.mxu0 0
        %3534 = vmatpush2.bf16.msra.mxu0 0
        %3535 = vmatprep.subr.bf16.mxu0 0
        %3536 = vmatpush2.bf16.msra.mxu0 0
        %3537 = vmatprep.subr.bf16.mxu0 0
        %3538 = vmatpush2.bf16.msra.mxu0 0
        %3539 = vmatprep.subr.bf16.mxu0 0
        %3540 = vmatpush2.bf16.msra.mxu0 0
        %3541 = vmatprep.subr.bf16.mxu0 0
        %3542 = vmatpush2.bf16.msra.mxu0 0
        %3543 = vmatprep.subr.bf16.mxu0 0
        %3544 = vmatpush2.bf16.msra.mxu0 0
        %3545 = vmatprep.subr.bf16.mxu0 0
        %3546 = vmatpush2.bf16.msra.mxu0 0
        %3547 = vmatprep.mubr.bf16.mxu0 0
        %3548 = vmatmul.mubr.bf16.gmra.mxu0 %v3402
        %v3549 = vpop.f32.mrf.mxu0
        %v3550 = vadd.f32 0.0, %v3549
        %v3551 = vpop.f32.mrf.mxu0
        %v3552 = vadd.f32 0.0, %v3551
        %v3553 = vpop.f32.mrf.mxu0
        %v3554 = vpop.f32.mrf.mxu0
        %3555 = vdwg.mxu0
        %3556 = vmatprep.subr.bf16.mxu0 %v1804
        %3557 = vmatpush1.bf16.msra.mxu0 %v1803
        %3558 = vmatprep.subr.bf16.mxu0 %v1800
        %3559 = vmatpush1.bf16.msra.mxu0 %v1799
        %3560 = vmatprep.subr.bf16.mxu0 %v1796
        %3561 = vmatpush1.bf16.msra.mxu0 %v1795
        %3562 = vmatprep.subr.bf16.mxu0 %v1792
        %3563 = vmatpush1.bf16.msra.mxu0 %v1791
        %3564 = vmatprep.subr.bf16.mxu0 %v1788
        %3565 = vmatpush1.bf16.msra.mxu0 %v1787
        %3566 = vmatprep.subr.bf16.mxu0 %v1784
        %3567 = vmatpush1.bf16.msra.mxu0 %v1783
        %3568 = vmatprep.subr.bf16.mxu0 %v1780
        %3569 = vmatpush1.bf16.msra.mxu0 %v1779
        %3570 = vmatprep.subr.bf16.mxu0 %v1776
        %3571 = vmatpush1.bf16.msra.mxu0 %v1775
        %3572 = vmatprep.subr.bf16.mxu0 0
        %3573 = vmatpush2.bf16.msra.mxu0 0
        %3574 = vmatprep.subr.bf16.mxu0 0
        %3575 = vmatpush2.bf16.msra.mxu0 0
        %3576 = vmatprep.subr.bf16.mxu0 0
        %3577 = vmatpush2.bf16.msra.mxu0 0
        %3578 = vmatprep.subr.bf16.mxu0 0
        %3579 = vmatpush2.bf16.msra.mxu0 0
        %3580 = vmatprep.subr.bf16.mxu0 0
        %3581 = vmatpush2.bf16.msra.mxu0 0
        %3582 = vmatprep.subr.bf16.mxu0 0
        %3583 = vmatpush2.bf16.msra.mxu0 0
        %3584 = vmatprep.subr.bf16.mxu0 0
        %3585 = vmatpush2.bf16.msra.mxu0 0
        %3586 = vmatprep.subr.bf16.mxu0 0
        %3587 = vmatpush2.bf16.msra.mxu0 0
        %3588 = vmatprep.mubr.bf16.mxu0 0
        %3589 = vmatmul.mubr.bf16.gmra.mxu0 %v3402
        %v3590 = vpop.f32.mrf.mxu0
        %v3591 = vadd.f32 0.0, %v3590
        %v3592 = vpop.f32.mrf.mxu0
        %v3593 = vadd.f32 0.0, %v3592
        %v3594 = vpop.f32.mrf.mxu0
        %v3595 = vpop.f32.mrf.mxu0
        %3596 = vdwg.mxu0
        %v3597 = vadd.f32 %v3511, %v3550
        %v3598 = vadd.f32 %v3512, %v3552
        %v3599 = vadd.f32 %v3513, %v3591
        %v3600 = vadd.f32 %v3514, %v3593
        %v3601 = vxor.u32 %v3597, 2147483648
        %v3602 = vmul.f32 %v3601, 1.442695
        %v3603 = vpow.pop %v3602
        %v3604 = vadd.f32 %v3603, 1.0
        %v3605 = vrcp.pop %v3604
        %v3606 = vmul.f32 1.0, %v3605
        %v3607 = vxor.u32 %v3598, 2147483648
        %v3608 = vmul.f32 %v3607, 1.442695
        %v3609 = vpow.pop %v3608
        %v3610 = vadd.f32 %v3609, 1.0
        %v3611 = vrcp.pop %v3610
        %v3612 = vmul.f32 1.0, %v3611
        %v3613 = vtanh.pop %v3599
        %v3614 = vxor.u32 %v3600, 2147483648
        %v3615 = vmul.f32 %v3614, 1.442695
        %v3616 = vpow.pop %v3615
        %v3617 = vadd.f32 %v3616, 1.0
        %v3618 = vrcp.pop %v3617
        %v3619 = vmul.f32 1.0, %v3618
        %v3620 = vmul.f32 %v3612, %v3399
        %v3621 = vmul.f32 %v3606, %v3613
        %v3622 = vadd.f32 %v3620, %v3621
        %v3623 = vtanh.pop %v3622
        %v3624 = vmul.f32 %v3619, %v3623
        %v3625 = vpack.c.bf16 %v3624, %v3624
        %v3626 = vpack.c.bf16 %v3509, %v3509
        %3627 = vmatprep.subr.bf16.mxu0 %v2190
        %3628 = vmatpush1.bf16.msra.mxu0 %v2189
        %3629 = vmatprep.subr.bf16.mxu0 %v2186
        %3630 = vmatpush1.bf16.msra.mxu0 %v2185
        %3631 = vmatprep.subr.bf16.mxu0 %v2182
        %3632 = vmatpush1.bf16.msra.mxu0 %v2181
        %3633 = vmatprep.subr.bf16.mxu0 %v2178
        %3634 = vmatpush1.bf16.msra.mxu0 %v2177
        %3635 = vmatprep.subr.bf16.mxu0 %v2174
        %3636 = vmatpush1.bf16.msra.mxu0 %v2173
        %3637 = vmatprep.subr.bf16.mxu0 %v2170
        %3638 = vmatpush1.bf16.msra.mxu0 %v2169
        %3639 = vmatprep.subr.bf16.mxu0 %v2166
        %3640 = vmatpush1.bf16.msra.mxu0 %v2165
        %3641 = vmatprep.subr.bf16.mxu0 %v2162
        %3642 = vmatpush1.bf16.msra.mxu0 %v2161
        %3643 = vmatprep.subr.bf16.mxu0 %v2222
        %3644 = vmatpush2.bf16.msra.mxu0 %v2221
        %3645 = vmatprep.subr.bf16.mxu0 %v2218
        %3646 = vmatpush2.bf16.msra.mxu0 %v2217
        %3647 = vmatprep.subr.bf16.mxu0 %v2214
        %3648 = vmatpush2.bf16.msra.mxu0 %v2213
        %3649 = vmatprep.subr.bf16.mxu0 %v2210
        %3650 = vmatpush2.bf16.msra.mxu0 %v2209
        %3651 = vmatprep.subr.bf16.mxu0 %v2206
        %3652 = vmatpush2.bf16.msra.mxu0 %v2205
        %3653 = vmatprep.subr.bf16.mxu0 %v2202
        %3654 = vmatpush2.bf16.msra.mxu0 %v2201
        %3655 = vmatprep.subr.bf16.mxu0 %v2198
        %3656 = vmatpush2.bf16.msra.mxu0 %v2197
        %3657 = vmatprep.subr.bf16.mxu0 %v2194
        %3658 = vmatpush2.bf16.msra.mxu0 %v2193
        %3659 = vmatprep.mubr.bf16.mxu0 %v3626
        %3660 = vmatmul.mubr.bf16.gmra.mxu0 %v3625
        %v3661 = vpop.f32.mrf.mxu0
        %v3662 = vadd.f32 %v1952, %v3661
        %v3663 = vpop.f32.mrf.mxu0
        %v3664 = vadd.f32 %v1956, %v3663
        %v3665 = vpop.f32.mrf.mxu0
        %v3666 = vpop.f32.mrf.mxu0
        %3667 = vdwg.mxu0
        %3668 = vmatprep.subr.bf16.mxu0 %v2192
        %3669 = vmatpush1.bf16.msra.mxu0 %v2191
        %3670 = vmatprep.subr.bf16.mxu0 %v2188
        %3671 = vmatpush1.bf16.msra.mxu0 %v2187
        %3672 = vmatprep.subr.bf16.mxu0 %v2184
        %3673 = vmatpush1.bf16.msra.mxu0 %v2183
        %3674 = vmatprep.subr.bf16.mxu0 %v2180
        %3675 = vmatpush1.bf16.msra.mxu0 %v2179
        %3676 = vmatprep.subr.bf16.mxu0 %v2176
        %3677 = vmatpush1.bf16.msra.mxu0 %v2175
        %3678 = vmatprep.subr.bf16.mxu0 %v2172
        %3679 = vmatpush1.bf16.msra.mxu0 %v2171
        %3680 = vmatprep.subr.bf16.mxu0 %v2168
        %3681 = vmatpush1.bf16.msra.mxu0 %v2167
        %3682 = vmatprep.subr.bf16.mxu0 %v2164
        %3683 = vmatpush1.bf16.msra.mxu0 %v2163
        %3684 = vmatprep.subr.bf16.mxu0 %v2224
        %3685 = vmatpush2.bf16.msra.mxu0 %v2223
        %3686 = vmatprep.subr.bf16.mxu0 %v2220
        %3687 = vmatpush2.bf16.msra.mxu0 %v2219
        %3688 = vmatprep.subr.bf16.mxu0 %v2216
        %3689 = vmatpush2.bf16.msra.mxu0 %v2215
        %3690 = vmatprep.subr.bf16.mxu0 %v2212
        %3691 = vmatpush2.bf16.msra.mxu0 %v2211
        %3692 = vmatprep.subr.bf16.mxu0 %v2208
        %3693 = vmatpush2.bf16.msra.mxu0 %v2207
        %3694 = vmatprep.subr.bf16.mxu0 %v2204
        %3695 = vmatpush2.bf16.msra.mxu0 %v2203
        %3696 = vmatprep.subr.bf16.mxu0 %v2200
        %3697 = vmatpush2.bf16.msra.mxu0 %v2199
        %3698 = vmatprep.subr.bf16.mxu0 %v2196
        %3699 = vmatpush2.bf16.msra.mxu0 %v2195
        %3700 = vmatprep.mubr.bf16.mxu0 %v3626
        %3701 = vmatmul.mubr.bf16.gmra.mxu0 %v3625
        %v3702 = vpop.f32.mrf.mxu0
        %v3703 = vadd.f32 %v1960, %v3702
        %v3704 = vpop.f32.mrf.mxu0
        %v3705 = vadd.f32 %v1964, %v3704
        %v3706 = vpop.f32.mrf.mxu0
        %v3707 = vpop.f32.mrf.mxu0
        %3708 = vdwg.mxu0
        %v3709 = vxor.u32 %v3662, 2147483648
        %v3710 = vmul.f32 %v3709, 1.442695
        %v3711 = vpow.pop %v3710
        %v3712 = vadd.f32 %v3711, 1.0
        %v3713 = vrcp.pop %v3712
        %v3714 = vmul.f32 1.0, %v3713
        %v3715 = vxor.u32 %v3664, 2147483648
        %v3716 = vmul.f32 %v3715, 1.442695
        %v3717 = vpow.pop %v3716
        %v3718 = vadd.f32 %v3717, 1.0
        %v3719 = vrcp.pop %v3718
        %v3720 = vmul.f32 1.0, %v3719
        %v3721 = vtanh.pop %v3703
        %v3722 = vxor.u32 %v3705, 2147483648
        %v3723 = vmul.f32 %v3722, 1.442695
        %v3724 = vpow.pop %v3723
        %v3725 = vadd.f32 %v3724, 1.0
        %v3726 = vrcp.pop %v3725
        %v3727 = vmul.f32 1.0, %v3726
        %v3728 = vmul.f32 %v3720, %v3507
        %v3729 = vmul.f32 %v3714, %v3721
        %v3730 = vadd.f32 %v3728, %v3729
        %v3731 = vtanh.pop %v3730
        %v3732 = vmul.f32 %v3727, %v3731
        %s3733 = scalar_lea.vmem [#allocation2], 224
        %v3734 = vld [vmem:[%s3733] sm:$0xff]
        %v3735 = vld [vmem:[%s3733 + $0x8] sm:$0xff]
        %v3736 = vld [vmem:[%s3733 + $0x10] sm:$0xff]
        %v3737 = vld [vmem:[%s3733 + $0x18] sm:$0xff]
        %3738 = vmatprep.subr.bf16.mxu0 %v1802
        %3739 = vmatpush1.bf16.msra.mxu0 %v1801
        %3740 = vmatprep.subr.bf16.mxu0 %v1798
        %3741 = vmatpush1.bf16.msra.mxu0 %v1797
        %3742 = vmatprep.subr.bf16.mxu0 %v1794
        %3743 = vmatpush1.bf16.msra.mxu0 %v1793
        %3744 = vmatprep.subr.bf16.mxu0 %v1790
        %3745 = vmatpush1.bf16.msra.mxu0 %v1789
        %3746 = vmatprep.subr.bf16.mxu0 %v1786
        %3747 = vmatpush1.bf16.msra.mxu0 %v1785
        %3748 = vmatprep.subr.bf16.mxu0 %v1782
        %3749 = vmatpush1.bf16.msra.mxu0 %v1781
        %3750 = vmatprep.subr.bf16.mxu0 %v1778
        %3751 = vmatpush1.bf16.msra.mxu0 %v1777
        %3752 = vmatprep.subr.bf16.mxu0 %v1774
        %3753 = vmatpush1.bf16.msra.mxu0 %v1773
        %3754 = vmatprep.subr.bf16.mxu0 0
        %3755 = vmatpush2.bf16.msra.mxu0 0
        %3756 = vmatprep.subr.bf16.mxu0 0
        %3757 = vmatpush2.bf16.msra.mxu0 0
        %3758 = vmatprep.subr.bf16.mxu0 0
        %3759 = vmatpush2.bf16.msra.mxu0 0
        %3760 = vmatprep.subr.bf16.mxu0 0
        %3761 = vmatpush2.bf16.msra.mxu0 0
        %3762 = vmatprep.subr.bf16.mxu0 0
        %3763 = vmatpush2.bf16.msra.mxu0 0
        %3764 = vmatprep.subr.bf16.mxu0 0
        %3765 = vmatpush2.bf16.msra.mxu0 0
        %3766 = vmatprep.subr.bf16.mxu0 0
        %3767 = vmatpush2.bf16.msra.mxu0 0
        %3768 = vmatprep.subr.bf16.mxu0 0
        %3769 = vmatpush2.bf16.msra.mxu0 0
        %3770 = vmatprep.mubr.bf16.mxu0 0
        %3771 = vmatmul.mubr.bf16.gmra.mxu0 %v3625
        %v3772 = vpop.f32.mrf.mxu0
        %v3773 = vadd.f32 0.0, %v3772
        %v3774 = vpop.f32.mrf.mxu0
        %v3775 = vadd.f32 0.0, %v3774
        %v3776 = vpop.f32.mrf.mxu0
        %v3777 = vpop.f32.mrf.mxu0
        %3778 = vdwg.mxu0
        %3779 = vmatprep.subr.bf16.mxu0 %v1804
        %3780 = vmatpush1.bf16.msra.mxu0 %v1803
        %3781 = vmatprep.subr.bf16.mxu0 %v1800
        %3782 = vmatpush1.bf16.msra.mxu0 %v1799
        %3783 = vmatprep.subr.bf16.mxu0 %v1796
        %3784 = vmatpush1.bf16.msra.mxu0 %v1795
        %3785 = vmatprep.subr.bf16.mxu0 %v1792
        %3786 = vmatpush1.bf16.msra.mxu0 %v1791
        %3787 = vmatprep.subr.bf16.mxu0 %v1788
        %3788 = vmatpush1.bf16.msra.mxu0 %v1787
        %3789 = vmatprep.subr.bf16.mxu0 %v1784
        %3790 = vmatpush1.bf16.msra.mxu0 %v1783
        %3791 = vmatprep.subr.bf16.mxu0 %v1780
        %3792 = vmatpush1.bf16.msra.mxu0 %v1779
        %3793 = vmatprep.subr.bf16.mxu0 %v1776
        %3794 = vmatpush1.bf16.msra.mxu0 %v1775
        %3795 = vmatprep.subr.bf16.mxu0 0
        %3796 = vmatpush2.bf16.msra.mxu0 0
        %3797 = vmatprep.subr.bf16.mxu0 0
        %3798 = vmatpush2.bf16.msra.mxu0 0
        %3799 = vmatprep.subr.bf16.mxu0 0
        %3800 = vmatpush2.bf16.msra.mxu0 0
        %3801 = vmatprep.subr.bf16.mxu0 0
        %3802 = vmatpush2.bf16.msra.mxu0 0
        %3803 = vmatprep.subr.bf16.mxu0 0
        %3804 = vmatpush2.bf16.msra.mxu0 0
        %3805 = vmatprep.subr.bf16.mxu0 0
        %3806 = vmatpush2.bf16.msra.mxu0 0
        %3807 = vmatprep.subr.bf16.mxu0 0
        %3808 = vmatpush2.bf16.msra.mxu0 0
        %3809 = vmatprep.subr.bf16.mxu0 0
        %3810 = vmatpush2.bf16.msra.mxu0 0
        %3811 = vmatprep.mubr.bf16.mxu0 0
        %3812 = vmatmul.mubr.bf16.gmra.mxu0 %v3625
        %v3813 = vpop.f32.mrf.mxu0
        %v3814 = vadd.f32 0.0, %v3813
        %v3815 = vpop.f32.mrf.mxu0
        %v3816 = vadd.f32 0.0, %v3815
        %v3817 = vpop.f32.mrf.mxu0
        %v3818 = vpop.f32.mrf.mxu0
        %3819 = vdwg.mxu0
        %v3820 = vadd.f32 %v3734, %v3773
        %v3821 = vadd.f32 %v3735, %v3775
        %v3822 = vadd.f32 %v3736, %v3814
        %v3823 = vadd.f32 %v3737, %v3816
        %v3824 = vxor.u32 %v3820, 2147483648
        %v3825 = vmul.f32 %v3824, 1.442695
        %v3826 = vpow.pop %v3825
        %v3827 = vadd.f32 %v3826, 1.0
        %v3828 = vrcp.pop %v3827
        %v3829 = vmul.f32 1.0, %v3828
        %v3830 = vxor.u32 %v3821, 2147483648
        %v3831 = vmul.f32 %v3830, 1.442695
        %v3832 = vpow.pop %v3831
        %v3833 = vadd.f32 %v3832, 1.0
        %v3834 = vrcp.pop %v3833
        %v3835 = vmul.f32 1.0, %v3834
        %v3836 = vtanh.pop %v3822
        %v3837 = vxor.u32 %v3823, 2147483648
        %v3838 = vmul.f32 %v3837, 1.442695
        %v3839 = vpow.pop %v3838
        %v3840 = vadd.f32 %v3839, 1.0
        %v3841 = vrcp.pop %v3840
        %v3842 = vmul.f32 1.0, %v3841
        %v3843 = vmul.f32 %v3835, %v3622
        %v3844 = vmul.f32 %v3829, %v3836
        %v3845 = vadd.f32 %v3843, %v3844
        %v3846 = vtanh.pop %v3845
        %v3847 = vmul.f32 %v3842, %v3846
        %v3848 = vpack.c.bf16 %v3847, %v3847
        %v3849 = vpack.c.bf16 %v3732, %v3732
        %3850 = vmatprep.subr.bf16.mxu0 %v2190
        %3851 = vmatpush1.bf16.msra.mxu0 %v2189
        %3852 = vmatprep.subr.bf16.mxu0 %v2186
        %3853 = vmatpush1.bf16.msra.mxu0 %v2185
        %3854 = vmatprep.subr.bf16.mxu0 %v2182
        %3855 = vmatpush1.bf16.msra.mxu0 %v2181
        %3856 = vmatprep.subr.bf16.mxu0 %v2178
        %3857 = vmatpush1.bf16.msra.mxu0 %v2177
        %3858 = vmatprep.subr.bf16.mxu0 %v2174
        %3859 = vmatpush1.bf16.msra.mxu0 %v2173
        %3860 = vmatprep.subr.bf16.mxu0 %v2170
        %3861 = vmatpush1.bf16.msra.mxu0 %v2169
        %3862 = vmatprep.subr.bf16.mxu0 %v2166
        %3863 = vmatpush1.bf16.msra.mxu0 %v2165
        %3864 = vmatprep.subr.bf16.mxu0 %v2162
        %3865 = vmatpush1.bf16.msra.mxu0 %v2161
        %3866 = vmatprep.subr.bf16.mxu0 %v2222
        %3867 = vmatpush2.bf16.msra.mxu0 %v2221
        %3868 = vmatprep.subr.bf16.mxu0 %v2218
        %3869 = vmatpush2.bf16.msra.mxu0 %v2217
        %3870 = vmatprep.subr.bf16.mxu0 %v2214
        %3871 = vmatpush2.bf16.msra.mxu0 %v2213
        %3872 = vmatprep.subr.bf16.mxu0 %v2210
        %3873 = vmatpush2.bf16.msra.mxu0 %v2209
        %3874 = vmatprep.subr.bf16.mxu0 %v2206
        %3875 = vmatpush2.bf16.msra.mxu0 %v2205
        %3876 = vmatprep.subr.bf16.mxu0 %v2202
        %3877 = vmatpush2.bf16.msra.mxu0 %v2201
        %3878 = vmatprep.subr.bf16.mxu0 %v2198
        %3879 = vmatpush2.bf16.msra.mxu0 %v2197
        %3880 = vmatprep.subr.bf16.mxu0 %v2194
        %3881 = vmatpush2.bf16.msra.mxu0 %v2193
        %3882 = vmatprep.mubr.bf16.mxu0 %v3849
        %3883 = vmatmul.mubr.bf16.gmra.mxu0 %v3848
        %v3884 = vpop.f32.mrf.mxu0
        %v3885 = vadd.f32 %v1952, %v3884
        %v3886 = vpop.f32.mrf.mxu0
        %v3887 = vadd.f32 %v1956, %v3886
        %v3888 = vpop.f32.mrf.mxu0
        %v3889 = vpop.f32.mrf.mxu0
        %3890 = vdwg.mxu0
        %3891 = vmatprep.subr.bf16.mxu0 %v2192
        %3892 = vmatpush1.bf16.msra.mxu0 %v2191
        %3893 = vmatprep.subr.bf16.mxu0 %v2188
        %3894 = vmatpush1.bf16.msra.mxu0 %v2187
        %3895 = vmatprep.subr.bf16.mxu0 %v2184
        %3896 = vmatpush1.bf16.msra.mxu0 %v2183
        %3897 = vmatprep.subr.bf16.mxu0 %v2180
        %3898 = vmatpush1.bf16.msra.mxu0 %v2179
        %3899 = vmatprep.subr.bf16.mxu0 %v2176
        %3900 = vmatpush1.bf16.msra.mxu0 %v2175
        %3901 = vmatprep.subr.bf16.mxu0 %v2172
        %3902 = vmatpush1.bf16.msra.mxu0 %v2171
        %3903 = vmatprep.subr.bf16.mxu0 %v2168
        %3904 = vmatpush1.bf16.msra.mxu0 %v2167
        %3905 = vmatprep.subr.bf16.mxu0 %v2164
        %3906 = vmatpush1.bf16.msra.mxu0 %v2163
        %3907 = vmatprep.subr.bf16.mxu0 %v2224
        %3908 = vmatpush2.bf16.msra.mxu0 %v2223
        %3909 = vmatprep.subr.bf16.mxu0 %v2220
        %3910 = vmatpush2.bf16.msra.mxu0 %v2219
        %3911 = vmatprep.subr.bf16.mxu0 %v2216
        %3912 = vmatpush2.bf16.msra.mxu0 %v2215
        %3913 = vmatprep.subr.bf16.mxu0 %v2212
        %3914 = vmatpush2.bf16.msra.mxu0 %v2211
        %3915 = vmatprep.subr.bf16.mxu0 %v2208
        %3916 = vmatpush2.bf16.msra.mxu0 %v2207
        %3917 = vmatprep.subr.bf16.mxu0 %v2204
        %3918 = vmatpush2.bf16.msra.mxu0 %v2203
        %3919 = vmatprep.subr.bf16.mxu0 %v2200
        %3920 = vmatpush2.bf16.msra.mxu0 %v2199
        %3921 = vmatprep.subr.bf16.mxu0 %v2196
        %3922 = vmatpush2.bf16.msra.mxu0 %v2195
        %3923 = vmatprep.mubr.bf16.mxu0 %v3849
        %3924 = vmatmul.mubr.bf16.gmra.mxu0 %v3848
        %v3925 = vpop.f32.mrf.mxu0
        %v3926 = vadd.f32 %v1960, %v3925
        %v3927 = vpop.f32.mrf.mxu0
        %v3928 = vadd.f32 %v1964, %v3927
        %v3929 = vpop.f32.mrf.mxu0
        %v3930 = vpop.f32.mrf.mxu0
        %3931 = vdwg.mxu0
        %v3932 = vxor.u32 %v3885, 2147483648
        %v3933 = vmul.f32 %v3932, 1.442695
        %v3934 = vpow.pop %v3933
        %v3935 = vadd.f32 %v3934, 1.0
        %v3936 = vrcp.pop %v3935
        %v3937 = vmul.f32 1.0, %v3936
        %v3938 = vxor.u32 %v3887, 2147483648
        %v3939 = vmul.f32 %v3938, 1.442695
        %v3940 = vpow.pop %v3939
        %v3941 = vadd.f32 %v3940, 1.0
        %v3942 = vrcp.pop %v3941
        %v3943 = vmul.f32 1.0, %v3942
        %v3944 = vtanh.pop %v3926
        %v3945 = vxor.u32 %v3928, 2147483648
        %v3946 = vmul.f32 %v3945, 1.442695
        %v3947 = vpow.pop %v3946
        %v3948 = vadd.f32 %v3947, 1.0
        %v3949 = vrcp.pop %v3948
        %v3950 = vmul.f32 1.0, %v3949
        %v3951 = vmul.f32 %v3943, %v3730
        %v3952 = vmul.f32 %v3937, %v3944
        %v3953 = vadd.f32 %v3951, %v3952
        %v3954 = vtanh.pop %v3953
        %v3955 = vmul.f32 %v3950, %v3954
        %v3956 = vpack.c.bf16 %v3955, %v3955
        %v3957 = vld [vmem:[%s12] sm:$0xff]
        %v3958 = vld [vmem:[%s12 + $0x8] sm:$0xff]
        %v3959 = vld [vmem:[%s12 + $0x10] sm:$0xff]
        %v3960 = vld [vmem:[%s12 + $0x18] sm:$0xff]
        %v3961 = vld [vmem:[%s12 + $0x20] sm:$0xff]
        %v3962 = vld [vmem:[%s12 + $0x28] sm:$0xff]
        %v3963 = vld [vmem:[%s12 + $0x30] sm:$0xff]
        %v3964 = vld [vmem:[%s12 + $0x38] sm:$0xff]
        %v3965 = vld [vmem:[%s12 + $0x40] sm:$0xff]
        %v3966 = vld [vmem:[%s12 + $0x48] sm:$0xff]
        %v3967 = vld [vmem:[%s12 + $0x50] sm:$0xff]
        %v3968 = vld [vmem:[%s12 + $0x58] sm:$0xff]
        %v3969 = vld [vmem:[%s12 + $0x60] sm:$0xff]
        %v3970 = vld [vmem:[%s12 + $0x68] sm:$0xff]
        %v3971 = vld [vmem:[%s12 + $0x70] sm:$0xff]
        %v3972 = vld [vmem:[%s12 + $0x78] sm:$0xff]
        %v3973 = vld [vmem:[%s13] sm:$0x3]
        %v3975 = vlaneseq
        %v3976 = vshrl.u32 %v3975, 7
        %v3977 = vsub.s32 0, %v3976
        %v3978 = vrot.slane %v3973, %v3977
        %v3979 = vlaneseq
        %v3980 = vshrl.u32 %v3979, 7
        %v3981 = vsub.s32 1, %v3980
        %v3982 = vrot.slane %v3973, %v3981
        %v4001 = vunpack.c.l.b16 %v3957
        %v4002 = vunpack.c.h.b16 %v3957
        %v4003 = vunpack.c.l.b16 %v3958
        %v4004 = vunpack.c.h.b16 %v3958
        %v4005 = vunpack.c.l.b16 %v3959
        %v4006 = vunpack.c.h.b16 %v3959
        %v4007 = vunpack.c.l.b16 %v3960
        %v4008 = vunpack.c.h.b16 %v3960
        %v4009 = vunpack.c.l.b16 %v3961
        %v4010 = vunpack.c.h.b16 %v3961
        %v4011 = vunpack.c.l.b16 %v3962
        %v4012 = vunpack.c.h.b16 %v3962
        %v4013 = vunpack.c.l.b16 %v3963
        %v4014 = vunpack.c.h.b16 %v3963
        %v4015 = vunpack.c.l.b16 %v3964
        %v4016 = vunpack.c.h.b16 %v3964
        %v4017 = vunpack.c.l.b16 %v3965
        %v4018 = vunpack.c.h.b16 %v3965
        %v4019 = vunpack.c.l.b16 %v3966
        %v4020 = vunpack.c.h.b16 %v3966
        %v4021 = vunpack.c.l.b16 %v3967
        %v4022 = vunpack.c.h.b16 %v3967
        %v4023 = vunpack.c.l.b16 %v3968
        %v4024 = vunpack.c.h.b16 %v3968
        %v4025 = vunpack.c.l.b16 %v3969
        %v4026 = vunpack.c.h.b16 %v3969
        %v4027 = vunpack.c.l.b16 %v3970
        %v4028 = vunpack.c.h.b16 %v3970
        %v4029 = vunpack.c.l.b16 %v3971
        %v4030 = vunpack.c.h.b16 %v3971
        %v4031 = vunpack.c.l.b16 %v3972
        %v4032 = vunpack.c.h.b16 %v3972
        %v4033 = vpack.c.b16 %v4003, %v4001
        %v4034 = vpack.c.b16 %v4004, %v4002
        %v4035 = vpack.c.b16 %v4007, %v4005
        %v4036 = vpack.c.b16 %v4008, %v4006
        %v4037 = vpack.c.b16 %v4011, %v4009
        %v4038 = vpack.c.b16 %v4012, %v4010
        %v4039 = vpack.c.b16 %v4015, %v4013
        %v4040 = vpack.c.b16 %v4016, %v4014
        %v4041 = vpack.c.b16 %v4019, %v4017
        %v4042 = vpack.c.b16 %v4020, %v4018
        %v4043 = vpack.c.b16 %v4023, %v4021
        %v4044 = vpack.c.b16 %v4024, %v4022
        %v4045 = vpack.c.b16 %v4027, %v4025
        %v4046 = vpack.c.b16 %v4028, %v4026
        %v4047 = vpack.c.b16 %v4031, %v4029
        %v4048 = vpack.c.b16 %v4032, %v4030
        %4065 = vmatprep.subr.bf16.mxu0 %v4048
        %4066 = vmatpush1.bf16.msra.mxu0 %v4047
        %4067 = vmatprep.subr.bf16.mxu0 %v4046
        %4068 = vmatpush1.bf16.msra.mxu0 %v4045
        %4069 = vmatprep.subr.bf16.mxu0 %v4044
        %4070 = vmatpush1.bf16.msra.mxu0 %v4043
        %4071 = vmatprep.subr.bf16.mxu0 %v4042
        %4072 = vmatpush1.bf16.msra.mxu0 %v4041
        %4073 = vmatprep.subr.bf16.mxu0 %v4040
        %4074 = vmatpush1.bf16.msra.mxu0 %v4039
        %4075 = vmatprep.subr.bf16.mxu0 %v4038
        %4076 = vmatpush1.bf16.msra.mxu0 %v4037
        %4077 = vmatprep.subr.bf16.mxu0 %v4036
        %4078 = vmatpush1.bf16.msra.mxu0 %v4035
        %4079 = vmatprep.subr.bf16.mxu0 %v4034
        %4080 = vmatpush1.bf16.msra.mxu0 %v4033
        %4081 = vmatprep.subr.bf16.mxu0 0
        %4082 = vmatpush2.bf16.msra.mxu0 0
        %4083 = vmatprep.subr.bf16.mxu0 0
        %4084 = vmatpush2.bf16.msra.mxu0 0
        %4085 = vmatprep.subr.bf16.mxu0 0
        %4086 = vmatpush2.bf16.msra.mxu0 0
        %4087 = vmatprep.subr.bf16.mxu0 0
        %4088 = vmatpush2.bf16.msra.mxu0 0
        %4089 = vmatprep.subr.bf16.mxu0 0
        %4090 = vmatpush2.bf16.msra.mxu0 0
        %4091 = vmatprep.subr.bf16.mxu0 0
        %4092 = vmatpush2.bf16.msra.mxu0 0
        %4093 = vmatprep.subr.bf16.mxu0 0
        %4094 = vmatpush2.bf16.msra.mxu0 0
        %4095 = vmatprep.subr.bf16.mxu0 0
        %4096 = vmatpush2.bf16.msra.mxu0 0
        %4097 = vmatprep.mubr.bf16.mxu0 0
        %4098 = vmatmul.mubr.bf16.gmra.mxu0 %v3956
        %v4099 = vpop.f32.mrf.mxu0
        %v4100 = vadd.f32 %v3978, %v4099
        %v4101 = vpop.f32.mrf.mxu0
        %v4102 = vadd.f32 %v3982, %v4101
        %v4103 = vpop.f32.mrf.mxu0
        %v4104 = vpop.f32.mrf.mxu0
        %4105 = vdwg.mxu0
        %v4106 = vmax.f32 %v4100, 0.0
        %v4107 = vmax.f32 %v4102, 0.0
        %v4108 = vpack.c.bf16 %v4106, %v4106
        %v4109 = vpack.c.bf16 %v4107, %v4107
        %v4110 = vld [vmem:[%s14] sm:$0xf]
        %v4111 = vld [vmem:[%s14 + $0x4] sm:$0xf]
        %v4112 = vld [vmem:[%s14 + $0x8] sm:$0xf]
        %v4113 = vld [vmem:[%s14 + $0xc] sm:$0xf]
        %v4114 = vld [vmem:[%s14 + $0x10] sm:$0xf]
        %v4115 = vld [vmem:[%s14 + $0x14] sm:$0xf]
        %v4116 = vld [vmem:[%s14 + $0x18] sm:$0xf]
        %v4117 = vld [vmem:[%s14 + $0x1c] sm:$0xf]
        %v4118 = vld [vmem:[%s14 + $0x20] sm:$0xf]
        %v4119 = vld [vmem:[%s14 + $0x24] sm:$0xf]
        %v4120 = vld [vmem:[%s14 + $0x28] sm:$0xf]
        %v4121 = vld [vmem:[%s14 + $0x2c] sm:$0xf]
        %v4122 = vld [vmem:[%s14 + $0x30] sm:$0xf]
        %v4123 = vld [vmem:[%s14 + $0x34] sm:$0xf]
        %v4124 = vld [vmem:[%s14 + $0x38] sm:$0xf]
        %v4125 = vld [vmem:[%s14 + $0x3c] sm:$0xf]
        %v4126 = vld [vmem:[%s14 + $0x40] sm:$0xf]
        %v4127 = vld [vmem:[%s14 + $0x44] sm:$0xf]
        %v4128 = vld [vmem:[%s14 + $0x48] sm:$0xf]
        %v4129 = vld [vmem:[%s14 + $0x4c] sm:$0xf]
        %v4130 = vld [vmem:[%s14 + $0x50] sm:$0xf]
        %v4131 = vld [vmem:[%s14 + $0x54] sm:$0xf]
        %v4132 = vld [vmem:[%s14 + $0x58] sm:$0xf]
        %v4133 = vld [vmem:[%s14 + $0x5c] sm:$0xf]
        %v4134 = vld [vmem:[%s14 + $0x60] sm:$0xf]
        %v4135 = vld [vmem:[%s14 + $0x64] sm:$0xf]
        %v4136 = vld [vmem:[%s14 + $0x68] sm:$0xf]
        %v4137 = vld [vmem:[%s14 + $0x6c] sm:$0xf]
        %v4138 = vld [vmem:[%s14 + $0x70] sm:$0xf]
        %v4139 = vld [vmem:[%s14 + $0x74] sm:$0xf]
        %v4140 = vld [vmem:[%s14 + $0x78] sm:$0xf]
        %v4141 = vld [vmem:[%s14 + $0x7c] sm:$0xf]
        %v4142 = vld [vmem:[%s15] sm:$0x1]
        %v4144 = vlaneseq
        %v4145 = vshrl.u32 %v4144, 7
        %v4146 = vsub.s32 0, %v4145
        %v4147 = vrot.slane %v4142, %v4146
        %v4181 = vunpack.c.l.b16 %v4110
        %v4182 = vunpack.c.l.b16 %v4111
        %v4183 = vunpack.c.l.b16 %v4112
        %v4184 = vunpack.c.l.b16 %v4113
        %v4185 = vunpack.c.l.b16 %v4114
        %v4186 = vunpack.c.l.b16 %v4115
        %v4187 = vunpack.c.l.b16 %v4116
        %v4188 = vunpack.c.l.b16 %v4117
        %v4189 = vunpack.c.l.b16 %v4118
        %v4190 = vunpack.c.l.b16 %v4119
        %v4191 = vunpack.c.l.b16 %v4120
        %v4192 = vunpack.c.l.b16 %v4121
        %v4193 = vunpack.c.l.b16 %v4122
        %v4194 = vunpack.c.l.b16 %v4123
        %v4195 = vunpack.c.l.b16 %v4124
        %v4196 = vunpack.c.l.b16 %v4125
        %v4197 = vunpack.c.l.b16 %v4126
        %v4198 = vunpack.c.l.b16 %v4127
        %v4199 = vunpack.c.l.b16 %v4128
        %v4200 = vunpack.c.l.b16 %v4129
        %v4201 = vunpack.c.l.b16 %v4130
        %v4202 = vunpack.c.l.b16 %v4131
        %v4203 = vunpack.c.l.b16 %v4132
        %v4204 = vunpack.c.l.b16 %v4133
        %v4205 = vunpack.c.l.b16 %v4134
        %v4206 = vunpack.c.l.b16 %v4135
        %v4207 = vunpack.c.l.b16 %v4136
        %v4208 = vunpack.c.l.b16 %v4137
        %v4209 = vunpack.c.l.b16 %v4138
        %v4210 = vunpack.c.l.b16 %v4139
        %v4211 = vunpack.c.l.b16 %v4140
        %v4212 = vunpack.c.l.b16 %v4141
        %v4213 = vpack.c.b16 %v4182, %v4181
        %v4214 = vpack.c.b16 %v4184, %v4183
        %v4215 = vpack.c.b16 %v4186, %v4185
        %v4216 = vpack.c.b16 %v4188, %v4187
        %v4217 = vpack.c.b16 %v4190, %v4189
        %v4218 = vpack.c.b16 %v4192, %v4191
        %v4219 = vpack.c.b16 %v4194, %v4193
        %v4220 = vpack.c.b16 %v4196, %v4195
        %v4221 = vpack.c.b16 %v4198, %v4197
        %v4222 = vpack.c.b16 %v4200, %v4199
        %v4223 = vpack.c.b16 %v4202, %v4201
        %v4224 = vpack.c.b16 %v4204, %v4203
        %v4225 = vpack.c.b16 %v4206, %v4205
        %v4226 = vpack.c.b16 %v4208, %v4207
        %v4227 = vpack.c.b16 %v4210, %v4209
        %v4228 = vpack.c.b16 %v4212, %v4211
        %4245 = vmatprep.subr.bf16.mxu0 0
        %4246 = vmatpush1.bf16.msra.mxu0 %v4220
        %4247 = vmatprep.subr.bf16.mxu0 0
        %4248 = vmatpush1.bf16.msra.mxu0 %v4219
        %4249 = vmatprep.subr.bf16.mxu0 0
        %4250 = vmatpush1.bf16.msra.mxu0 %v4218
        %4251 = vmatprep.subr.bf16.mxu0 0
        %4252 = vmatpush1.bf16.msra.mxu0 %v4217
        %4253 = vmatprep.subr.bf16.mxu0 0
        %4254 = vmatpush1.bf16.msra.mxu0 %v4216
        %4255 = vmatprep.subr.bf16.mxu0 0
        %4256 = vmatpush1.bf16.msra.mxu0 %v4215
        %4257 = vmatprep.subr.bf16.mxu0 0
        %4258 = vmatpush1.bf16.msra.mxu0 %v4214
        %4259 = vmatprep.subr.bf16.mxu0 0
        %4260 = vmatpush1.bf16.msra.mxu0 %v4213
        %4261 = vmatprep.subr.bf16.mxu0 0
        %4262 = vmatpush2.bf16.msra.mxu0 %v4228
        %4263 = vmatprep.subr.bf16.mxu0 0
        %4264 = vmatpush2.bf16.msra.mxu0 %v4227
        %4265 = vmatprep.subr.bf16.mxu0 0
        %4266 = vmatpush2.bf16.msra.mxu0 %v4226
        %4267 = vmatprep.subr.bf16.mxu0 0
        %4268 = vmatpush2.bf16.msra.mxu0 %v4225
        %4269 = vmatprep.subr.bf16.mxu0 0
        %4270 = vmatpush2.bf16.msra.mxu0 %v4224
        %4271 = vmatprep.subr.bf16.mxu0 0
        %4272 = vmatpush2.bf16.msra.mxu0 %v4223
        %4273 = vmatprep.subr.bf16.mxu0 0
        %4274 = vmatpush2.bf16.msra.mxu0 %v4222
        %4275 = vmatprep.subr.bf16.mxu0 0
        %4276 = vmatpush2.bf16.msra.mxu0 %v4221
        %4277 = vmatprep.mubr.bf16.mxu0 %v4109
        %4278 = vmatmul.mubr.bf16.gmra.mxu0 %v4108
        %v4279 = vpop.f32.mrf.mxu0
        %v4280 = vadd.f32 %v4147, %v4279
        %v4281 = vpop.f32.mrf.mxu0
        %v4282 = vpop.f32.mrf.mxu0
        %v4283 = vpop.f32.mrf.mxu0
        %4284 = vdwg.mxu0
        %4285 = vst [vmem:[%s582] sm:$0xff] %v4280
        %p4286 = scmp.lt.s32.totalorder %s27, 1
        %s4287 = scalar_select %p4286, %s27, 1
        %s4288 = smul.addr %s4287, 8
        %s4289 = scalar_lea.vmem %s16, %s4288
        // Predicated region
        $region123: #{pyramid_conv_forward.1} parent=117 // pred_check
          %p4290 = pneg %p386
        $region124: #{pyramid_conv_forward.1} parent=117 // pred_check_branch
          %4292 = sbr.rel (%p4290) target = $region126
        $region125: #{pyramid_conv_forward.1} parent=117 // pred_region
          _
        $region126: #{pyramid_conv_forward.1} parent=117 // pred_fallthru
          _
      $region118: #{pyramid_conv_forward.1} parent=5 // pred_fallthru
        _
      %p4293 = scmp.le.s32.totalorder 2, %s22
      // Predicated region
      $region127: #{pyramid_conv_forward.1} parent=5 // pred_check
        %p4294 = pneg %p4293
      $region128: #{pyramid_conv_forward.1} parent=5 // pred_check_branch
        %4296 = sbr.rel (%p4294) target = $region130
      $region129: #{pyramid_conv_forward.1} parent=5 // pred_region
        %s4297 = ssub.s32 %s22, 2
        // Predicated region
        $region131: #{pyramid_conv_forward.1} parent=129 // pred_check
          %p4298 = pneg %p392
        $region132: #{pyramid_conv_forward.1} parent=129 // pred_check_branch
          %4300 = sbr.rel (%p4298) target = $region134
        $region133: #{pyramid_conv_forward.1} parent=129 // pred_region
          %p4301 = scmp.lt.s32.totalorder %s28, 1
          %s4302 = scalar_select %p4301, %s28, 1
          %s4303 = smul.addr %s4302, 8
          %s4304 = scalar_lea.vmem %s16, %s4303
        $region134: #{pyramid_conv_forward.1} parent=129 // pred_fallthru
          _
      $region130: #{pyramid_conv_forward.1} parent=5 // pred_fallthru
        _
    $region6: #{pyramid_conv_forward.1} parent=1 // loop_footer
      %s26 = sadd.s32 1, %s22
    $region7: #{pyramid_conv_forward.1} parent=1 // loop_footer_branch
      %21 = sbr.rel target = $region3
    $region8: #{pyramid_conv_forward.1} parent=1 // loop_exit
      _

</llo_original>
